<compile_context>
chip_gen: v7x
topology: tpu7x:2x2x1
jax: 0.10.0
libtpu: 0.0.40
codegen_flags: <defaults>
</compile_context>

<pallas_src>
import functools
import math

import jax
import jax.numpy as jnp
from jax import lax
from jax.experimental import pallas as pl
from jax.experimental.pallas import tpu as pltpu


def _half_swap(x, n_heads, dh):
    """Swap the two halves of every head block along the last axis.

    Static slice-and-concat (no MXU) -- replaces the previous permutation
    matmul, which cost more MXU FLOPs than the whole QKV projection.
    """
    half = dh // 2
    parts = []
    for h in range(n_heads):
        lo = x[..., h * dh: h * dh + half]
        hi = x[..., h * dh + half: (h + 1) * dh]
        parts.append(hi)
        parts.append(lo)
    return jnp.concatenate(parts, axis=-1)


def _mhsa_kernel(x_ref, ve_ref, mcol_ref, maux_ref, wqkvt_ref, wprojt_ref,
                 cos_ref, sin_ref, seg_ref, segt_ref, lam_ref, o_ref, *,
                 n_heads, dim, seq, block_b, scale, has_attn_mask):
    """Processes `block_b` batch elements per grid step."""
    H = n_heads
    D = dim
    dh = D // H
    T = seq
    Bb = block_b
    N = Bb * T
    eps = jnp.float32(jnp.finfo(jnp.float32).eps)   # F.rms_norm default eps
    neg_big = jnp.float32(-1e30)                    # finite "masked" score

    x2d = x_ref[...].reshape(N, D)                               # bf16
    ve2d = ve_ref[...].reshape(N, D).astype(jnp.float32)
    m3 = mcol_ref[...]                                           # [Bb, T, 1] f32
    l0 = lam_ref[0]
    l1 = lam_ref[1]

    # Q/K/V projections batched over Bb*T rows (bf16 MXU, f32 accumulation).
    q = jnp.dot(x2d, wqkvt_ref[0], preferred_element_type=jnp.float32)   # [N, D]
    k = jnp.dot(x2d, wqkvt_ref[1], preferred_element_type=jnp.float32)
    v = jnp.dot(x2d, wqkvt_ref[2], preferred_element_type=jnp.float32)

    # Per-head RMSNorm: sum-of-squares reduction and factor expansion via
    # bf16 0/1-indicator matmuls (f32 accumulation).
    seg = seg_ref[...]                                           # [D, H] bf16
    segt = segt_ref[...]                                         # [H, D] bf16
    ssq_q = jnp.dot((q * q).astype(jnp.bfloat16), seg,
                    preferred_element_type=jnp.float32)          # [N, H]
    ssq_k = jnp.dot((k * k).astype(jnp.bfloat16), seg,
                    preferred_element_type=jnp.float32)
    inv_q = lax.rsqrt(ssq_q * (1.0 / dh) + eps)
    inv_k = lax.rsqrt(ssq_k * (1.0 / dh) + eps)
    qn = q * jnp.dot(inv_q.astype(jnp.bfloat16), segt,
                     preferred_element_type=jnp.float32)         # [N, D]
    kn = k * jnp.dot(inv_k.astype(jnp.bfloat16), segt,
                     preferred_element_type=jnp.float32)

    # RoPE: partner = half-swap within each head; rotation sign is folded into
    # the sin table; attention scale folded into the Q pad-mask multiply.
    cos = cos_ref[...]                                           # [T, D] f32
    sin = sin_ref[...]                                           # [T, D] f32
    qn3 = qn.reshape(Bb, T, D)
    kn3 = kn.reshape(Bb, T, D)
    qr3 = ((qn3 * cos + _half_swap(qn3, H, dh) * sin)
           * (m3 * scale)).astype(jnp.bfloat16)                  # [Bb, T, D] bf16
    kr3 = (kn3 * cos + _half_swap(kn3, H, dh) * sin) * m3        # f32

    # Value mixing with lambdas + ve, then padding mask.
    v3 = ((l0 * v + l1 * ve2d).reshape(Bb, T, D) * m3).astype(jnp.bfloat16)

    if not has_attn_mask:
        row = lax.broadcasted_iota(jnp.int32, (T, T), 0)
        col = lax.broadcasted_iota(jnp.int32, (T, T), 1)
        causal = col <= row

    for b in range(Bb):
        if has_attn_mask:
            keep = maux_ref[b] != 0                              # [T, T] from int8
        else:
            keep = jnp.logical_and(causal, maux_ref[b] > 0.0)    # causal & key-valid
        bias = jnp.where(keep, 0.0, neg_big)                     # [T, T] f32

        q_b = qr3[b]                                             # [T, D] bf16
        kt_b = kr3[b].T.astype(jnp.bfloat16)                     # [D, T] bf16 (one transpose/batch)
        v_b = v3[b]                                              # [T, D] bf16

        acc = jnp.zeros((T, D), jnp.float32)
        for h in range(H):
            sl = slice(h * dh, (h + 1) * dh)
            s = jnp.dot(q_b[:, sl], kt_b[sl, :],
                        preferred_element_type=jnp.float32) + bias       # [T, T]
            smax = jnp.max(s, axis=-1, keepdims=True)
            p = jnp.exp(s - smax)
            w = p * pl.reciprocal(jnp.sum(p, axis=-1, keepdims=True), approx=True)
            oh = jnp.dot(w.astype(jnp.bfloat16), v_b[:, sl],
                         preferred_element_type=jnp.float32)             # [T, dh]
            # Output projection folded per head into a register accumulator
            # (no VMEM scratch bounce, no masked partial stores).
            acc = acc + jnp.dot(oh.astype(jnp.bfloat16), wprojt_ref[sl, :],
                                preferred_element_type=jnp.float32)
        o_ref[b] = (acc * m3[b]).astype(o_ref.dtype)   # final torch.where(mask, ., 0)


def mhsa_pallas(x, ve, mask, attn_mask, wqkv, wproj, lambdas, cos, sin, *,
                n_heads, scale=0.12, block_b=None):
    """attn_mask: [B, 1, T, T] bool, or None to derive (causal AND key-valid)
    in-kernel from `mask` (drops the [B, T, T] mask DMA entirely)."""
    B, T, D = x.shape
    H = n_heads
    dh = D // H

    if block_b is None:
        # keep >= 2 grid steps when possible (both TensorCores on v7x) while
        # still batching rows for MXU M-fill.
        block_b = B // 2 if (B % 2 == 0 and B >= 2) else 1
    assert B % block_b == 0

    # ---- constant tables, built once and shared across the batch grid ----
    wqkv_t = jnp.transpose(wqkv, (0, 2, 1)).astype(jnp.bfloat16)         # [3, D, D]
    wproj_t = wproj.T.astype(jnp.bfloat16)                               # [D, D]

    cos_head = jnp.concatenate([cos, cos], axis=1)                       # [T, dh]
    sin_head = jnp.concatenate([sin, -sin], axis=1)                      # [T, dh]
    cos_full = jnp.tile(cos_head, (1, H)).astype(jnp.float32)            # [T, D]
    sin_full = jnp.tile(sin_head, (1, H)).astype(jnp.float32)            # [T, D]

    # 0/1 head indicators for the per-head RMSNorm reduction/expansion (bf16-exact).
    grp = jnp.arange(D) // dh
    seg = (grp[:, None] == jnp.arange(H)[None, :]).astype(jnp.bfloat16)  # [D, H]
    segt = seg.T                                                         # [H, D]

    x_b = x.astype(jnp.bfloat16)
    ve_b = ve.astype(jnp.bfloat16)
    mask_col = mask.astype(jnp.float32)                                  # [B, T, 1]
    lambdas_f = lambdas.astype(jnp.float32)

    has_attn_mask = attn_mask is not None
    if has_attn_mask:
        maux = attn_mask[:, 0].astype(jnp.int8)                          # [B, T, T]
        maux_spec = pl.BlockSpec((block_b, T, T), lambda i: (i, 0, 0))
    else:
        maux = jnp.transpose(mask_col, (0, 2, 1))                        # [B, 1, T]
        maux_spec = pl.BlockSpec((block_b, 1, T), lambda i: (i, 0, 0))

    kernel = functools.partial(
        _mhsa_kernel, n_heads=H, dim=D, seq=T, block_b=block_b,
        scale=float(scale), has_attn_mask=has_attn_mask)

    grid_spec = pltpu.PrefetchScalarGridSpec(
        num_scalar_prefetch=0,
        grid=(B // block_b,),
        in_specs=[
            pl.BlockSpec((block_b, T, D), lambda i: (i, 0, 0)),          # x (bf16)
            pl.BlockSpec((block_b, T, D), lambda i: (i, 0, 0)),          # ve (bf16)
            pl.BlockSpec((block_b, T, 1), lambda i: (i, 0, 0)),          # pad mask
            maux_spec,                                                   # key/attn mask
            pl.BlockSpec((3, D, D), lambda i: (0, 0, 0)),                # Wq/Wk/Wv^T bf16
            pl.BlockSpec((D, D), lambda i: (0, 0)),                      # Wproj^T bf16
            pl.BlockSpec((T, D), lambda i: (0, 0)),                      # rope cos
            pl.BlockSpec((T, D), lambda i: (0, 0)),                      # rope sin (signed)
            pl.BlockSpec((D, H), lambda i: (0, 0)),                      # head indicator
            pl.BlockSpec((H, D), lambda i: (0, 0)),                      # head indicator^T
            pl.BlockSpec(memory_space=pltpu.MemorySpace.SMEM),           # lambdas (2,)
        ],
        out_specs=pl.BlockSpec((block_b, T, D), lambda i: (i, 0, 0)),
    )
    # TODO(synk): at production T/D, single-buffer the constant tables
    # (pipeline_mode=pl.Buffered(1)), set vmem_limit_bytes with headroom, and
    # switch to a QKV pass + flash-style q-tiled attention; pick tiles per chip
    # via pltpu.get_tpu_info (v7x: 64 MiB VMEM vs 128 MiB on v5e/v6e).
    return pl.pallas_call(
        kernel,
        out_shape=jax.ShapeDtypeStruct((B, T, D), jnp.float32),
        grid_spec=grid_spec,
        compiler_params=pltpu.CompilerParams(
            dimension_semantics=("parallel",)),       # batch blocks are independent
    )(x_b, ve_b, mask_col, maux, wqkv_t, wproj_t, cos_full, sin_full,
      seg, segt, lambdas_f)


def make_rope_tables(dh, T):
    """RotaryEmbedding buffers (cos/sin, shape [T, dh//2]) for positions [0, T)."""
    quarter = dh // 4
    af = (1.0 / 1024.0) ** jnp.linspace(0.0, 1.0, quarter, dtype=jnp.float32)
    af = jnp.concatenate([af, jnp.zeros((quarter,), jnp.float32)])
    t = jnp.arange(T, dtype=jnp.float32)
    theta = t[:, None] * af[None, :]
    return jnp.cos(theta), jnp.sin(theta)


def mhsa_ref(x, ve, mask, attn_mask, wqkv, wproj, lambdas, cos, sin, *,
             n_heads, scale=0.12):
    """Pure-JAX f32 reference mirroring the PyTorch forward (for validation)."""
    B, T, D = x.shape
    H = n_heads
    dh = D // H
    eps = jnp.finfo(jnp.float32).eps

    def rmsn(a):
        return a * lax.rsqrt(jnp.mean(a * a, axis=-1, keepdims=True) + eps)

    def rope(a):
        half = dh // 2
        a1, a2 = a[..., :half], a[..., half:]
        c = cos[None, :, None, :]
        s = sin[None, :, None, :]
        return jnp.concatenate([a1 * c + a2 * s, -a1 * s + a2 * c], axis=-1)

    qkv = x @ wqkv.reshape(3 * D, D).T
    qkv = qkv.reshape(B, T, 3, H, dh)
    q, k, v = qkv[:, :, 0], qkv[:, :, 1], qkv[:, :, 2]
    q = rope(rmsn(q))
    k = rope(rmsn(k))
    v = lambdas[0] * v + lambdas[1] * ve.reshape(B, T, H, dh)

    me = mask[:, None]                                   # [B,1,T,1]
    q = jnp.where(me, q.transpose(0, 2, 1, 3), 0.0)
    k = jnp.where(me, k.transpose(0, 2, 1, 3), 0.0)
    v = jnp.where(me, v.transpose(0, 2, 1, 3), 0.0)

    bias = jnp.where(attn_mask, 0.0, jnp.finfo(jnp.float32).min)     # [B,1,T,T]
    scores = jnp.einsum('bhtd,bhsd->bhts', q, k) * scale + bias
    w = jax.nn.softmax(scores, axis=-1)
    o = jnp.einsum('bhts,bhsd->bhtd', w, v)
    o = o.transpose(0, 2, 1, 3).reshape(B, T, D)
    o = jnp.where(mask, o @ wproj.T, 0.0)
    return o


if __name__ == "__main__":
    B, T, D, H = 4, 32, 64, 4
    dh = D // H
    scale = 0.12

    key = jax.random.PRNGKey(0)
    kx, kv, kw1, kw2 = jax.random.split(key, 4)

    # deterministic parameter init matching the module's __init__ shapes
    bound = math.sqrt(3.0) * 0.5 * D ** (-0.5)
    wqkv = jax.random.uniform(kw1, (3, D, D), jnp.float32, -bound, bound)
    wproj = jax.random.uniform(kw2, (D, D), jnp.float32, -bound, bound)
    lambdas = jnp.array([0.5, 0.5], dtype=jnp.float32)

    x = jax.random.normal(kx, (B, T, D), dtype=jnp.float32)
    ve = jax.random.normal(kv, (B, T, D), dtype=jnp.float32)

    # padding mask + causal attention mask restricted to valid keys
    lengths = jnp.array([T, 20, 32, 12])
    mask = (jnp.arange(T)[None, :] < lengths[:, None])[:, :, None]       # [B,T,1]
    causal = jnp.tril(jnp.ones((T, T), dtype=jnp.bool_))
    attn_mask = causal[None, None] & mask[:, None, None, :, 0]           # [B,1,T,T]

    cos, sin = make_rope_tables(dh, T)

    ref = mhsa_ref(x, ve, mask, attn_mask, wqkv, wproj, lambdas, cos, sin,
                   n_heads=H, scale=scale)

    # Path 1: attention mask derived in-kernel (causal AND key-valid; no [B,T,T] DMA).
    out_a = mhsa_pallas(x, ve, mask, None, wqkv, wproj, lambdas, cos, sin,
                        n_heads=H, scale=scale)
    # Path 2: arbitrary attn_mask shipped as compact int8.
    out_b = mhsa_pallas(x, ve, mask, attn_mask, wqkv, wproj, lambdas, cos, sin,
                        n_heads=H, scale=scale)
    out_a, out_b = jax.block_until_ready((out_a, out_b))

    for out in (out_a, out_b):
        assert out.shape == (B, T, D)
        assert bool(jnp.all(jnp.isfinite(out)))
        max_err = float(jnp.max(jnp.abs(out - ref)))
        # bf16 MXU operands (f32 accumulation) -> slightly looser tolerance than f32.
        assert jnp.allclose(out, ref, atol=5e-2, rtol=5e-2), max_err
    print("KERNEL_OK")
</pallas_src>

<mosaic_0001>
module attributes {stable_mosaic.version = 11 : i64} {
  func.func @_mhsa_kernel(%arg0: i32, %arg1: memref<2x32x64xbf16, #tpu.memory_space<vmem>>, %arg2: memref<2x32x64xbf16, #tpu.memory_space<vmem>>, %arg3: memref<2x32x1xf32, #tpu.memory_space<vmem>>, %arg4: memref<2x1x32xf32, #tpu.memory_space<vmem>>, %arg5: memref<3x64x64xbf16, #tpu.memory_space<vmem>>, %arg6: memref<64x64xbf16, #tpu.memory_space<vmem>>, %arg7: memref<32x64xf32, #tpu.memory_space<vmem>>, %arg8: memref<32x64xf32, #tpu.memory_space<vmem>>, %arg9: memref<64x4xbf16, #tpu.memory_space<vmem>>, %arg10: memref<4x64xbf16, #tpu.memory_space<vmem>>, %arg11: memref<2xf32, #tpu.memory_space<smem>>, %arg12: memref<2x32x64xf32, #tpu.memory_space<vmem>>) attributes {dimension_semantics = [#tpu.dimension_semantics<parallel>], iteration_bounds = array<i64: 2>, scalar_prefetch = 0 : i64, scratch_operands = 0 : i64, tpu.core_type = #tpu.core_type<tc>, window_params = [{transform_indices = @transform_0, window_bounds = array<i64: 2, 32, 64>}, {transform_indices = @transform_1, window_bounds = array<i64: 2, 32, 64>}, {transform_indices = @transform_2, window_bounds = array<i64: 2, 32, 1>}, {transform_indices = @transform_3, window_bounds = array<i64: 2, 1, 32>}, {pipeline_mode = #tpu.pipeline_mode<synchronous>, transform_indices = @transform_4, window_bounds = array<i64: 3, 64, 64>}, {pipeline_mode = #tpu.pipeline_mode<synchronous>, transform_indices = @transform_5, window_bounds = array<i64: 64, 64>}, {pipeline_mode = #tpu.pipeline_mode<synchronous>, transform_indices = @transform_6, window_bounds = array<i64: 32, 64>}, {pipeline_mode = #tpu.pipeline_mode<synchronous>, transform_indices = @transform_7, window_bounds = array<i64: 32, 64>}, {pipeline_mode = #tpu.pipeline_mode<synchronous>, transform_indices = @transform_8, window_bounds = array<i64: 64, 4>}, {pipeline_mode = #tpu.pipeline_mode<synchronous>, transform_indices = @transform_9, window_bounds = array<i64: 4, 64>}, {transform_indices = @transform_10, window_bounds = array<i64: 2>}, {transform_indices = @transform_11, window_bounds = array<i64: 2, 32, 64>}]} {
    %c0 = arith.constant 0 : index
    %c0_0 = arith.constant 0 : index
    %c0_1 = arith.constant 0 : index
    %0 = vector.load %arg1[%c0, %c0_0, %c0_1] : memref<2x32x64xbf16, #tpu.memory_space<vmem>>, vector<2x32x64xbf16>
    %1 = vector.shape_cast %0 : vector<2x32x64xbf16> to vector<64x64xbf16>
    %c0_2 = arith.constant 0 : index
    %c0_3 = arith.constant 0 : index
    %c0_4 = arith.constant 0 : index
    %2 = vector.load %arg2[%c0_2, %c0_3, %c0_4] : memref<2x32x64xbf16, #tpu.memory_space<vmem>>, vector<2x32x64xbf16>
    %3 = vector.shape_cast %2 : vector<2x32x64xbf16> to vector<64x64xbf16>
    %4 = arith.extf %3 : vector<64x64xbf16> to vector<64x64xf32>
    %c0_5 = arith.constant 0 : index
    %c0_6 = arith.constant 0 : index
    %c0_7 = arith.constant 0 : index
    %5 = vector.load %arg3[%c0_5, %c0_6, %c0_7] : memref<2x32x1xf32, #tpu.memory_space<vmem>>, vector<2x32x1xf32>
    %c0_8 = arith.constant 0 : index
    %6 = memref.load %arg11[%c0_8] : memref<2xf32, #tpu.memory_space<smem>>
    %c1 = arith.constant 1 : index
    %7 = memref.load %arg11[%c1] : memref<2xf32, #tpu.memory_space<smem>>
    %c0_9 = arith.constant 0 : index
    %c0_10 = arith.constant 0 : index
    %c0_11 = arith.constant 0 : index
    %8 = vector.load %arg5[%c0_9, %c0_10, %c0_11] : memref<3x64x64xbf16, #tpu.memory_space<vmem>>, vector<1x64x64xbf16>
    %9 = vector.shape_cast %8 : vector<1x64x64xbf16> to vector<64x64xbf16>
    %cst = arith.constant dense<0.000000e+00> : vector<64x64xf32>
    %10 = tpu.matmul %1, %9, %cst {dimension_numbers = #tpu.dot_dimension_numbers<[1], [0], [0], [1], [0, 0, 1, 1], [], []>} : vector<64x64xbf16>, vector<64x64xbf16>, vector<64x64xf32> -> vector<64x64xf32>
    %c1_12 = arith.constant 1 : index
    %c0_13 = arith.constant 0 : index
    %c0_14 = arith.constant 0 : index
    %11 = vector.load %arg5[%c1_12, %c0_13, %c0_14] : memref<3x64x64xbf16, #tpu.memory_space<vmem>>, vector<1x64x64xbf16>
    %12 = vector.shape_cast %11 : vector<1x64x64xbf16> to vector<64x64xbf16>
    %cst_15 = arith.constant dense<0.000000e+00> : vector<64x64xf32>
    %13 = tpu.matmul %1, %12, %cst_15 {dimension_numbers = #tpu.dot_dimension_numbers<[1], [0], [0], [1], [0, 0, 1, 1], [], []>} : vector<64x64xbf16>, vector<64x64xbf16>, vector<64x64xf32> -> vector<64x64xf32>
    %c2 = arith.constant 2 : index
    %c0_16 = arith.constant 0 : index
    %c0_17 = arith.constant 0 : index
    %14 = vector.load %arg5[%c2, %c0_16, %c0_17] : memref<3x64x64xbf16, #tpu.memory_space<vmem>>, vector<1x64x64xbf16>
    %15 = vector.shape_cast %14 : vector<1x64x64xbf16> to vector<64x64xbf16>
    %cst_18 = arith.constant dense<0.000000e+00> : vector<64x64xf32>
    %16 = tpu.matmul %1, %15, %cst_18 {dimension_numbers = #tpu.dot_dimension_numbers<[1], [0], [0], [1], [0, 0, 1, 1], [], []>} : vector<64x64xbf16>, vector<64x64xbf16>, vector<64x64xf32> -> vector<64x64xf32>
    %c0_19 = arith.constant 0 : index
    %c0_20 = arith.constant 0 : index
    %17 = vector.load %arg9[%c0_19, %c0_20] : memref<64x4xbf16, #tpu.memory_space<vmem>>, vector<64x4xbf16>
    %c0_21 = arith.constant 0 : index
    %c0_22 = arith.constant 0 : index
    %18 = vector.load %arg10[%c0_21, %c0_22] : memref<4x64xbf16, #tpu.memory_space<vmem>>, vector<4x64xbf16>
    %19 = arith.mulf %10, %10 : vector<64x64xf32>
    %20 = arith.truncf %19 : vector<64x64xf32> to vector<64x64xbf16>
    %cst_23 = arith.constant dense<0.000000e+00> : vector<64x4xf32>
    %21 = tpu.matmul %20, %17, %cst_23 {dimension_numbers = #tpu.dot_dimension_numbers<[1], [0], [0], [1], [0, 0, 1, 1], [], []>} : vector<64x64xbf16>, vector<64x4xbf16>, vector<64x4xf32> -> vector<64x4xf32>
    %22 = arith.mulf %13, %13 : vector<64x64xf32>
    %23 = arith.truncf %22 : vector<64x64xf32> to vector<64x64xbf16>
    %cst_24 = arith.constant dense<0.000000e+00> : vector<64x4xf32>
    %24 = tpu.matmul %23, %17, %cst_24 {dimension_numbers = #tpu.dot_dimension_numbers<[1], [0], [0], [1], [0, 0, 1, 1], [], []>} : vector<64x64xbf16>, vector<64x4xbf16>, vector<64x4xf32> -> vector<64x4xf32>
    %cst_25 = arith.constant 6.250000e-02 : f32
    %25 = vector.broadcast %cst_25 : f32 to vector<64x4xf32>
    %26 = arith.mulf %21, %25 : vector<64x4xf32>
    %cst_26 = arith.constant 1.1920929E-7 : f32
    %27 = vector.broadcast %cst_26 : f32 to vector<64x4xf32>
    %28 = arith.addf %26, %27 : vector<64x4xf32>
    %29 = math.rsqrt %28 : vector<64x4xf32>
    %cst_27 = arith.constant 6.250000e-02 : f32
    %30 = vector.broadcast %cst_27 : f32 to vector<64x4xf32>
    %31 = arith.mulf %24, %30 : vector<64x4xf32>
    %cst_28 = arith.constant 1.1920929E-7 : f32
    %32 = vector.broadcast %cst_28 : f32 to vector<64x4xf32>
    %33 = arith.addf %31, %32 : vector<64x4xf32>
    %34 = math.rsqrt %33 : vector<64x4xf32>
    %35 = arith.truncf %29 : vector<64x4xf32> to vector<64x4xbf16>
    %cst_29 = arith.constant dense<0.000000e+00> : vector<64x64xf32>
    %36 = tpu.matmul %35, %18, %cst_29 {dimension_numbers = #tpu.dot_dimension_numbers<[1], [0], [0], [1], [0, 0, 1, 1], [], []>} : vector<64x4xbf16>, vector<4x64xbf16>, vector<64x64xf32> -> vector<64x64xf32>
    %37 = arith.mulf %10, %36 : vector<64x64xf32>
    %38 = arith.truncf %34 : vector<64x4xf32> to vector<64x4xbf16>
    %cst_30 = arith.constant dense<0.000000e+00> : vector<64x64xf32>
    %39 = tpu.matmul %38, %18, %cst_30 {dimension_numbers = #tpu.dot_dimension_numbers<[1], [0], [0], [1], [0, 0, 1, 1], [], []>} : vector<64x4xbf16>, vector<4x64xbf16>, vector<64x64xf32> -> vector<64x64xf32>
    %40 = arith.mulf %13, %39 : vector<64x64xf32>
    %c0_31 = arith.constant 0 : index
    %c0_32 = arith.constant 0 : index
    %41 = vector.load %arg7[%c0_31, %c0_32] : memref<32x64xf32, #tpu.memory_space<vmem>>, vector<32x64xf32>
    %c0_33 = arith.constant 0 : index
    %c0_34 = arith.constant 0 : index
    %42 = vector.load %arg8[%c0_33, %c0_34] : memref<32x64xf32, #tpu.memory_space<vmem>>, vector<32x64xf32>
    %43 = vector.shape_cast %37 : vector<64x64xf32> to vector<2x32x64xf32>
    %44 = vector.shape_cast %40 : vector<64x64xf32> to vector<2x32x64xf32>
    %45 = vector.shape_cast %41 : vector<32x64xf32> to vector<1x32x64xf32>
    %46 = vector.broadcast %45 : vector<1x32x64xf32> to vector<2x32x64xf32>
    %47 = arith.mulf %43, %46 : vector<2x32x64xf32>
    %48 = vector.extract_strided_slice %43 {offsets = [0, 0, 0], sizes = [2, 32, 8], strides = [1, 1, 1]} : vector<2x32x64xf32> to vector<2x32x8xf32>
    %49 = vector.extract_strided_slice %43 {offsets = [0, 0, 8], sizes = [2, 32, 8], strides = [1, 1, 1]} : vector<2x32x64xf32> to vector<2x32x8xf32>
    %50 = vector.extract_strided_slice %43 {offsets = [0, 0, 16], sizes = [2, 32, 8], strides = [1, 1, 1]} : vector<2x32x64xf32> to vector<2x32x8xf32>
    %51 = vector.extract_strided_slice %43 {offsets = [0, 0, 24], sizes = [2, 32, 8], strides = [1, 1, 1]} : vector<2x32x64xf32> to vector<2x32x8xf32>
    %52 = vector.extract_strided_slice %43 {offsets = [0, 0, 32], sizes = [2, 32, 8], strides = [1, 1, 1]} : vector<2x32x64xf32> to vector<2x32x8xf32>
    %53 = vector.extract_strided_slice %43 {offsets = [0, 0, 40], sizes = [2, 32, 8], strides = [1, 1, 1]} : vector<2x32x64xf32> to vector<2x32x8xf32>
    %54 = vector.extract_strided_slice %43 {offsets = [0, 0, 48], sizes = [2, 32, 8], strides = [1, 1, 1]} : vector<2x32x64xf32> to vector<2x32x8xf32>
    %55 = vector.extract_strided_slice %43 {offsets = [0, 0, 56], sizes = [2, 32, 8], strides = [1, 1, 1]} : vector<2x32x64xf32> to vector<2x32x8xf32>
    %56 = tpu.concatenate %49, %48, %51, %50, %53, %52, %55, %54 in 2 : vector<2x32x8xf32>, vector<2x32x8xf32>, vector<2x32x8xf32>, vector<2x32x8xf32>, vector<2x32x8xf32>, vector<2x32x8xf32>, vector<2x32x8xf32>, vector<2x32x8xf32> -> vector<2x32x64xf32>
    %57 = vector.shape_cast %42 : vector<32x64xf32> to vector<1x32x64xf32>
    %58 = vector.broadcast %57 : vector<1x32x64xf32> to vector<2x32x64xf32>
    %59 = arith.mulf %56, %58 : vector<2x32x64xf32>
    %60 = arith.addf %47, %59 : vector<2x32x64xf32>
    %cst_35 = arith.constant 1.200000e-01 : f32
    %61 = vector.broadcast %cst_35 : f32 to vector<2x32x1xf32>
    %62 = arith.mulf %5, %61 : vector<2x32x1xf32>
    %63 = vector.broadcast %62 : vector<2x32x1xf32> to vector<2x32x64xf32>
    %64 = arith.mulf %60, %63 : vector<2x32x64xf32>
    %65 = arith.truncf %64 : vector<2x32x64xf32> to vector<2x32x64xbf16>
    %66 = vector.shape_cast %41 : vector<32x64xf32> to vector<1x32x64xf32>
    %67 = vector.broadcast %66 : vector<1x32x64xf32> to vector<2x32x64xf32>
    %68 = arith.mulf %44, %67 : vector<2x32x64xf32>
    %69 = vector.extract_strided_slice %44 {offsets = [0, 0, 0], sizes = [2, 32, 8], strides = [1, 1, 1]} : vector<2x32x64xf32> to vector<2x32x8xf32>
    %70 = vector.extract_strided_slice %44 {offsets = [0, 0, 8], sizes = [2, 32, 8], strides = [1, 1, 1]} : vector<2x32x64xf32> to vector<2x32x8xf32>
    %71 = vector.extract_strided_slice %44 {offsets = [0, 0, 16], sizes = [2, 32, 8], strides = [1, 1, 1]} : vector<2x32x64xf32> to vector<2x32x8xf32>
    %72 = vector.extract_strided_slice %44 {offsets = [0, 0, 24], sizes = [2, 32, 8], strides = [1, 1, 1]} : vector<2x32x64xf32> to vector<2x32x8xf32>
    %73 = vector.extract_strided_slice %44 {offsets = [0, 0, 32], sizes = [2, 32, 8], strides = [1, 1, 1]} : vector<2x32x64xf32> to vector<2x32x8xf32>
    %74 = vector.extract_strided_slice %44 {offsets = [0, 0, 40], sizes = [2, 32, 8], strides = [1, 1, 1]} : vector<2x32x64xf32> to vector<2x32x8xf32>
    %75 = vector.extract_strided_slice %44 {offsets = [0, 0, 48], sizes = [2, 32, 8], strides = [1, 1, 1]} : vector<2x32x64xf32> to vector<2x32x8xf32>
    %76 = vector.extract_strided_slice %44 {offsets = [0, 0, 56], sizes = [2, 32, 8], strides = [1, 1, 1]} : vector<2x32x64xf32> to vector<2x32x8xf32>
    %77 = tpu.concatenate %70, %69, %72, %71, %74, %73, %76, %75 in 2 : vector<2x32x8xf32>, vector<2x32x8xf32>, vector<2x32x8xf32>, vector<2x32x8xf32>, vector<2x32x8xf32>, vector<2x32x8xf32>, vector<2x32x8xf32>, vector<2x32x8xf32> -> vector<2x32x64xf32>
    %78 = vector.shape_cast %42 : vector<32x64xf32> to vector<1x32x64xf32>
    %79 = vector.broadcast %78 : vector<1x32x64xf32> to vector<2x32x64xf32>
    %80 = arith.mulf %77, %79 : vector<2x32x64xf32>
    %81 = arith.addf %68, %80 : vector<2x32x64xf32>
    %82 = vector.broadcast %5 : vector<2x32x1xf32> to vector<2x32x64xf32>
    %83 = arith.mulf %81, %82 : vector<2x32x64xf32>
    %84 = vector.broadcast %6 : f32 to vector<64x64xf32>
    %85 = arith.mulf %84, %16 : vector<64x64xf32>
    %86 = vector.broadcast %7 : f32 to vector<64x64xf32>
    %87 = arith.mulf %86, %4 : vector<64x64xf32>
    %88 = arith.addf %85, %87 : vector<64x64xf32>
    %89 = vector.shape_cast %88 : vector<64x64xf32> to vector<2x32x64xf32>
    %90 = vector.broadcast %5 : vector<2x32x1xf32> to vector<2x32x64xf32>
    %91 = arith.mulf %89, %90 : vector<2x32x64xf32>
    %92 = arith.truncf %91 : vector<2x32x64xf32> to vector<2x32x64xbf16>
    %93 = tpu.iota {dimensions = array<i32: 0>} : vector<32x32xi32>
    %94 = tpu.iota {dimensions = array<i32: 1>} : vector<32x32xi32>
    %95 = arith.cmpi sle, %94, %93 : vector<32x32xi32>
    %c0_36 = arith.constant 0 : index
    %c0_37 = arith.constant 0 : index
    %c0_38 = arith.constant 0 : index
    %96 = vector.load %arg4[%c0_36, %c0_37, %c0_38] : memref<2x1x32xf32, #tpu.memory_space<vmem>>, vector<1x1x32xf32>
    %97 = vector.shape_cast %96 : vector<1x1x32xf32> to vector<1x32xf32>
    %cst_39 = arith.constant 0.000000e+00 : f32
    %98 = vector.broadcast %cst_39 : f32 to vector<1x32xf32>
    %99 = arith.cmpf ogt, %97, %98 : vector<1x32xf32>
    %100 = vector.broadcast %99 : vector<1x32xi1> to vector<32x32xi1>
    %101 = arith.andi %95, %100 : vector<32x32xi1>
    %cst_40 = arith.constant 0.000000e+00 : f32
    %cst_41 = arith.constant -1.000000e+30 : f32
    %102 = vector.broadcast %cst_40 : f32 to vector<32x32xf32>
    %103 = vector.broadcast %cst_41 : f32 to vector<32x32xf32>
    %104 = arith.select %101, %102, %103 : vector<32x32xi1>, vector<32x32xf32>
    %105 = vector.extract_strided_slice %65 {offsets = [0, 0, 0], sizes = [1, 32, 64], strides = [1, 1, 1]} : vector<2x32x64xbf16> to vector<1x32x64xbf16>
    %106 = vector.shape_cast %105 : vector<1x32x64xbf16> to vector<32x64xbf16>
    %107 = vector.extract_strided_slice %83 {offsets = [0, 0, 0], sizes = [1, 32, 64], strides = [1, 1, 1]} : vector<2x32x64xf32> to vector<1x32x64xf32>
    %108 = vector.shape_cast %107 : vector<1x32x64xf32> to vector<32x64xf32>
    %109 = tpu.transpose %108, [1, 0] : vector<32x64xf32> -> vector<64x32xf32>
    %110 = arith.truncf %109 : vector<64x32xf32> to vector<64x32xbf16>
    %111 = vector.extract_strided_slice %92 {offsets = [0, 0, 0], sizes = [1, 32, 64], strides = [1, 1, 1]} : vector<2x32x64xbf16> to vector<1x32x64xbf16>
    %112 = vector.shape_cast %111 : vector<1x32x64xbf16> to vector<32x64xbf16>
    %cst_42 = arith.constant 0.000000e+00 : f32
    %113 = vector.broadcast %cst_42 : f32 to vector<32x64xf32>
    %114 = vector.extract_strided_slice %106 {offsets = [0, 0], sizes = [32, 16], strides = [1, 1]} : vector<32x64xbf16> to vector<32x16xbf16>
    %115 = vector.extract_strided_slice %110 {offsets = [0, 0], sizes = [16, 32], strides = [1, 1]} : vector<64x32xbf16> to vector<16x32xbf16>
    %cst_43 = arith.constant dense<0.000000e+00> : vector<32x32xf32>
    %116 = tpu.matmul %114, %115, %cst_43 {dimension_numbers = #tpu.dot_dimension_numbers<[1], [0], [0], [1], [0, 0, 1, 1], [], []>} : vector<32x16xbf16>, vector<16x32xbf16>, vector<32x32xf32> -> vector<32x32xf32>
    %117 = arith.addf %116, %104 : vector<32x32xf32>
    %cst_44 = arith.constant dense<0xFF800000> : vector<32xf32>
    %118 = vector.multi_reduction <maximumf>, %117, %cst_44 [1] : vector<32x32xf32> to vector<32xf32>
    %119 = vector.shape_cast %118 : vector<32xf32> to vector<32x1xf32>
    %120 = vector.broadcast %119 : vector<32x1xf32> to vector<32x32xf32>
    %121 = arith.subf %117, %120 : vector<32x32xf32>
    %122 = math.exp %121 : vector<32x32xf32>
    %cst_45 = arith.constant dense<0.000000e+00> : vector<32xf32>
    %123 = vector.multi_reduction <add>, %122, %cst_45 [1] : vector<32x32xf32> to vector<32xf32>
    %124 = vector.shape_cast %123 : vector<32xf32> to vector<32x1xf32>
    %125 = tpu.reciprocal %124 {approx = true} : vector<32x1xf32> -> vector<32x1xf32>
    %126 = vector.broadcast %125 : vector<32x1xf32> to vector<32x32xf32>
    %127 = arith.mulf %122, %126 : vector<32x32xf32>
    %128 = arith.truncf %127 : vector<32x32xf32> to vector<32x32xbf16>
    %129 = vector.extract_strided_slice %112 {offsets = [0, 0], sizes = [32, 16], strides = [1, 1]} : vector<32x64xbf16> to vector<32x16xbf16>
    %cst_46 = arith.constant dense<0.000000e+00> : vector<32x16xf32>
    %130 = tpu.matmul %128, %129, %cst_46 {dimension_numbers = #tpu.dot_dimension_numbers<[1], [0], [0], [1], [0, 0, 1, 1], [], []>} : vector<32x32xbf16>, vector<32x16xbf16>, vector<32x16xf32> -> vector<32x16xf32>
    %131 = arith.truncf %130 : vector<32x16xf32> to vector<32x16xbf16>
    %c0_47 = arith.constant 0 : index
    %c0_48 = arith.constant 0 : index
    %132 = vector.load %arg6[%c0_47, %c0_48] : memref<64x64xbf16, #tpu.memory_space<vmem>>, vector<16x64xbf16>
    %cst_49 = arith.constant dense<0.000000e+00> : vector<32x64xf32>
    %133 = tpu.matmul %131, %132, %cst_49 {dimension_numbers = #tpu.dot_dimension_numbers<[1], [0], [0], [1], [0, 0, 1, 1], [], []>} : vector<32x16xbf16>, vector<16x64xbf16>, vector<32x64xf32> -> vector<32x64xf32>
    %134 = arith.addf %113, %133 : vector<32x64xf32>
    %135 = vector.extract_strided_slice %106 {offsets = [0, 16], sizes = [32, 16], strides = [1, 1]} : vector<32x64xbf16> to vector<32x16xbf16>
    %136 = vector.extract_strided_slice %110 {offsets = [16, 0], sizes = [16, 32], strides = [1, 1]} : vector<64x32xbf16> to vector<16x32xbf16>
    %cst_50 = arith.constant dense<0.000000e+00> : vector<32x32xf32>
    %137 = tpu.matmul %135, %136, %cst_50 {dimension_numbers = #tpu.dot_dimension_numbers<[1], [0], [0], [1], [0, 0, 1, 1], [], []>} : vector<32x16xbf16>, vector<16x32xbf16>, vector<32x32xf32> -> vector<32x32xf32>
    %138 = arith.addf %137, %104 : vector<32x32xf32>
    %cst_51 = arith.constant dense<0xFF800000> : vector<32xf32>
    %139 = vector.multi_reduction <maximumf>, %138, %cst_51 [1] : vector<32x32xf32> to vector<32xf32>
    %140 = vector.shape_cast %139 : vector<32xf32> to vector<32x1xf32>
    %141 = vector.broadcast %140 : vector<32x1xf32> to vector<32x32xf32>
    %142 = arith.subf %138, %141 : vector<32x32xf32>
    %143 = math.exp %142 : vector<32x32xf32>
    %cst_52 = arith.constant dense<0.000000e+00> : vector<32xf32>
    %144 = vector.multi_reduction <add>, %143, %cst_52 [1] : vector<32x32xf32> to vector<32xf32>
    %145 = vector.shape_cast %144 : vector<32xf32> to vector<32x1xf32>
    %146 = tpu.reciprocal %145 {approx = true} : vector<32x1xf32> -> vector<32x1xf32>
    %147 = vector.broadcast %146 : vector<32x1xf32> to vector<32x32xf32>
    %148 = arith.mulf %143, %147 : vector<32x32xf32>
    %149 = arith.truncf %148 : vector<32x32xf32> to vector<32x32xbf16>
    %150 = vector.extract_strided_slice %112 {offsets = [0, 16], sizes = [32, 16], strides = [1, 1]} : vector<32x64xbf16> to vector<32x16xbf16>
    %cst_53 = arith.constant dense<0.000000e+00> : vector<32x16xf32>
    %151 = tpu.matmul %149, %150, %cst_53 {dimension_numbers = #tpu.dot_dimension_numbers<[1], [0], [0], [1], [0, 0, 1, 1], [], []>} : vector<32x32xbf16>, vector<32x16xbf16>, vector<32x16xf32> -> vector<32x16xf32>
    %152 = arith.truncf %151 : vector<32x16xf32> to vector<32x16xbf16>
    %c16 = arith.constant 16 : index
    %c0_54 = arith.constant 0 : index
    %153 = vector.load %arg6[%c16, %c0_54] : memref<64x64xbf16, #tpu.memory_space<vmem>>, vector<16x64xbf16>
    %cst_55 = arith.constant dense<0.000000e+00> : vector<32x64xf32>
    %154 = tpu.matmul %152, %153, %cst_55 {dimension_numbers = #tpu.dot_dimension_numbers<[1], [0], [0], [1], [0, 0, 1, 1], [], []>} : vector<32x16xbf16>, vector<16x64xbf16>, vector<32x64xf32> -> vector<32x64xf32>
    %155 = arith.addf %134, %154 : vector<32x64xf32>
    %156 = vector.extract_strided_slice %106 {offsets = [0, 32], sizes = [32, 16], strides = [1, 1]} : vector<32x64xbf16> to vector<32x16xbf16>
    %157 = vector.extract_strided_slice %110 {offsets = [32, 0], sizes = [16, 32], strides = [1, 1]} : vector<64x32xbf16> to vector<16x32xbf16>
    %cst_56 = arith.constant dense<0.000000e+00> : vector<32x32xf32>
    %158 = tpu.matmul %156, %157, %cst_56 {dimension_numbers = #tpu.dot_dimension_numbers<[1], [0], [0], [1], [0, 0, 1, 1], [], []>} : vector<32x16xbf16>, vector<16x32xbf16>, vector<32x32xf32> -> vector<32x32xf32>
    %159 = arith.addf %158, %104 : vector<32x32xf32>
    %cst_57 = arith.constant dense<0xFF800000> : vector<32xf32>
    %160 = vector.multi_reduction <maximumf>, %159, %cst_57 [1] : vector<32x32xf32> to vector<32xf32>
    %161 = vector.shape_cast %160 : vector<32xf32> to vector<32x1xf32>
    %162 = vector.broadcast %161 : vector<32x1xf32> to vector<32x32xf32>
    %163 = arith.subf %159, %162 : vector<32x32xf32>
    %164 = math.exp %163 : vector<32x32xf32>
    %cst_58 = arith.constant dense<0.000000e+00> : vector<32xf32>
    %165 = vector.multi_reduction <add>, %164, %cst_58 [1] : vector<32x32xf32> to vector<32xf32>
    %166 = vector.shape_cast %165 : vector<32xf32> to vector<32x1xf32>
    %167 = tpu.reciprocal %166 {approx = true} : vector<32x1xf32> -> vector<32x1xf32>
    %168 = vector.broadcast %167 : vector<32x1xf32> to vector<32x32xf32>
    %169 = arith.mulf %164, %168 : vector<32x32xf32>
    %170 = arith.truncf %169 : vector<32x32xf32> to vector<32x32xbf16>
    %171 = vector.extract_strided_slice %112 {offsets = [0, 32], sizes = [32, 16], strides = [1, 1]} : vector<32x64xbf16> to vector<32x16xbf16>
    %cst_59 = arith.constant dense<0.000000e+00> : vector<32x16xf32>
    %172 = tpu.matmul %170, %171, %cst_59 {dimension_numbers = #tpu.dot_dimension_numbers<[1], [0], [0], [1], [0, 0, 1, 1], [], []>} : vector<32x32xbf16>, vector<32x16xbf16>, vector<32x16xf32> -> vector<32x16xf32>
    %173 = arith.truncf %172 : vector<32x16xf32> to vector<32x16xbf16>
    %c32 = arith.constant 32 : index
    %c0_60 = arith.constant 0 : index
    %174 = vector.load %arg6[%c32, %c0_60] : memref<64x64xbf16, #tpu.memory_space<vmem>>, vector<16x64xbf16>
    %cst_61 = arith.constant dense<0.000000e+00> : vector<32x64xf32>
    %175 = tpu.matmul %173, %174, %cst_61 {dimension_numbers = #tpu.dot_dimension_numbers<[1], [0], [0], [1], [0, 0, 1, 1], [], []>} : vector<32x16xbf16>, vector<16x64xbf16>, vector<32x64xf32> -> vector<32x64xf32>
    %176 = arith.addf %155, %175 : vector<32x64xf32>
    %177 = vector.extract_strided_slice %106 {offsets = [0, 48], sizes = [32, 16], strides = [1, 1]} : vector<32x64xbf16> to vector<32x16xbf16>
    %178 = vector.extract_strided_slice %110 {offsets = [48, 0], sizes = [16, 32], strides = [1, 1]} : vector<64x32xbf16> to vector<16x32xbf16>
    %cst_62 = arith.constant dense<0.000000e+00> : vector<32x32xf32>
    %179 = tpu.matmul %177, %178, %cst_62 {dimension_numbers = #tpu.dot_dimension_numbers<[1], [0], [0], [1], [0, 0, 1, 1], [], []>} : vector<32x16xbf16>, vector<16x32xbf16>, vector<32x32xf32> -> vector<32x32xf32>
    %180 = arith.addf %179, %104 : vector<32x32xf32>
    %cst_63 = arith.constant dense<0xFF800000> : vector<32xf32>
    %181 = vector.multi_reduction <maximumf>, %180, %cst_63 [1] : vector<32x32xf32> to vector<32xf32>
    %182 = vector.shape_cast %181 : vector<32xf32> to vector<32x1xf32>
    %183 = vector.broadcast %182 : vector<32x1xf32> to vector<32x32xf32>
    %184 = arith.subf %180, %183 : vector<32x32xf32>
    %185 = math.exp %184 : vector<32x32xf32>
    %cst_64 = arith.constant dense<0.000000e+00> : vector<32xf32>
    %186 = vector.multi_reduction <add>, %185, %cst_64 [1] : vector<32x32xf32> to vector<32xf32>
    %187 = vector.shape_cast %186 : vector<32xf32> to vector<32x1xf32>
    %188 = tpu.reciprocal %187 {approx = true} : vector<32x1xf32> -> vector<32x1xf32>
    %189 = vector.broadcast %188 : vector<32x1xf32> to vector<32x32xf32>
    %190 = arith.mulf %185, %189 : vector<32x32xf32>
    %191 = arith.truncf %190 : vector<32x32xf32> to vector<32x32xbf16>
    %192 = vector.extract_strided_slice %112 {offsets = [0, 48], sizes = [32, 16], strides = [1, 1]} : vector<32x64xbf16> to vector<32x16xbf16>
    %cst_65 = arith.constant dense<0.000000e+00> : vector<32x16xf32>
    %193 = tpu.matmul %191, %192, %cst_65 {dimension_numbers = #tpu.dot_dimension_numbers<[1], [0], [0], [1], [0, 0, 1, 1], [], []>} : vector<32x32xbf16>, vector<32x16xbf16>, vector<32x16xf32> -> vector<32x16xf32>
    %194 = arith.truncf %193 : vector<32x16xf32> to vector<32x16xbf16>
    %c48 = arith.constant 48 : index
    %c0_66 = arith.constant 0 : index
    %195 = vector.load %arg6[%c48, %c0_66] : memref<64x64xbf16, #tpu.memory_space<vmem>>, vector<16x64xbf16>
    %cst_67 = arith.constant dense<0.000000e+00> : vector<32x64xf32>
    %196 = tpu.matmul %194, %195, %cst_67 {dimension_numbers = #tpu.dot_dimension_numbers<[1], [0], [0], [1], [0, 0, 1, 1], [], []>} : vector<32x16xbf16>, vector<16x64xbf16>, vector<32x64xf32> -> vector<32x64xf32>
    %197 = arith.addf %176, %196 : vector<32x64xf32>
    %198 = vector.extract_strided_slice %5 {offsets = [0, 0, 0], sizes = [1, 32, 1], strides = [1, 1, 1]} : vector<2x32x1xf32> to vector<1x32x1xf32>
    %199 = vector.shape_cast %198 : vector<1x32x1xf32> to vector<32x1xf32>
    %200 = vector.broadcast %199 : vector<32x1xf32> to vector<32x64xf32>
    %201 = arith.mulf %197, %200 : vector<32x64xf32>
    %c0_68 = arith.constant 0 : index
    %c0_69 = arith.constant 0 : index
    %c0_70 = arith.constant 0 : index
    %202 = vector.load %arg12[%c0_68, %c0_69, %c0_70] : memref<2x32x64xf32, #tpu.memory_space<vmem>>, vector<1x32x64xf32>
    %203 = vector.shape_cast %202 : vector<1x32x64xf32> to vector<32x64xf32>
    %204 = vector.shape_cast %201 : vector<32x64xf32> to vector<1x32x64xf32>
    tpu.vector_store %arg12[%c0_68, %c0_69, %c0_70], %204 {strides = array<i32>} : memref<2x32x64xf32, #tpu.memory_space<vmem>>, vector<1x32x64xf32>,
    %c1_71 = arith.constant 1 : index
    %c0_72 = arith.constant 0 : index
    %c0_73 = arith.constant 0 : index
    %205 = vector.load %arg4[%c1_71, %c0_72, %c0_73] : memref<2x1x32xf32, #tpu.memory_space<vmem>>, vector<1x1x32xf32>
    %206 = vector.shape_cast %205 : vector<1x1x32xf32> to vector<1x32xf32>
    %cst_74 = arith.constant 0.000000e+00 : f32
    %207 = vector.broadcast %cst_74 : f32 to vector<1x32xf32>
    %208 = arith.cmpf ogt, %206, %207 : vector<1x32xf32>
    %209 = vector.broadcast %208 : vector<1x32xi1> to vector<32x32xi1>
    %210 = arith.andi %95, %209 : vector<32x32xi1>
    %cst_75 = arith.constant 0.000000e+00 : f32
    %cst_76 = arith.constant -1.000000e+30 : f32
    %211 = vector.broadcast %cst_75 : f32 to vector<32x32xf32>
    %212 = vector.broadcast %cst_76 : f32 to vector<32x32xf32>
    %213 = arith.select %210, %211, %212 : vector<32x32xi1>, vector<32x32xf32>
    %214 = vector.extract_strided_slice %65 {offsets = [1, 0, 0], sizes = [1, 32, 64], strides = [1, 1, 1]} : vector<2x32x64xbf16> to vector<1x32x64xbf16>
    %215 = vector.shape_cast %214 : vector<1x32x64xbf16> to vector<32x64xbf16>
    %216 = vector.extract_strided_slice %83 {offsets = [1, 0, 0], sizes = [1, 32, 64], strides = [1, 1, 1]} : vector<2x32x64xf32> to vector<1x32x64xf32>
    %217 = vector.shape_cast %216 : vector<1x32x64xf32> to vector<32x64xf32>
    %218 = tpu.transpose %217, [1, 0] : vector<32x64xf32> -> vector<64x32xf32>
    %219 = arith.truncf %218 : vector<64x32xf32> to vector<64x32xbf16>
    %220 = vector.extract_strided_slice %92 {offsets = [1, 0, 0], sizes = [1, 32, 64], strides = [1, 1, 1]} : vector<2x32x64xbf16> to vector<1x32x64xbf16>
    %221 = vector.shape_cast %220 : vector<1x32x64xbf16> to vector<32x64xbf16>
    %cst_77 = arith.constant 0.000000e+00 : f32
    %222 = vector.broadcast %cst_77 : f32 to vector<32x64xf32>
    %223 = vector.extract_strided_slice %215 {offsets = [0, 0], sizes = [32, 16], strides = [1, 1]} : vector<32x64xbf16> to vector<32x16xbf16>
    %224 = vector.extract_strided_slice %219 {offsets = [0, 0], sizes = [16, 32], strides = [1, 1]} : vector<64x32xbf16> to vector<16x32xbf16>
    %cst_78 = arith.constant dense<0.000000e+00> : vector<32x32xf32>
    %225 = tpu.matmul %223, %224, %cst_78 {dimension_numbers = #tpu.dot_dimension_numbers<[1], [0], [0], [1], [0, 0, 1, 1], [], []>} : vector<32x16xbf16>, vector<16x32xbf16>, vector<32x32xf32> -> vector<32x32xf32>
    %226 = arith.addf %225, %213 : vector<32x32xf32>
    %cst_79 = arith.constant dense<0xFF800000> : vector<32xf32>
    %227 = vector.multi_reduction <maximumf>, %226, %cst_79 [1] : vector<32x32xf32> to vector<32xf32>
    %228 = vector.shape_cast %227 : vector<32xf32> to vector<32x1xf32>
    %229 = vector.broadcast %228 : vector<32x1xf32> to vector<32x32xf32>
    %230 = arith.subf %226, %229 : vector<32x32xf32>
    %231 = math.exp %230 : vector<32x32xf32>
    %cst_80 = arith.constant dense<0.000000e+00> : vector<32xf32>
    %232 = vector.multi_reduction <add>, %231, %cst_80 [1] : vector<32x32xf32> to vector<32xf32>
    %233 = vector.shape_cast %232 : vector<32xf32> to vector<32x1xf32>
    %234 = tpu.reciprocal %233 {approx = true} : vector<32x1xf32> -> vector<32x1xf32>
    %235 = vector.broadcast %234 : vector<32x1xf32> to vector<32x32xf32>
    %236 = arith.mulf %231, %235 : vector<32x32xf32>
    %237 = arith.truncf %236 : vector<32x32xf32> to vector<32x32xbf16>
    %238 = vector.extract_strided_slice %221 {offsets = [0, 0], sizes = [32, 16], strides = [1, 1]} : vector<32x64xbf16> to vector<32x16xbf16>
    %cst_81 = arith.constant dense<0.000000e+00> : vector<32x16xf32>
    %239 = tpu.matmul %237, %238, %cst_81 {dimension_numbers = #tpu.dot_dimension_numbers<[1], [0], [0], [1], [0, 0, 1, 1], [], []>} : vector<32x32xbf16>, vector<32x16xbf16>, vector<32x16xf32> -> vector<32x16xf32>
    %240 = arith.truncf %239 : vector<32x16xf32> to vector<32x16xbf16>
    %c0_82 = arith.constant 0 : index
    %c0_83 = arith.constant 0 : index
    %241 = vector.load %arg6[%c0_82, %c0_83] : memref<64x64xbf16, #tpu.memory_space<vmem>>, vector<16x64xbf16>
    %cst_84 = arith.constant dense<0.000000e+00> : vector<32x64xf32>
    %242 = tpu.matmul %240, %241, %cst_84 {dimension_numbers = #tpu.dot_dimension_numbers<[1], [0], [0], [1], [0, 0, 1, 1], [], []>} : vector<32x16xbf16>, vector<16x64xbf16>, vector<32x64xf32> -> vector<32x64xf32>
    %243 = arith.addf %222, %242 : vector<32x64xf32>
    %244 = vector.extract_strided_slice %215 {offsets = [0, 16], sizes = [32, 16], strides = [1, 1]} : vector<32x64xbf16> to vector<32x16xbf16>
    %245 = vector.extract_strided_slice %219 {offsets = [16, 0], sizes = [16, 32], strides = [1, 1]} : vector<64x32xbf16> to vector<16x32xbf16>
    %cst_85 = arith.constant dense<0.000000e+00> : vector<32x32xf32>
    %246 = tpu.matmul %244, %245, %cst_85 {dimension_numbers = #tpu.dot_dimension_numbers<[1], [0], [0], [1], [0, 0, 1, 1], [], []>} : vector<32x16xbf16>, vector<16x32xbf16>, vector<32x32xf32> -> vector<32x32xf32>
    %247 = arith.addf %246, %213 : vector<32x32xf32>
    %cst_86 = arith.constant dense<0xFF800000> : vector<32xf32>
    %248 = vector.multi_reduction <maximumf>, %247, %cst_86 [1] : vector<32x32xf32> to vector<32xf32>
    %249 = vector.shape_cast %248 : vector<32xf32> to vector<32x1xf32>
    %250 = vector.broadcast %249 : vector<32x1xf32> to vector<32x32xf32>
    %251 = arith.subf %247, %250 : vector<32x32xf32>
    %252 = math.exp %251 : vector<32x32xf32>
    %cst_87 = arith.constant dense<0.000000e+00> : vector<32xf32>
    %253 = vector.multi_reduction <add>, %252, %cst_87 [1] : vector<32x32xf32> to vector<32xf32>
    %254 = vector.shape_cast %253 : vector<32xf32> to vector<32x1xf32>
    %255 = tpu.reciprocal %254 {approx = true} : vector<32x1xf32> -> vector<32x1xf32>
    %256 = vector.broadcast %255 : vector<32x1xf32> to vector<32x32xf32>
    %257 = arith.mulf %252, %256 : vector<32x32xf32>
    %258 = arith.truncf %257 : vector<32x32xf32> to vector<32x32xbf16>
    %259 = vector.extract_strided_slice %221 {offsets = [0, 16], sizes = [32, 16], strides = [1, 1]} : vector<32x64xbf16> to vector<32x16xbf16>
    %cst_88 = arith.constant dense<0.000000e+00> : vector<32x16xf32>
    %260 = tpu.matmul %258, %259, %cst_88 {dimension_numbers = #tpu.dot_dimension_numbers<[1], [0], [0], [1], [0, 0, 1, 1], [], []>} : vector<32x32xbf16>, vector<32x16xbf16>, vector<32x16xf32> -> vector<32x16xf32>
    %261 = arith.truncf %260 : vector<32x16xf32> to vector<32x16xbf16>
    %c16_89 = arith.constant 16 : index
    %c0_90 = arith.constant 0 : index
    %262 = vector.load %arg6[%c16_89, %c0_90] : memref<64x64xbf16, #tpu.memory_space<vmem>>, vector<16x64xbf16>
    %cst_91 = arith.constant dense<0.000000e+00> : vector<32x64xf32>
    %263 = tpu.matmul %261, %262, %cst_91 {dimension_numbers = #tpu.dot_dimension_numbers<[1], [0], [0], [1], [0, 0, 1, 1], [], []>} : vector<32x16xbf16>, vector<16x64xbf16>, vector<32x64xf32> -> vector<32x64xf32>
    %264 = arith.addf %243, %263 : vector<32x64xf32>
    %265 = vector.extract_strided_slice %215 {offsets = [0, 32], sizes = [32, 16], strides = [1, 1]} : vector<32x64xbf16> to vector<32x16xbf16>
    %266 = vector.extract_strided_slice %219 {offsets = [32, 0], sizes = [16, 32], strides = [1, 1]} : vector<64x32xbf16> to vector<16x32xbf16>
    %cst_92 = arith.constant dense<0.000000e+00> : vector<32x32xf32>
    %267 = tpu.matmul %265, %266, %cst_92 {dimension_numbers = #tpu.dot_dimension_numbers<[1], [0], [0], [1], [0, 0, 1, 1], [], []>} : vector<32x16xbf16>, vector<16x32xbf16>, vector<32x32xf32> -> vector<32x32xf32>
    %268 = arith.addf %267, %213 : vector<32x32xf32>
    %cst_93 = arith.constant dense<0xFF800000> : vector<32xf32>
    %269 = vector.multi_reduction <maximumf>, %268, %cst_93 [1] : vector<32x32xf32> to vector<32xf32>
    %270 = vector.shape_cast %269 : vector<32xf32> to vector<32x1xf32>
    %271 = vector.broadcast %270 : vector<32x1xf32> to vector<32x32xf32>
    %272 = arith.subf %268, %271 : vector<32x32xf32>
    %273 = math.exp %272 : vector<32x32xf32>
    %cst_94 = arith.constant dense<0.000000e+00> : vector<32xf32>
    %274 = vector.multi_reduction <add>, %273, %cst_94 [1] : vector<32x32xf32> to vector<32xf32>
    %275 = vector.shape_cast %274 : vector<32xf32> to vector<32x1xf32>
    %276 = tpu.reciprocal %275 {approx = true} : vector<32x1xf32> -> vector<32x1xf32>
    %277 = vector.broadcast %276 : vector<32x1xf32> to vector<32x32xf32>
    %278 = arith.mulf %273, %277 : vector<32x32xf32>
    %279 = arith.truncf %278 : vector<32x32xf32> to vector<32x32xbf16>
    %280 = vector.extract_strided_slice %221 {offsets = [0, 32], sizes = [32, 16], strides = [1, 1]} : vector<32x64xbf16> to vector<32x16xbf16>
    %cst_95 = arith.constant dense<0.000000e+00> : vector<32x16xf32>
    %281 = tpu.matmul %279, %280, %cst_95 {dimension_numbers = #tpu.dot_dimension_numbers<[1], [0], [0], [1], [0, 0, 1, 1], [], []>} : vector<32x32xbf16>, vector<32x16xbf16>, vector<32x16xf32> -> vector<32x16xf32>
    %282 = arith.truncf %281 : vector<32x16xf32> to vector<32x16xbf16>
    %c32_96 = arith.constant 32 : index
    %c0_97 = arith.constant 0 : index
    %283 = vector.load %arg6[%c32_96, %c0_97] : memref<64x64xbf16, #tpu.memory_space<vmem>>, vector<16x64xbf16>
    %cst_98 = arith.constant dense<0.000000e+00> : vector<32x64xf32>
    %284 = tpu.matmul %282, %283, %cst_98 {dimension_numbers = #tpu.dot_dimension_numbers<[1], [0], [0], [1], [0, 0, 1, 1], [], []>} : vector<32x16xbf16>, vector<16x64xbf16>, vector<32x64xf32> -> vector<32x64xf32>
    %285 = arith.addf %264, %284 : vector<32x64xf32>
    %286 = vector.extract_strided_slice %215 {offsets = [0, 48], sizes = [32, 16], strides = [1, 1]} : vector<32x64xbf16> to vector<32x16xbf16>
    %287 = vector.extract_strided_slice %219 {offsets = [48, 0], sizes = [16, 32], strides = [1, 1]} : vector<64x32xbf16> to vector<16x32xbf16>
    %cst_99 = arith.constant dense<0.000000e+00> : vector<32x32xf32>
    %288 = tpu.matmul %286, %287, %cst_99 {dimension_numbers = #tpu.dot_dimension_numbers<[1], [0], [0], [1], [0, 0, 1, 1], [], []>} : vector<32x16xbf16>, vector<16x32xbf16>, vector<32x32xf32> -> vector<32x32xf32>
    %289 = arith.addf %288, %213 : vector<32x32xf32>
    %cst_100 = arith.constant dense<0xFF800000> : vector<32xf32>
    %290 = vector.multi_reduction <maximumf>, %289, %cst_100 [1] : vector<32x32xf32> to vector<32xf32>
    %291 = vector.shape_cast %290 : vector<32xf32> to vector<32x1xf32>
    %292 = vector.broadcast %291 : vector<32x1xf32> to vector<32x32xf32>
    %293 = arith.subf %289, %292 : vector<32x32xf32>
    %294 = math.exp %293 : vector<32x32xf32>
    %cst_101 = arith.constant dense<0.000000e+00> : vector<32xf32>
    %295 = vector.multi_reduction <add>, %294, %cst_101 [1] : vector<32x32xf32> to vector<32xf32>
    %296 = vector.shape_cast %295 : vector<32xf32> to vector<32x1xf32>
    %297 = tpu.reciprocal %296 {approx = true} : vector<32x1xf32> -> vector<32x1xf32>
    %298 = vector.broadcast %297 : vector<32x1xf32> to vector<32x32xf32>
    %299 = arith.mulf %294, %298 : vector<32x32xf32>
    %300 = arith.truncf %299 : vector<32x32xf32> to vector<32x32xbf16>
    %301 = vector.extract_strided_slice %221 {offsets = [0, 48], sizes = [32, 16], strides = [1, 1]} : vector<32x64xbf16> to vector<32x16xbf16>
    %cst_102 = arith.constant dense<0.000000e+00> : vector<32x16xf32>
    %302 = tpu.matmul %300, %301, %cst_102 {dimension_numbers = #tpu.dot_dimension_numbers<[1], [0], [0], [1], [0, 0, 1, 1], [], []>} : vector<32x32xbf16>, vector<32x16xbf16>, vector<32x16xf32> -> vector<32x16xf32>
    %303 = arith.truncf %302 : vector<32x16xf32> to vector<32x16xbf16>
    %c48_103 = arith.constant 48 : index
    %c0_104 = arith.constant 0 : index
    %304 = vector.load %arg6[%c48_103, %c0_104] : memref<64x64xbf16, #tpu.memory_space<vmem>>, vector<16x64xbf16>
    %cst_105 = arith.constant dense<0.000000e+00> : vector<32x64xf32>
    %305 = tpu.matmul %303, %304, %cst_105 {dimension_numbers = #tpu.dot_dimension_numbers<[1], [0], [0], [1], [0, 0, 1, 1], [], []>} : vector<32x16xbf16>, vector<16x64xbf16>, vector<32x64xf32> -> vector<32x64xf32>
    %306 = arith.addf %285, %305 : vector<32x64xf32>
    %307 = vector.extract_strided_slice %5 {offsets = [1, 0, 0], sizes = [1, 32, 1], strides = [1, 1, 1]} : vector<2x32x1xf32> to vector<1x32x1xf32>
    %308 = vector.shape_cast %307 : vector<1x32x1xf32> to vector<32x1xf32>
    %309 = vector.broadcast %308 : vector<32x1xf32> to vector<32x64xf32>
    %310 = arith.mulf %306, %309 : vector<32x64xf32>
    %c1_106 = arith.constant 1 : index
    %c0_107 = arith.constant 0 : index
    %c0_108 = arith.constant 0 : index
    %311 = vector.load %arg12[%c1_106, %c0_107, %c0_108] : memref<2x32x64xf32, #tpu.memory_space<vmem>>, vector<1x32x64xf32>
    %312 = vector.shape_cast %311 : vector<1x32x64xf32> to vector<32x64xf32>
    %313 = vector.shape_cast %310 : vector<32x64xf32> to vector<1x32x64xf32>
    tpu.vector_store %arg12[%c1_106, %c0_107, %c0_108], %313 {strides = array<i32>} : memref<2x32x64xf32, #tpu.memory_space<vmem>>, vector<1x32x64xf32>,
    return
  }
  func.func @transform_0(%arg0: i32) -> (i32, i32, i32) {
    %c0_i32 = arith.constant 0 : i32
    %c0_i32_0 = arith.constant 0 : i32
    %c0_i32_1 = arith.constant 0 : i32
    return %arg0, %c0_i32, %c0_i32_0 : i32, i32, i32
  }
  func.func @transform_1(%arg0: i32) -> (i32, i32, i32) {
    %c0_i32 = arith.constant 0 : i32
    %c0_i32_0 = arith.constant 0 : i32
    %c0_i32_1 = arith.constant 0 : i32
    return %arg0, %c0_i32, %c0_i32_0 : i32, i32, i32
  }
  func.func @transform_2(%arg0: i32) -> (i32, i32, i32) {
    %c0_i32 = arith.constant 0 : i32
    %c0_i32_0 = arith.constant 0 : i32
    %c0_i32_1 = arith.constant 0 : i32
    return %arg0, %c0_i32, %c0_i32_0 : i32, i32, i32
  }
  func.func @transform_3(%arg0: i32) -> (i32, i32, i32) {
    %c0_i32 = arith.constant 0 : i32
    %c0_i32_0 = arith.constant 0 : i32
    %c0_i32_1 = arith.constant 0 : i32
    return %arg0, %c0_i32, %c0_i32_0 : i32, i32, i32
  }
  func.func @transform_4(%arg0: i32) -> (i32, i32, i32) {
    %c0_i32 = arith.constant 0 : i32
    %c0_i32_0 = arith.constant 0 : i32
    %c0_i32_1 = arith.constant 0 : i32
    %c0_i32_2 = arith.constant 0 : i32
    return %c0_i32, %c0_i32_0, %c0_i32_1 : i32, i32, i32
  }
  func.func @transform_5(%arg0: i32) -> (i32, i32) {
    %c0_i32 = arith.constant 0 : i32
    %c0_i32_0 = arith.constant 0 : i32
    %c0_i32_1 = arith.constant 0 : i32
    return %c0_i32, %c0_i32_0 : i32, i32
  }
  func.func @transform_6(%arg0: i32) -> (i32, i32) {
    %c0_i32 = arith.constant 0 : i32
    %c0_i32_0 = arith.constant 0 : i32
    %c0_i32_1 = arith.constant 0 : i32
    return %c0_i32, %c0_i32_0 : i32, i32
  }
  func.func @transform_7(%arg0: i32) -> (i32, i32) {
    %c0_i32 = arith.constant 0 : i32
    %c0_i32_0 = arith.constant 0 : i32
    %c0_i32_1 = arith.constant 0 : i32
    return %c0_i32, %c0_i32_0 : i32, i32
  }
  func.func @transform_8(%arg0: i32) -> (i32, i32) {
    %c0_i32 = arith.constant 0 : i32
    %c0_i32_0 = arith.constant 0 : i32
    %c0_i32_1 = arith.constant 0 : i32
    return %c0_i32, %c0_i32_0 : i32, i32
  }
  func.func @transform_9(%arg0: i32) -> (i32, i32) {
    %c0_i32 = arith.constant 0 : i32
    %c0_i32_0 = arith.constant 0 : i32
    %c0_i32_1 = arith.constant 0 : i32
    return %c0_i32, %c0_i32_0 : i32, i32
  }
  func.func @transform_10(%arg0: i32) -> i32 {
    %c0_i32 = arith.constant 0 : i32
    %c0_i32_0 = arith.constant 0 : i32
    return %c0_i32 : i32
  }
  func.func @transform_11(%arg0: i32) -> (i32, i32, i32) {
    %c0_i32 = arith.constant 0 : i32
    %c0_i32_0 = arith.constant 0 : i32
    %c0_i32_1 = arith.constant 0 : i32
    return %arg0, %c0_i32, %c0_i32_0 : i32, i32, i32
  }
}

</mosaic_0001>

<llo_original>
// kernel: tpu_custom_call.1
$region0: #{tpu_custom_call.1}
  #allocation0 [shape = 'u32[]', space=smem, size = 0x4, offset = 0x4, fixed_abs, tag = 'smem constant byte address 0x4 - core index']
  #allocation1 [shape = 'u32[144,128]{1,0:T(1,128)}', space=vmem, size = 0x12000, scoped, tag = 'internal scratch']
  %s0 = inlined_call_operand.vmem [shape: bf16[4,32,64], index: 0, kind: input, shape index: {}]
  %s1 = inlined_call_operand.hbm [shape: bf16[4,32,64], index: 1, kind: input, shape index: {}]
  %s2 = inlined_call_operand.vmem [shape: f32[4,32,1], index: 2, kind: input, shape index: {}]
  %s3 = inlined_call_operand.hbm [shape: f32[4,1,32], index: 3, kind: input, shape index: {}]
  %s4 = inlined_call_operand.vmem [shape: bf16[3,64,64], index: 4, kind: input, shape index: {}]
  %s5 = inlined_call_operand.hbm [shape: bf16[64,64], index: 5, kind: input, shape index: {}]
  %s6 = inlined_call_operand.hbm [shape: f32[32,64], index: 6, kind: input, shape index: {}]
  %s7 = inlined_call_operand.vmem [shape: f32[32,64], index: 7, kind: input, shape index: {}]
  %s8 = inlined_call_operand.vmem [shape: bf16[64,4], index: 8, kind: input, shape index: {}]
  %s9 = inlined_call_operand.vmem [shape: bf16[4,64], index: 9, kind: input, shape index: {}]
  %s10 = inlined_call_operand.vmem [shape: f32[2], index: 10, kind: input, shape index: {}]
  %s11 = inlined_call_operand.hbm [shape: f32[4,32,64], index: 11, kind: output, shape index: {}]
  %s12 = sld [smem:[#allocation0]]
  $region97: #{tpu_custom_call.1} parent=0
    _
  %s14 = ssub.s32 1, %s12
  %s15 = scalar_select 0, %s14, %s12
  $region1: #{tpu_custom_call.1} parent=0
    #allocation2 [shape = 'u8[32768]{0}', space=vmem, size = 0x8000, scoped, tag = 'input window, operand 1']
    #allocation3 [shape = 's32[2]{0}', space=sflag, size = 0x8, scoped, tag = 'scoped memory for tpu_custom_call.1']
    #allocation4 [shape = 's32[2]{0}', space=sflag, size = 0x8, scoped, tag = 'scoped memory for tpu_custom_call.1']
    #allocation5 [shape = 's32[2]{0}', space=sflag, size = 0x8, scoped, tag = 'scoped memory for tpu_custom_call.1']
    #allocation6 [shape = 'u8[2048]{0}', space=vmem, size = 0x800, scoped, tag = 'input window, operand 3']
    #allocation7 [shape = 's32[2]{0}', space=sflag, size = 0x8, scoped, tag = 'scoped memory for tpu_custom_call.1']
    #allocation8 [shape = 'u8[16384]{0}', space=vmem, size = 0x4000, scoped, tag = 'input window, operand 5, single buffered']
    #allocation9 [shape = 'u8[16384]{0}', space=vmem, size = 0x4000, scoped, tag = 'input window, operand 6, single buffered']
    #allocation10 [shape = 's32[1]{0}', space=sflag, size = 0x4, scoped, tag = 'scoped memory for tpu_custom_call.1']
    #allocation11 [shape = 'u8[512]{0}', space=smem, size = 0x200, scoped, tag = 'input window, operand 10, single buffered']
    #allocation12 [shape = 'u8[65536]{0}', space=vmem, size = 0x10000, scoped, tag = 'output window, operand 0']
    %16 = vsyncpa [#allocation3], 0
    %s17 = scalar_lea.sflag [#allocation3], 1
    %18 = vsyncpa %s17, 0
    %19 = vsyncpa [#allocation7], 0
    %s20 = scalar_lea.sflag [#allocation7], 1
    %21 = vsyncpa %s20, 0
    %22 = vsyncpa [#allocation10], 0
    %23 = vsyncpa [#allocation5], 0
    %24 = vsyncpa [#allocation4], 0
    %s25 = scalar_lea.sflag [#allocation4], 1
    %26 = vsyncpa %s25, 0
    loop: start=0, step=1, limit=4
    $region2: #{tpu_custom_call.1} parent=1 // loop_pre_header
      _
    $region3: #{tpu_custom_call.1} parent=1 // loop_header
      %s28 = sphi 0, %s32
      %p29 = scmp.ge.s32.totalorder %s28, 4
      %s38 = sphi 0, %s40
      %s41 = sphi 0, %s38
      %s42 = sphi 0, %s41
      %s58 = sphi 0, %s42
      %s64 = sphi 0, %s66
      %s67 = sphi 0, %s64
      %s68 = sphi 0, %s67
      %s84 = sphi 0, %s68
      %s90 = sphi 0, %s92
      %s93 = sphi 0, %s90
      %s94 = sphi 0, %s93
      %s110 = sphi 0, %s94
      %s116 = sphi 0, %s118
      %s119 = sphi 0, %s116
      %s120 = sphi 0, %s119
      %s136 = sphi 0, %s120
      %s140 = sphi 0, %s140
      %s142 = sphi 0, %s140
      %s143 = sphi 0, %s142
      %s157 = sphi 0, %s143
      %s161 = sphi 0, %s161
      %s163 = sphi 0, %s161
      %s164 = sphi 0, %s163
      %s178 = sphi 0, %s164
      %s182 = sphi 0, %s182
      %s184 = sphi 0, %s182
      %s185 = sphi 0, %s184
      %s199 = sphi 0, %s185
      %s203 = sphi 0, %s203
      %s205 = sphi 0, %s203
      %s206 = sphi 0, %s205
      %s220 = sphi 0, %s206
      %s224 = sphi 0, %s224
      %s226 = sphi 0, %s224
      %s227 = sphi 0, %s226
      %s241 = sphi 0, %s227
      %s245 = sphi 0, %s245
      %s247 = sphi 0, %s245
      %s248 = sphi 0, %s247
      %s262 = sphi 0, %s248
      %s266 = sphi 0, %s266
      %s268 = sphi 0, %s266
      %s269 = sphi 0, %s268
      %s283 = sphi 0, %s269
      %s289 = sphi 0, %s291
      %s292 = sphi 0, %s289
      %s293 = sphi 0, %s292
      %s309 = sphi 0, %s293
    $region4: #{tpu_custom_call.1} parent=1 // loop_header_branch
      %31 = sbr.rel (%p29) target = $region8
    $region5: #{tpu_custom_call.1} parent=1 // loop_body
      %s33 = ssub.s32 %s28, 1
      %s34 = ssub.s32 %s28, 2
      %s35 = sadd.s32 %s28, 1
      %s36 = ssub.s32 %s28, %s35
      %p37 = scmp.eq.s32.totalorder %s36, 0
      %s39 = sadd.s32 %s38, 1
      %s40 = scalar_select %p37, %s38, %s39
      %p43 = pneg %p37
      %p44 = scmp.eq.s32.totalorder %s28, 1
      %p45 = por %p43, %p44
      %p46 = scmp.ne.s32.totalorder %s38, %s41
      %p47 = scmp.eq.s32.totalorder %s28, 0
      %p48 = por %p46, %p47
      %p49 = scmp.ne.s32.totalorder %s38, %s41
      %p50 = scmp.eq.s32.totalorder %s33, 1
      %p51 = por %p49, %p50
      %p52 = scmp.ne.s32.totalorder %s41, %s42
      %p53 = scmp.eq.s32.totalorder %s33, 0
      %p54 = por %p52, %p53
      %p55 = scmp.ne.s32.totalorder %s41, %s42
      %p56 = scmp.eq.s32.totalorder %s34, 1
      %p57 = por %p55, %p56
      %p59 = scmp.ne.s32.totalorder %s42, %s58
      %p60 = scmp.eq.s32.totalorder %s34, 0
      %p61 = por %p59, %p60
      %s62 = ssub.s32 %s28, %s35
      %p63 = scmp.eq.s32.totalorder %s62, 0
      %s65 = sadd.s32 %s64, 1
      %s66 = scalar_select %p63, %s64, %s65
      %p69 = pneg %p63
      %p70 = scmp.eq.s32.totalorder %s28, 1
      %p71 = por %p69, %p70
      %p72 = scmp.ne.s32.totalorder %s64, %s67
      %p73 = scmp.eq.s32.totalorder %s28, 0
      %p74 = por %p72, %p73
      %p75 = scmp.ne.s32.totalorder %s64, %s67
      %p76 = scmp.eq.s32.totalorder %s33, 1
      %p77 = por %p75, %p76
      %p78 = scmp.ne.s32.totalorder %s67, %s68
      %p79 = scmp.eq.s32.totalorder %s33, 0
      %p80 = por %p78, %p79
      %p81 = scmp.ne.s32.totalorder %s67, %s68
      %p82 = scmp.eq.s32.totalorder %s34, 1
      %p83 = por %p81, %p82
      %p85 = scmp.ne.s32.totalorder %s68, %s84
      %p86 = scmp.eq.s32.totalorder %s34, 0
      %p87 = por %p85, %p86
      %s88 = ssub.s32 %s28, %s35
      %p89 = scmp.eq.s32.totalorder %s88, 0
      %s91 = sadd.s32 %s90, 1
      %s92 = scalar_select %p89, %s90, %s91
      %p95 = pneg %p89
      %p96 = scmp.eq.s32.totalorder %s28, 1
      %p97 = por %p95, %p96
      %p98 = scmp.ne.s32.totalorder %s90, %s93
      %p99 = scmp.eq.s32.totalorder %s28, 0
      %p100 = por %p98, %p99
      %p101 = scmp.ne.s32.totalorder %s90, %s93
      %p102 = scmp.eq.s32.totalorder %s33, 1
      %p103 = por %p101, %p102
      %p104 = scmp.ne.s32.totalorder %s93, %s94
      %p105 = scmp.eq.s32.totalorder %s33, 0
      %p106 = por %p104, %p105
      %p107 = scmp.ne.s32.totalorder %s93, %s94
      %p108 = scmp.eq.s32.totalorder %s34, 1
      %p109 = por %p107, %p108
      %p111 = scmp.ne.s32.totalorder %s94, %s110
      %p112 = scmp.eq.s32.totalorder %s34, 0
      %p113 = por %p111, %p112
      %s114 = ssub.s32 %s28, %s35
      %p115 = scmp.eq.s32.totalorder %s114, 0
      %s117 = sadd.s32 %s116, 1
      %s118 = scalar_select %p115, %s116, %s117
      %p121 = pneg %p115
      %p122 = scmp.eq.s32.totalorder %s28, 1
      %p123 = por %p121, %p122
      %p124 = scmp.ne.s32.totalorder %s116, %s119
      %p125 = scmp.eq.s32.totalorder %s28, 0
      %p126 = por %p124, %p125
      %p127 = scmp.ne.s32.totalorder %s116, %s119
      %p128 = scmp.eq.s32.totalorder %s33, 1
      %p129 = por %p127, %p128
      %p130 = scmp.ne.s32.totalorder %s119, %s120
      %p131 = scmp.eq.s32.totalorder %s33, 0
      %p132 = por %p130, %p131
      %p133 = scmp.ne.s32.totalorder %s119, %s120
      %p134 = scmp.eq.s32.totalorder %s34, 1
      %p135 = por %p133, %p134
      %p137 = scmp.ne.s32.totalorder %s120, %s136
      %p138 = scmp.eq.s32.totalorder %s34, 0
      %p139 = por %p137, %p138
      %s141 = sadd.s32 %s140, 1
      %p144 = scmp.eq.s32.totalorder %s28, 1
      %p145 = scmp.ne.s32.totalorder %s140, %s142
      %p146 = scmp.eq.s32.totalorder %s28, 0
      %p147 = por %p145, %p146
      %p148 = scmp.ne.s32.totalorder %s140, %s142
      %p149 = scmp.eq.s32.totalorder %s33, 1
      %p150 = por %p148, %p149
      %p151 = scmp.ne.s32.totalorder %s142, %s143
      %p152 = scmp.eq.s32.totalorder %s33, 0
      %p153 = por %p151, %p152
      %p154 = scmp.ne.s32.totalorder %s142, %s143
      %p155 = scmp.eq.s32.totalorder %s34, 1
      %p156 = por %p154, %p155
      %p158 = scmp.ne.s32.totalorder %s143, %s157
      %p159 = scmp.eq.s32.totalorder %s34, 0
      %p160 = por %p158, %p159
      %s162 = sadd.s32 %s161, 1
      %p165 = scmp.eq.s32.totalorder %s28, 1
      %p166 = scmp.ne.s32.totalorder %s161, %s163
      %p167 = scmp.eq.s32.totalorder %s28, 0
      %p168 = por %p166, %p167
      %p169 = scmp.ne.s32.totalorder %s161, %s163
      %p170 = scmp.eq.s32.totalorder %s33, 1
      %p171 = por %p169, %p170
      %p172 = scmp.ne.s32.totalorder %s163, %s164
      %p173 = scmp.eq.s32.totalorder %s33, 0
      %p174 = por %p172, %p173
      %p175 = scmp.ne.s32.totalorder %s163, %s164
      %p176 = scmp.eq.s32.totalorder %s34, 1
      %p177 = por %p175, %p176
      %p179 = scmp.ne.s32.totalorder %s164, %s178
      %p180 = scmp.eq.s32.totalorder %s34, 0
      %p181 = por %p179, %p180
      %s183 = sadd.s32 %s182, 1
      %p186 = scmp.eq.s32.totalorder %s28, 1
      %p187 = scmp.ne.s32.totalorder %s182, %s184
      %p188 = scmp.eq.s32.totalorder %s28, 0
      %p189 = por %p187, %p188
      %p190 = scmp.ne.s32.totalorder %s182, %s184
      %p191 = scmp.eq.s32.totalorder %s33, 1
      %p192 = por %p190, %p191
      %p193 = scmp.ne.s32.totalorder %s184, %s185
      %p194 = scmp.eq.s32.totalorder %s33, 0
      %p195 = por %p193, %p194
      %p196 = scmp.ne.s32.totalorder %s184, %s185
      %p197 = scmp.eq.s32.totalorder %s34, 1
      %p198 = por %p196, %p197
      %p200 = scmp.ne.s32.totalorder %s185, %s199
      %p201 = scmp.eq.s32.totalorder %s34, 0
      %p202 = por %p200, %p201
      %s204 = sadd.s32 %s203, 1
      %p207 = scmp.eq.s32.totalorder %s28, 1
      %p208 = scmp.ne.s32.totalorder %s203, %s205
      %p209 = scmp.eq.s32.totalorder %s28, 0
      %p210 = por %p208, %p209
      %p211 = scmp.ne.s32.totalorder %s203, %s205
      %p212 = scmp.eq.s32.totalorder %s33, 1
      %p213 = por %p211, %p212
      %p214 = scmp.ne.s32.totalorder %s205, %s206
      %p215 = scmp.eq.s32.totalorder %s33, 0
      %p216 = por %p214, %p215
      %p217 = scmp.ne.s32.totalorder %s205, %s206
      %p218 = scmp.eq.s32.totalorder %s34, 1
      %p219 = por %p217, %p218
      %p221 = scmp.ne.s32.totalorder %s206, %s220
      %p222 = scmp.eq.s32.totalorder %s34, 0
      %p223 = por %p221, %p222
      %s225 = sadd.s32 %s224, 1
      %p228 = scmp.eq.s32.totalorder %s28, 1
      %p229 = scmp.ne.s32.totalorder %s224, %s226
      %p230 = scmp.eq.s32.totalorder %s28, 0
      %p231 = por %p229, %p230
      %p232 = scmp.ne.s32.totalorder %s224, %s226
      %p233 = scmp.eq.s32.totalorder %s33, 1
      %p234 = por %p232, %p233
      %p235 = scmp.ne.s32.totalorder %s226, %s227
      %p236 = scmp.eq.s32.totalorder %s33, 0
      %p237 = por %p235, %p236
      %p238 = scmp.ne.s32.totalorder %s226, %s227
      %p239 = scmp.eq.s32.totalorder %s34, 1
      %p240 = por %p238, %p239
      %p242 = scmp.ne.s32.totalorder %s227, %s241
      %p243 = scmp.eq.s32.totalorder %s34, 0
      %p244 = por %p242, %p243
      %s246 = sadd.s32 %s245, 1
      %p249 = scmp.eq.s32.totalorder %s28, 1
      %p250 = scmp.ne.s32.totalorder %s245, %s247
      %p251 = scmp.eq.s32.totalorder %s28, 0
      %p252 = por %p250, %p251
      %p253 = scmp.ne.s32.totalorder %s245, %s247
      %p254 = scmp.eq.s32.totalorder %s33, 1
      %p255 = por %p253, %p254
      %p256 = scmp.ne.s32.totalorder %s247, %s248
      %p257 = scmp.eq.s32.totalorder %s33, 0
      %p258 = por %p256, %p257
      %p259 = scmp.ne.s32.totalorder %s247, %s248
      %p260 = scmp.eq.s32.totalorder %s34, 1
      %p261 = por %p259, %p260
      %p263 = scmp.ne.s32.totalorder %s248, %s262
      %p264 = scmp.eq.s32.totalorder %s34, 0
      %p265 = por %p263, %p264
      %s267 = sadd.s32 %s266, 1
      %p270 = scmp.eq.s32.totalorder %s28, 1
      %p271 = scmp.ne.s32.totalorder %s266, %s268
      %p272 = scmp.eq.s32.totalorder %s28, 0
      %p273 = por %p271, %p272
      %p274 = scmp.ne.s32.totalorder %s266, %s268
      %p275 = scmp.eq.s32.totalorder %s33, 1
      %p276 = por %p274, %p275
      %p277 = scmp.ne.s32.totalorder %s268, %s269
      %p278 = scmp.eq.s32.totalorder %s33, 0
      %p279 = por %p277, %p278
      %p280 = scmp.ne.s32.totalorder %s268, %s269
      %p281 = scmp.eq.s32.totalorder %s34, 1
      %p282 = por %p280, %p281
      %p284 = scmp.ne.s32.totalorder %s269, %s283
      %p285 = scmp.eq.s32.totalorder %s34, 0
      %p286 = por %p284, %p285
      %s287 = ssub.s32 %s28, %s35
      %p288 = scmp.eq.s32.totalorder %s287, 0
      %s290 = sadd.s32 %s289, 1
      %s291 = scalar_select %p288, %s289, %s290
      %p294 = pneg %p288
      %p295 = scmp.eq.s32.totalorder %s28, 1
      %p296 = por %p294, %p295
      %p297 = scmp.ne.s32.totalorder %s289, %s292
      %p298 = scmp.eq.s32.totalorder %s28, 0
      %p299 = por %p297, %p298
      %p300 = scmp.ne.s32.totalorder %s289, %s292
      %p301 = scmp.eq.s32.totalorder %s33, 1
      %p302 = por %p300, %p301
      %p303 = scmp.ne.s32.totalorder %s292, %s293
      %p304 = scmp.eq.s32.totalorder %s33, 0
      %p305 = por %p303, %p304
      %p306 = scmp.ne.s32.totalorder %s292, %s293
      %p307 = scmp.eq.s32.totalorder %s34, 1
      %p308 = por %p306, %p307
      %p310 = scmp.ne.s32.totalorder %s293, %s309
      %p311 = scmp.eq.s32.totalorder %s34, 0
      %p312 = por %p310, %p311
      %p313 = scmp.le.s32.totalorder 1, %s28
      %p314 = scmp.lt.s32.totalorder %s28, 3
      %p315 = pnand %p313, %p314
      %p316 = pneg %p315
      // Predicated region
      $region9: #{tpu_custom_call.1} parent=5 // pred_check
        _
      $region10: #{tpu_custom_call.1} parent=5 // pred_check_branch
        %318 = sbr.rel (%p315) target = $region12
      $region11: #{tpu_custom_call.1} parent=5 // pred_region
        %s319 = ssub.s32 %s28, 1
        // Predicated region
        $region13: #{tpu_custom_call.1} parent=11 // pred_check
          %p320 = pneg %p153
        $region14: #{tpu_custom_call.1} parent=11 // pred_check_branch
          %322 = sbr.rel (%p320) target = $region16
        $region15: #{tpu_custom_call.1} parent=11 // pred_region
          _
        $region16: #{tpu_custom_call.1} parent=11 // pred_fallthru
          _
        // Predicated region
        $region17: #{tpu_custom_call.1} parent=11 // pred_check
          %p323 = pneg %p174
        $region18: #{tpu_custom_call.1} parent=11 // pred_check_branch
          %325 = sbr.rel (%p323) target = $region20
        $region19: #{tpu_custom_call.1} parent=11 // pred_region
          %s327 = ssub.s32 512, 512
          %328 = vsyncadd [#allocation7], %s327
          %s329 = sshll.u32 [#allocation8], 4
          %s330 = int_to_ptr.vmem [resolvable:$true] %s329
          %335 = dma.hbm_to_vmem [thread:$0]  %s5, 512, %s330, [#allocation7], 64, 64, 4
        $region20: #{tpu_custom_call.1} parent=11 // pred_fallthru
          _
        // Predicated region
        $region21: #{tpu_custom_call.1} parent=11 // pred_check
          %p336 = pneg %p195
        $region22: #{tpu_custom_call.1} parent=11 // pred_check_branch
          %338 = sbr.rel (%p336) target = $region24
        $region23: #{tpu_custom_call.1} parent=11 // pred_region
          %s340 = ssub.s32 512, 512
          %341 = vsyncadd [#allocation10], %s340
          %s342 = sshll.u32 [#allocation9], 4
          %s343 = int_to_ptr.vmem [resolvable:$true] %s342
          %348 = dma.hbm_to_vmem [thread:$0]  %s6, 512, %s343, [#allocation10], 128, 128, 8
        $region24: #{tpu_custom_call.1} parent=11 // pred_fallthru
          _
        // Predicated region
        $region25: #{tpu_custom_call.1} parent=11 // pred_check
          %p349 = pneg %p216
        $region26: #{tpu_custom_call.1} parent=11 // pred_check_branch
          %351 = sbr.rel (%p349) target = $region28
        $region27: #{tpu_custom_call.1} parent=11 // pred_region
          _
        $region28: #{tpu_custom_call.1} parent=11 // pred_fallthru
          _
        // Predicated region
        $region29: #{tpu_custom_call.1} parent=11 // pred_check
          %p352 = pneg %p237
        $region30: #{tpu_custom_call.1} parent=11 // pred_check_branch
          %354 = sbr.rel (%p352) target = $region32
        $region31: #{tpu_custom_call.1} parent=11 // pred_region
          _
        $region32: #{tpu_custom_call.1} parent=11 // pred_fallthru
          _
        // Predicated region
        $region33: #{tpu_custom_call.1} parent=11 // pred_check
          %p355 = pneg %p258
        $region34: #{tpu_custom_call.1} parent=11 // pred_check_branch
          %357 = sbr.rel (%p355) target = $region36
        $region35: #{tpu_custom_call.1} parent=11 // pred_region
          _
        $region36: #{tpu_custom_call.1} parent=11 // pred_fallthru
          _
        // Predicated region
        $region37: #{tpu_custom_call.1} parent=11 // pred_check
          %p358 = pneg %p279
        $region38: #{tpu_custom_call.1} parent=11 // pred_check_branch
          %360 = sbr.rel (%p358) target = $region40
        $region39: #{tpu_custom_call.1} parent=11 // pred_region
          %s362 = ssub.s32 16, 16
          %363 = vsyncadd [#allocation5], %s362
          %s365 = sshll.u32 %s10, 4
          %s366 = int_to_ptr.vmem [resolvable:$true] %s365
          %368 = dma.vmem_to_smem %s366, 16, [#allocation11], [#allocation5]
        $region40: #{tpu_custom_call.1} parent=11 // pred_fallthru
          _
      $region12: #{tpu_custom_call.1} parent=5 // pred_fallthru
        _
      %p369 = scmp.lt.s32.totalorder %s28, 2
      // Predicated region
      $region41: #{tpu_custom_call.1} parent=5 // pred_check
        %p370 = pneg %p369
      $region42: #{tpu_custom_call.1} parent=5 // pred_check_branch
        %372 = sbr.rel (%p370) target = $region44
      $region43: #{tpu_custom_call.1} parent=5 // pred_region
        // Predicated region
        $region45: #{tpu_custom_call.1} parent=43 // pred_check
          %p373 = pneg %p48
        $region46: #{tpu_custom_call.1} parent=43 // pred_check_branch
          %375 = sbr.rel (%p373) target = $region48
        $region47: #{tpu_custom_call.1} parent=43 // pred_region
          %s376 = smul.u32 2, %s28
          %p377 = scmp.lt.s32.totalorder %s376, 3
          %s378 = scalar_select %p377, %s376, 3
          %s379 = smul.addr %s378, 4
          %s380 = smul.addr %s379, 4
          %s381 = scalar_lea.vmem %s0, %s380
          %s382 = smul.u32 2, %s28
        $region48: #{tpu_custom_call.1} parent=43 // pred_fallthru
          _
        // Predicated region
        $region49: #{tpu_custom_call.1} parent=43 // pred_check
          %p383 = pneg %p74
        $region50: #{tpu_custom_call.1} parent=43 // pred_check_branch
          %385 = sbr.rel (%p383) target = $region52
        $region51: #{tpu_custom_call.1} parent=43 // pred_region
          %s386 = sand.u32 %s64, 1
          %s387 = scalar_lea.sflag [#allocation3], %s386
          %s388 = sand.u32 %s64, 1
          %s389 = smul.addr %s388, 32
          %s390 = scalar_lea.vmem [#allocation2], %s389
          %s391 = smul.u32 2, %s28
          %s393 = ssub.s32 512, 512
          %394 = vsyncadd %s387, %s393
          %s395 = smul.addr %s391, 4
          %s396 = smul.addr %s395, 64
          %s397 = scalar_lea.hbm %s1, %s396
          %s398 = sshll.u32 %s390, 4
          %s399 = int_to_ptr.vmem [resolvable:$true] %s398
          %404 = dma.hbm_to_vmem [thread:$0]  %s397, 512, %s399, %s387, 64, 64, 4
        $region52: #{tpu_custom_call.1} parent=43 // pred_fallthru
          _
        // Predicated region
        $region53: #{tpu_custom_call.1} parent=43 // pred_check
          %p405 = pneg %p100
        $region54: #{tpu_custom_call.1} parent=43 // pred_check_branch
          %407 = sbr.rel (%p405) target = $region56
        $region55: #{tpu_custom_call.1} parent=43 // pred_region
          %s408 = smul.u32 2, %s28
          %p409 = scmp.lt.s32.totalorder %s408, 3
          %s410 = scalar_select %p409, %s408, 3
          %s411 = smul.addr %s410, 4
          %s412 = smul.addr %s411, 8
          %s413 = scalar_lea.vmem %s2, %s412
          %s414 = smul.u32 2, %s28
        $region56: #{tpu_custom_call.1} parent=43 // pred_fallthru
          _
        // Predicated region
        $region57: #{tpu_custom_call.1} parent=43 // pred_check
          %p415 = pneg %p126
        $region58: #{tpu_custom_call.1} parent=43 // pred_check_branch
          %417 = sbr.rel (%p415) target = $region60
        $region59: #{tpu_custom_call.1} parent=43 // pred_region
          %s418 = sand.u32 %s28, 1
          %s419 = scalar_lea.sflag [#allocation7], %s418
          %s420 = sand.u32 %s116, 1
          %s421 = smul.addr %s420, 2
          %s422 = scalar_lea.vmem [#allocation6], %s421
          %s423 = smul.u32 2, %s28
          %s425 = ssub.s32 32, 32
          %426 = vsyncadd %s419, %s425
          %s427 = smul.addr %s423, 16
          %s428 = scalar_lea.hbm %s3, %s427
          %s429 = sshll.u32 %s422, 4
          %s430 = int_to_ptr.vmem [resolvable:$true] %s429
          %435 = dma.hbm_to_vmem [thread:$0]  %s428, 32, %s430, %s419, 16, 16, 1
        $region60: #{tpu_custom_call.1} parent=43 // pred_fallthru
          _
      $region44: #{tpu_custom_call.1} parent=5 // pred_fallthru
        _
      %p436 = scmp.le.s32.totalorder 1, %s28
      %p437 = scmp.lt.s32.totalorder %s28, 3
      %p438 = pnand %p436, %p437
      %p439 = pneg %p438
      // Predicated region
      $region61: #{tpu_custom_call.1} parent=5 // pred_check
        _
      $region62: #{tpu_custom_call.1} parent=5 // pred_check_branch
        %441 = sbr.rel (%p438) target = $region64
      $region63: #{tpu_custom_call.1} parent=5 // pred_region
        %s442 = ssub.s32 %s28, 1
        %s443 = sand.u32 %s67, 1
        %s444 = scalar_lea.sflag [#allocation3], %s443
        %s445 = sand.u32 %s67, 1
        %s446 = smul.addr %s445, 32
        %s447 = scalar_lea.vmem [#allocation2], %s446
        // Predicated region
        $region65: #{tpu_custom_call.1} parent=63 // pred_check
          %p448 = pneg %p80
        $region66: #{tpu_custom_call.1} parent=63 // pred_check_branch
          %450 = sbr.rel (%p448) target = $region68
        $region67: #{tpu_custom_call.1} parent=63 // pred_region
          %451 = dma.done %s444, 512
        $region68: #{tpu_custom_call.1} parent=63 // pred_fallthru
          _
        %s452 = sand.u32 %s33, 1
        %s453 = scalar_lea.sflag [#allocation7], %s452
        %s454 = sand.u32 %s119, 1
        %s455 = smul.addr %s454, 2
        %s456 = scalar_lea.vmem [#allocation6], %s455
        // Predicated region
        $region69: #{tpu_custom_call.1} parent=63 // pred_check
          %p457 = pneg %p132
        $region70: #{tpu_custom_call.1} parent=63 // pred_check_branch
          %459 = sbr.rel (%p457) target = $region72
        $region71: #{tpu_custom_call.1} parent=63 // pred_region
          %460 = dma.done %s453, 32
        $region72: #{tpu_custom_call.1} parent=63 // pred_fallthru
          _
        // Predicated region
        $region73: #{tpu_custom_call.1} parent=63 // pred_check
          %p461 = pneg %p174
        $region74: #{tpu_custom_call.1} parent=63 // pred_check_branch
          %463 = sbr.rel (%p461) target = $region76
        $region75: #{tpu_custom_call.1} parent=63 // pred_region
          %464 = dma.done [#allocation7], 512
        $region76: #{tpu_custom_call.1} parent=63 // pred_fallthru
          _
        // Predicated region
        $region77: #{tpu_custom_call.1} parent=63 // pred_check
          %p465 = pneg %p195
        $region78: #{tpu_custom_call.1} parent=63 // pred_check_branch
          %467 = sbr.rel (%p465) target = $region80
        $region79: #{tpu_custom_call.1} parent=63 // pred_region
          %468 = dma.done [#allocation10], 512
        $region80: #{tpu_custom_call.1} parent=63 // pred_fallthru
          _
        // Predicated region
        $region81: #{tpu_custom_call.1} parent=63 // pred_check
          %p469 = pneg %p279
        $region82: #{tpu_custom_call.1} parent=63 // pred_check_branch
          %471 = sbr.rel (%p469) target = $region84
        $region83: #{tpu_custom_call.1} parent=63 // pred_region
          %472 = dma.done [#allocation5], 16
        $region84: #{tpu_custom_call.1} parent=63 // pred_fallthru
          _
        %473 = sfence
        %s474 = smul.u32 2, %s33
        %p475 = scmp.lt.s32.totalorder %s474, 3
        %s476 = scalar_select %p475, %s474, 3
        %s477 = smul.addr %s476, 4
        %s478 = smul.addr %s477, 4
        %s479 = scalar_lea.vmem %s0, %s478
        %p480 = pneg %p54
        %p481 = pneg %p51
        %s482 = sand.u32 %s67, 1
        %s483 = scalar_lea.sflag [#allocation3], %s482
        %s484 = sand.u32 %s67, 1
        %s485 = smul.addr %s484, 32
        %s486 = scalar_lea.vmem [#allocation2], %s485
        %p487 = pneg %p80
        %p488 = pneg %p77
        %s489 = smul.u32 2, %s33
        %p490 = scmp.lt.s32.totalorder %s489, 3
        %s491 = scalar_select %p490, %s489, 3
        %s492 = smul.addr %s491, 4
        %s493 = smul.addr %s492, 8
        %s494 = scalar_lea.vmem %s2, %s493
        %p495 = pneg %p106
        %p496 = pneg %p103
        %s497 = sand.u32 %s33, 1
        %s498 = scalar_lea.sflag [#allocation7], %s497
        %s499 = sand.u32 %s119, 1
        %s500 = smul.addr %s499, 2
        %s501 = scalar_lea.vmem [#allocation6], %s500
        %p502 = pneg %p132
        %p503 = pneg %p129
        %p504 = pneg %p153
        %p505 = pneg %p150
        %p506 = pneg %p174
        %p507 = pneg %p171
        %p508 = pneg %p195
        %p509 = pneg %p192
        %p510 = pneg %p216
        %p511 = pneg %p213
        %p512 = pneg %p237
        %p513 = pneg %p234
        %p514 = pneg %p258
        %p515 = pneg %p255
        %p516 = pneg %p279
        %p517 = pneg %p276
        %p518 = pneg %p305
        %p519 = pneg %p302
        %s520 = sand.u32 %s292, 1
        %s521 = scalar_lea.sflag [#allocation4], %s520
        %s522 = sand.u32 %s292, 1
        %s523 = smul.addr %s522, 64
        %s524 = scalar_lea.vmem [#allocation12], %s523
        %s525 = smul.u32 2, %s33
        %p526 = scmp.lt.s32.totalorder %s525, 3
        %s527 = scalar_select %p526, %s525, 3
        %s528 = smul.addr %s527, 4
        %s529 = smul.addr %s528, 4
        %s530 = scalar_lea.vmem %s0, %s529
        %s531 = smul.u32 2, %s33
        %s532 = smul.u32 2, %s33
        %s533 = smul.u32 2, %s33
        %p534 = scmp.lt.s32.totalorder %s533, 3
        %s535 = scalar_select %p534, %s533, 3
        %s536 = smul.addr %s535, 4
        %s537 = smul.addr %s536, 8
        %s538 = scalar_lea.vmem %s2, %s537
        %s539 = smul.u32 2, %s33
        %s540 = smul.u32 2, %s33
        %s541 = smul.u32 2, %s33
        %v543 = vld [vmem:[%s530] sm:$0xf]
        %v544 = vld [vmem:[%s530 + $0x4] sm:$0xf]
        %v545 = vld [vmem:[%s530 + $0x8] sm:$0xf]
        %v546 = vld [vmem:[%s530 + $0xc] sm:$0xf]
        %v547 = vld [vmem:[%s530 + $0x10] sm:$0xf]
        %v548 = vld [vmem:[%s530 + $0x14] sm:$0xf]
        %v549 = vld [vmem:[%s530 + $0x18] sm:$0xf]
        %v550 = vld [vmem:[%s530 + $0x1c] sm:$0xf]
        %v551 = vld [vmem:[%s447] sm:$0xf]
        %v552 = vld [vmem:[%s447 + $0x4] sm:$0xf]
        %v553 = vld [vmem:[%s447 + $0x8] sm:$0xf]
        %v554 = vld [vmem:[%s447 + $0xc] sm:$0xf]
        %v555 = vld [vmem:[%s447 + $0x10] sm:$0xf]
        %v556 = vld [vmem:[%s447 + $0x14] sm:$0xf]
        %v557 = vld [vmem:[%s447 + $0x18] sm:$0xf]
        %v558 = vld [vmem:[%s447 + $0x1c] sm:$0xf]
        %v559 = vunpack.c.l.bf16 %v551
        %v560 = vunpack.c.l.bf16 %v552
        %v561 = vunpack.c.l.bf16 %v553
        %v562 = vunpack.c.l.bf16 %v554
        %v563 = vunpack.c.l.bf16 %v555
        %v564 = vunpack.c.l.bf16 %v556
        %v565 = vunpack.c.l.bf16 %v557
        %v566 = vunpack.c.l.bf16 %v558
        %v567 = vld [vmem:[%s538] sm:$0xff]
        %v568 = vld [vmem:[%s538 + $0x8] sm:$0xff]
        %v569 = vld [vmem:[%s538 + $0x10] sm:$0xff]
        %v570 = vld [vmem:[%s538 + $0x18] sm:$0xff]
        %v571 = vld [vmem:[%s538 + $0x20] sm:$0xff]
        %v572 = vld [vmem:[%s538 + $0x28] sm:$0xff]
        %v573 = vld [vmem:[%s538 + $0x30] sm:$0xff]
        %v574 = vld [vmem:[%s538 + $0x38] sm:$0xff]
        %s575 = sld [smem:[#allocation11]]
        %s576 = sld [smem:[#allocation11 + $0x1]]
        %v577 = vld [vmem:[%s4] sm:$0xf]
        %v578 = vld [vmem:[%s4 + $0x4] sm:$0xf]
        %v579 = vld [vmem:[%s4 + $0x8] sm:$0xf]
        %v580 = vld [vmem:[%s4 + $0xc] sm:$0xf]
        %v581 = vld [vmem:[%s4 + $0x10] sm:$0xf]
        %v582 = vld [vmem:[%s4 + $0x14] sm:$0xf]
        %v583 = vld [vmem:[%s4 + $0x18] sm:$0xf]
        %v584 = vld [vmem:[%s4 + $0x1c] sm:$0xf]
        %v593 = vunpack.c.l.b16 %v543
        %v594 = vunpack.c.l.b16 %v544
        %v595 = vunpack.c.l.b16 %v545
        %v596 = vunpack.c.l.b16 %v546
        %v597 = vunpack.c.l.b16 %v547
        %v598 = vunpack.c.l.b16 %v548
        %v599 = vunpack.c.l.b16 %v549
        %v600 = vunpack.c.l.b16 %v550
        %v601 = vpack.c.b16 %v594, %v593
        %v602 = vpack.c.b16 %v596, %v595
        %v603 = vpack.c.b16 %v598, %v597
        %v604 = vpack.c.b16 %v600, %v599
        %v613 = vunpack.c.l.b16 %v577
        %v614 = vunpack.c.l.b16 %v578
        %v615 = vunpack.c.l.b16 %v579
        %v616 = vunpack.c.l.b16 %v580
        %v617 = vunpack.c.l.b16 %v581
        %v618 = vunpack.c.l.b16 %v582
        %v619 = vunpack.c.l.b16 %v583
        %v620 = vunpack.c.l.b16 %v584
        %v621 = vpack.c.b16 %v614, %v613
        %v622 = vpack.c.b16 %v616, %v615
        %v623 = vpack.c.b16 %v618, %v617
        %v624 = vpack.c.b16 %v620, %v619
        %vm629 = vcmask 523264
        %v631 = vsel %vm629, %v601, 0
        %v634 = vsel %vm629, %v602, 0
        %v637 = vsel %vm629, %v603, 0
        %v640 = vsel %vm629, %v604, 0
        %642 = vmatprep.subr.bf16.mxu0 0
        %643 = vmatpush1.bf16.msra.mxu0 %v621
        %644 = vmatprep.subr.bf16.mxu0 0
        %645 = vmatpush1.bf16.msra.mxu0 %v622
        %646 = vmatprep.subr.bf16.mxu0 0
        %647 = vmatpush1.bf16.msra.mxu0 %v623
        %648 = vmatprep.subr.bf16.mxu0 0
        %649 = vmatpush1.bf16.msra.mxu0 %v624
        %650 = vmatprep.subr.bf16.mxu0 0
        %651 = vmatpush1.bf16.msra.mxu0 0
        %652 = vmatprep.subr.bf16.mxu0 0
        %653 = vmatpush1.bf16.msra.mxu0 0
        %654 = vmatprep.subr.bf16.mxu0 0
        %655 = vmatpush1.bf16.msra.mxu0 0
        %656 = vmatprep.subr.bf16.mxu0 0
        %657 = vmatpush1.bf16.msra.mxu0 0
        %658 = vmatprep.subr.bf16.mxu0 0
        %659 = vmatpush1.bf16.msra.mxu0 0
        %660 = vmatprep.subr.bf16.mxu0 0
        %661 = vmatpush1.bf16.msra.mxu0 0
        %662 = vmatprep.subr.bf16.mxu0 0
        %663 = vmatpush1.bf16.msra.mxu0 0
        %664 = vmatprep.subr.bf16.mxu0 0
        %665 = vmatpush1.bf16.msra.mxu0 0
        %666 = vmatprep.subr.bf16.mxu0 0
        %667 = vmatpush1.bf16.msra.mxu0 0
        %668 = vmatprep.subr.bf16.mxu0 0
        %669 = vmatpush1.bf16.msra.mxu0 0
        %670 = vmatprep.subr.bf16.mxu0 0
        %671 = vmatpush1.bf16.msra.mxu0 0
        %672 = vmatprep.subr.bf16.mxu0 0
        %673 = vmatpush1.bf16.msra.mxu0 0
        %674 = vmatprep.mubr.bf16.mxu0 0
        %675 = vmatmul.mubr.bf16.gmra.mrb[0].mxu0 %v631
        %v676 = vpop.f32.mrb[0].mxu0
        %v677 = vadd.f32 0.0, %v676
        %v678 = vpop.f32.mrb[0].mxu0
        %v679 = vpop.f32.mrb[0].mxu0
        %v680 = vadd.f32 0.0, %v679
        %v681 = vpop.f32.mrb[0].mxu0
        %682 = vmatprep.mubr.bf16.mxu0 0
        %683 = vmatmul.mubr.bf16.gmra.mrb[0].mxu0 %v634
        %v684 = vpop.f32.mrb[0].mxu0
        %v685 = vadd.f32 0.0, %v684
        %v686 = vpop.f32.mrb[0].mxu0
        %v687 = vpop.f32.mrb[0].mxu0
        %v688 = vadd.f32 0.0, %v687
        %v689 = vpop.f32.mrb[0].mxu0
        %690 = vmatprep.mubr.bf16.mxu0 0
        %691 = vmatmul.mubr.bf16.gmra.mrb[0].mxu0 %v637
        %v692 = vpop.f32.mrb[0].mxu0
        %v693 = vadd.f32 0.0, %v692
        %v694 = vpop.f32.mrb[0].mxu0
        %v695 = vpop.f32.mrb[0].mxu0
        %v696 = vadd.f32 0.0, %v695
        %v697 = vpop.f32.mrb[0].mxu0
        %698 = vmatprep.mubr.bf16.mxu0 0
        %699 = vmatmul.mubr.bf16.gmra.mrb[0].mxu0 %v640
        %v700 = vpop.f32.mrb[0].mxu0
        %v701 = vadd.f32 0.0, %v700
        %v702 = vpop.f32.mrb[0].mxu0
        %v703 = vpop.f32.mrb[0].mxu0
        %v704 = vadd.f32 0.0, %v703
        %v705 = vpop.f32.mrb[0].mxu0
        %706 = vdwg.mxu0
        %s707 = scalar_lea.vmem %s4, 32
        %v708 = vld [vmem:[%s707] sm:$0xf]
        %v709 = vld [vmem:[%s707 + $0x4] sm:$0xf]
        %v710 = vld [vmem:[%s707 + $0x8] sm:$0xf]
        %v711 = vld [vmem:[%s707 + $0xc] sm:$0xf]
        %v712 = vld [vmem:[%s707 + $0x10] sm:$0xf]
        %v713 = vld [vmem:[%s707 + $0x14] sm:$0xf]
        %v714 = vld [vmem:[%s707 + $0x18] sm:$0xf]
        %v715 = vld [vmem:[%s707 + $0x1c] sm:$0xf]
        %v724 = vunpack.c.l.b16 %v708
        %v725 = vunpack.c.l.b16 %v709
        %v726 = vunpack.c.l.b16 %v710
        %v727 = vunpack.c.l.b16 %v711
        %v728 = vunpack.c.l.b16 %v712
        %v729 = vunpack.c.l.b16 %v713
        %v730 = vunpack.c.l.b16 %v714
        %v731 = vunpack.c.l.b16 %v715
        %v732 = vpack.c.b16 %v725, %v724
        %v733 = vpack.c.b16 %v727, %v726
        %v734 = vpack.c.b16 %v729, %v728
        %v735 = vpack.c.b16 %v731, %v730
        %740 = vmatprep.subr.bf16.mxu0 0
        %741 = vmatpush1.bf16.msra.mxu0 %v732
        %742 = vmatprep.subr.bf16.mxu0 0
        %743 = vmatpush1.bf16.msra.mxu0 %v733
        %744 = vmatprep.subr.bf16.mxu0 0
        %745 = vmatpush1.bf16.msra.mxu0 %v734
        %746 = vmatprep.subr.bf16.mxu0 0
        %747 = vmatpush1.bf16.msra.mxu0 %v735
        %748 = vmatprep.subr.bf16.mxu0 0
        %749 = vmatpush1.bf16.msra.mxu0 0
        %750 = vmatprep.subr.bf16.mxu0 0
        %751 = vmatpush1.bf16.msra.mxu0 0
        %752 = vmatprep.subr.bf16.mxu0 0
        %753 = vmatpush1.bf16.msra.mxu0 0
        %754 = vmatprep.subr.bf16.mxu0 0
        %755 = vmatpush1.bf16.msra.mxu0 0
        %756 = vmatprep.subr.bf16.mxu0 0
        %757 = vmatpush1.bf16.msra.mxu0 0
        %758 = vmatprep.subr.bf16.mxu0 0
        %759 = vmatpush1.bf16.msra.mxu0 0
        %760 = vmatprep.subr.bf16.mxu0 0
        %761 = vmatpush1.bf16.msra.mxu0 0
        %762 = vmatprep.subr.bf16.mxu0 0
        %763 = vmatpush1.bf16.msra.mxu0 0
        %764 = vmatprep.subr.bf16.mxu0 0
        %765 = vmatpush1.bf16.msra.mxu0 0
        %766 = vmatprep.subr.bf16.mxu0 0
        %767 = vmatpush1.bf16.msra.mxu0 0
        %768 = vmatprep.subr.bf16.mxu0 0
        %769 = vmatpush1.bf16.msra.mxu0 0
        %770 = vmatprep.subr.bf16.mxu0 0
        %771 = vmatpush1.bf16.msra.mxu0 0
        %772 = vmatprep.mubr.bf16.mxu0 0
        %773 = vmatmul.mubr.bf16.gmra.mrb[0].mxu0 %v631
        %v774 = vpop.f32.mrb[0].mxu0
        %v775 = vadd.f32 0.0, %v774
        %v776 = vpop.f32.mrb[0].mxu0
        %v777 = vpop.f32.mrb[0].mxu0
        %v778 = vadd.f32 0.0, %v777
        %v779 = vpop.f32.mrb[0].mxu0
        %780 = vmatprep.mubr.bf16.mxu0 0
        %781 = vmatmul.mubr.bf16.gmra.mrb[0].mxu0 %v634
        %v782 = vpop.f32.mrb[0].mxu0
        %v783 = vadd.f32 0.0, %v782
        %v784 = vpop.f32.mrb[0].mxu0
        %v785 = vpop.f32.mrb[0].mxu0
        %v786 = vadd.f32 0.0, %v785
        %v787 = vpop.f32.mrb[0].mxu0
        %788 = vmatprep.mubr.bf16.mxu0 0
        %789 = vmatmul.mubr.bf16.gmra.mrb[0].mxu0 %v637
        %v790 = vpop.f32.mrb[0].mxu0
        %v791 = vadd.f32 0.0, %v790
        %v792 = vpop.f32.mrb[0].mxu0
        %v793 = vpop.f32.mrb[0].mxu0
        %v794 = vadd.f32 0.0, %v793
        %v795 = vpop.f32.mrb[0].mxu0
        %796 = vmatprep.mubr.bf16.mxu0 0
        %797 = vmatmul.mubr.bf16.gmra.mrb[0].mxu0 %v640
        %v798 = vpop.f32.mrb[0].mxu0
        %v799 = vadd.f32 0.0, %v798
        %v800 = vpop.f32.mrb[0].mxu0
        %v801 = vpop.f32.mrb[0].mxu0
        %v802 = vadd.f32 0.0, %v801
        %v803 = vpop.f32.mrb[0].mxu0
        %804 = vdwg.mxu0
        %s805 = scalar_lea.vmem %s4, 64
        %v806 = vld [vmem:[%s805] sm:$0xf]
        %v807 = vld [vmem:[%s805 + $0x4] sm:$0xf]
        %v808 = vld [vmem:[%s805 + $0x8] sm:$0xf]
        %v809 = vld [vmem:[%s805 + $0xc] sm:$0xf]
        %v810 = vld [vmem:[%s805 + $0x10] sm:$0xf]
        %v811 = vld [vmem:[%s805 + $0x14] sm:$0xf]
        %v812 = vld [vmem:[%s805 + $0x18] sm:$0xf]
        %v813 = vld [vmem:[%s805 + $0x1c] sm:$0xf]
        %v822 = vunpack.c.l.b16 %v806
        %v823 = vunpack.c.l.b16 %v807
        %v824 = vunpack.c.l.b16 %v808
        %v825 = vunpack.c.l.b16 %v809
        %v826 = vunpack.c.l.b16 %v810
        %v827 = vunpack.c.l.b16 %v811
        %v828 = vunpack.c.l.b16 %v812
        %v829 = vunpack.c.l.b16 %v813
        %v830 = vpack.c.b16 %v823, %v822
        %v831 = vpack.c.b16 %v825, %v824
        %v832 = vpack.c.b16 %v827, %v826
        %v833 = vpack.c.b16 %v829, %v828
        %838 = vmatprep.subr.bf16.mxu0 0
        %839 = vmatpush1.bf16.msra.mxu0 %v830
        %840 = vmatprep.subr.bf16.mxu0 0
        %841 = vmatpush1.bf16.msra.mxu0 %v831
        %842 = vmatprep.subr.bf16.mxu0 0
        %843 = vmatpush1.bf16.msra.mxu0 %v832
        %844 = vmatprep.subr.bf16.mxu0 0
        %845 = vmatpush1.bf16.msra.mxu0 %v833
        %846 = vmatprep.subr.bf16.mxu0 0
        %847 = vmatpush1.bf16.msra.mxu0 0
        %848 = vmatprep.subr.bf16.mxu0 0
        %849 = vmatpush1.bf16.msra.mxu0 0
        %850 = vmatprep.subr.bf16.mxu0 0
        %851 = vmatpush1.bf16.msra.mxu0 0
        %852 = vmatprep.subr.bf16.mxu0 0
        %853 = vmatpush1.bf16.msra.mxu0 0
        %854 = vmatprep.subr.bf16.mxu0 0
        %855 = vmatpush1.bf16.msra.mxu0 0
        %856 = vmatprep.subr.bf16.mxu0 0
        %857 = vmatpush1.bf16.msra.mxu0 0
        %858 = vmatprep.subr.bf16.mxu0 0
        %859 = vmatpush1.bf16.msra.mxu0 0
        %860 = vmatprep.subr.bf16.mxu0 0
        %861 = vmatpush1.bf16.msra.mxu0 0
        %862 = vmatprep.subr.bf16.mxu0 0
        %863 = vmatpush1.bf16.msra.mxu0 0
        %864 = vmatprep.subr.bf16.mxu0 0
        %865 = vmatpush1.bf16.msra.mxu0 0
        %866 = vmatprep.subr.bf16.mxu0 0
        %867 = vmatpush1.bf16.msra.mxu0 0
        %868 = vmatprep.subr.bf16.mxu0 0
        %869 = vmatpush1.bf16.msra.mxu0 0
        %870 = vmatprep.mubr.bf16.mxu0 0
        %871 = vmatmul.mubr.bf16.gmra.mrb[0].mxu0 %v631
        %v872 = vpop.f32.mrb[0].mxu0
        %v873 = vadd.f32 0.0, %v872
        %v874 = vpop.f32.mrb[0].mxu0
        %v875 = vpop.f32.mrb[0].mxu0
        %v876 = vadd.f32 0.0, %v875
        %v877 = vpop.f32.mrb[0].mxu0
        %878 = vmatprep.mubr.bf16.mxu0 0
        %879 = vmatmul.mubr.bf16.gmra.mrb[0].mxu0 %v634
        %v880 = vpop.f32.mrb[0].mxu0
        %v881 = vadd.f32 0.0, %v880
        %v882 = vpop.f32.mrb[0].mxu0
        %v883 = vpop.f32.mrb[0].mxu0
        %v884 = vadd.f32 0.0, %v883
        %v885 = vpop.f32.mrb[0].mxu0
        %886 = vmatprep.mubr.bf16.mxu0 0
        %887 = vmatmul.mubr.bf16.gmra.mrb[0].mxu0 %v637
        %v888 = vpop.f32.mrb[0].mxu0
        %v889 = vadd.f32 0.0, %v888
        %v890 = vpop.f32.mrb[0].mxu0
        %v891 = vpop.f32.mrb[0].mxu0
        %v892 = vadd.f32 0.0, %v891
        %v893 = vpop.f32.mrb[0].mxu0
        %894 = vmatprep.mubr.bf16.mxu0 0
        %895 = vmatmul.mubr.bf16.gmra.mrb[0].mxu0 %v640
        %v896 = vpop.f32.mrb[0].mxu0
        %v897 = vadd.f32 0.0, %v896
        %v898 = vpop.f32.mrb[0].mxu0
        %v899 = vpop.f32.mrb[0].mxu0
        %v900 = vadd.f32 0.0, %v899
        %v901 = vpop.f32.mrb[0].mxu0
        %902 = vdwg.mxu0
        %v903 = vld [vmem:[%s8] sm:$0xf]
        %v904 = vld [vmem:[%s8 + $0x4] sm:$0xf]
        %v905 = vld [vmem:[%s8 + $0x8] sm:$0xf]
        %v906 = vld [vmem:[%s8 + $0xc] sm:$0xf]
        %v907 = vld [vmem:[%s8 + $0x10] sm:$0xf]
        %v908 = vld [vmem:[%s8 + $0x14] sm:$0xf]
        %v909 = vld [vmem:[%s8 + $0x18] sm:$0xf]
        %v910 = vld [vmem:[%s8 + $0x1c] sm:$0xf]
        %v911 = vld [vmem:[%s9] sm:$0x3]
        %v912 = vmul.f32 %v677, %v677
        %v913 = vmul.f32 %v680, %v680
        %v914 = vmul.f32 %v685, %v685
        %v915 = vmul.f32 %v688, %v688
        %v916 = vmul.f32 %v693, %v693
        %v917 = vmul.f32 %v696, %v696
        %v918 = vmul.f32 %v701, %v701
        %v919 = vmul.f32 %v704, %v704
        %v920 = vpack.c.bf16 %v913, %v912
        %v921 = vpack.c.bf16 %v915, %v914
        %v922 = vpack.c.bf16 %v917, %v916
        %v923 = vpack.c.bf16 %v919, %v918
        %v932 = vunpack.c.l.b16 %v903
        %v933 = vunpack.c.l.b16 %v904
        %v934 = vunpack.c.l.b16 %v905
        %v935 = vunpack.c.l.b16 %v906
        %v936 = vunpack.c.l.b16 %v907
        %v937 = vunpack.c.l.b16 %v908
        %v938 = vunpack.c.l.b16 %v909
        %v939 = vunpack.c.l.b16 %v910
        %v940 = vpack.c.b16 %v933, %v932
        %v941 = vpack.c.b16 %v935, %v934
        %v942 = vpack.c.b16 %v937, %v936
        %v943 = vpack.c.b16 %v939, %v938
        %v949 = vsel %vm629, %v920, 0
        %v952 = vsel %vm629, %v921, 0
        %v955 = vsel %vm629, %v922, 0
        %v958 = vsel %vm629, %v923, 0
        %960 = vmatprep.subr.bf16.mxu0 0
        %961 = vmatpush1.bf16.msra.mxu0 %v940
        %962 = vmatprep.subr.bf16.mxu0 0
        %963 = vmatpush1.bf16.msra.mxu0 %v941
        %964 = vmatprep.subr.bf16.mxu0 0
        %965 = vmatpush1.bf16.msra.mxu0 %v942
        %966 = vmatprep.subr.bf16.mxu0 0
        %967 = vmatpush1.bf16.msra.mxu0 %v943
        %968 = vmatprep.subr.bf16.mxu0 0
        %969 = vmatpush1.bf16.msra.mxu0 0
        %970 = vmatprep.subr.bf16.mxu0 0
        %971 = vmatpush1.bf16.msra.mxu0 0
        %972 = vmatprep.subr.bf16.mxu0 0
        %973 = vmatpush1.bf16.msra.mxu0 0
        %974 = vmatprep.subr.bf16.mxu0 0
        %975 = vmatpush1.bf16.msra.mxu0 0
        %976 = vmatprep.subr.bf16.mxu0 0
        %977 = vmatpush1.bf16.msra.mxu0 0
        %978 = vmatprep.subr.bf16.mxu0 0
        %979 = vmatpush1.bf16.msra.mxu0 0
        %980 = vmatprep.subr.bf16.mxu0 0
        %981 = vmatpush1.bf16.msra.mxu0 0
        %982 = vmatprep.subr.bf16.mxu0 0
        %983 = vmatpush1.bf16.msra.mxu0 0
        %984 = vmatprep.subr.bf16.mxu0 0
        %985 = vmatpush1.bf16.msra.mxu0 0
        %986 = vmatprep.subr.bf16.mxu0 0
        %987 = vmatpush1.bf16.msra.mxu0 0
        %988 = vmatprep.subr.bf16.mxu0 0
        %989 = vmatpush1.bf16.msra.mxu0 0
        %990 = vmatprep.subr.bf16.mxu0 0
        %991 = vmatpush1.bf16.msra.mxu0 0
        %992 = vmatprep.mubr.bf16.mxu0 0
        %993 = vmatmul.mubr.bf16.gmra.mrb[0].mxu0 %v949
        %v994 = vpop.f32.mrb[0].mxu0
        %v995 = vadd.f32 0.0, %v994
        %v996 = vpop.f32.mrb[0].mxu0
        %v997 = vpop.f32.mrb[0].mxu0
        %v998 = vadd.f32 0.0, %v997
        %v999 = vpop.f32.mrb[0].mxu0
        %1000 = vmatprep.mubr.bf16.mxu0 0
        %1001 = vmatmul.mubr.bf16.gmra.mrb[0].mxu0 %v952
        %v1002 = vpop.f32.mrb[0].mxu0
        %v1003 = vadd.f32 0.0, %v1002
        %v1004 = vpop.f32.mrb[0].mxu0
        %v1005 = vpop.f32.mrb[0].mxu0
        %v1006 = vadd.f32 0.0, %v1005
        %v1007 = vpop.f32.mrb[0].mxu0
        %1008 = vmatprep.mubr.bf16.mxu0 0
        %1009 = vmatmul.mubr.bf16.gmra.mrb[0].mxu0 %v955
        %v1010 = vpop.f32.mrb[0].mxu0
        %v1011 = vadd.f32 0.0, %v1010
        %v1012 = vpop.f32.mrb[0].mxu0
        %v1013 = vpop.f32.mrb[0].mxu0
        %v1014 = vadd.f32 0.0, %v1013
        %v1015 = vpop.f32.mrb[0].mxu0
        %1016 = vmatprep.mubr.bf16.mxu0 0
        %1017 = vmatmul.mubr.bf16.gmra.mrb[0].mxu0 %v958
        %v1018 = vpop.f32.mrb[0].mxu0
        %v1019 = vadd.f32 0.0, %v1018
        %v1020 = vpop.f32.mrb[0].mxu0
        %v1021 = vpop.f32.mrb[0].mxu0
        %v1022 = vadd.f32 0.0, %v1021
        %v1023 = vpop.f32.mrb[0].mxu0
        %1024 = vdwg.mxu0
        %v1025 = vmul.f32 %v775, %v775
        %v1026 = vmul.f32 %v778, %v778
        %v1027 = vmul.f32 %v783, %v783
        %v1028 = vmul.f32 %v786, %v786
        %v1029 = vmul.f32 %v791, %v791
        %v1030 = vmul.f32 %v794, %v794
        %v1031 = vmul.f32 %v799, %v799
        %v1032 = vmul.f32 %v802, %v802
        %v1033 = vpack.c.bf16 %v1026, %v1025
        %v1034 = vpack.c.bf16 %v1028, %v1027
        %v1035 = vpack.c.bf16 %v1030, %v1029
        %v1036 = vpack.c.bf16 %v1032, %v1031
        %v1038 = vsel %vm629, %v1033, 0
        %v1041 = vsel %vm629, %v1034, 0
        %v1044 = vsel %vm629, %v1035, 0
        %v1047 = vsel %vm629, %v1036, 0
        %1049 = vmatprep.subr.bf16.mxu0 0
        %1050 = vmatpush1.bf16.msra.mxu0 %v940
        %1051 = vmatprep.subr.bf16.mxu0 0
        %1052 = vmatpush1.bf16.msra.mxu0 %v941
        %1053 = vmatprep.subr.bf16.mxu0 0
        %1054 = vmatpush1.bf16.msra.mxu0 %v942
        %1055 = vmatprep.subr.bf16.mxu0 0
        %1056 = vmatpush1.bf16.msra.mxu0 %v943
        %1057 = vmatprep.subr.bf16.mxu0 0
        %1058 = vmatpush1.bf16.msra.mxu0 0
        %1059 = vmatprep.subr.bf16.mxu0 0
        %1060 = vmatpush1.bf16.msra.mxu0 0
        %1061 = vmatprep.subr.bf16.mxu0 0
        %1062 = vmatpush1.bf16.msra.mxu0 0
        %1063 = vmatprep.subr.bf16.mxu0 0
        %1064 = vmatpush1.bf16.msra.mxu0 0
        %1065 = vmatprep.subr.bf16.mxu0 0
        %1066 = vmatpush1.bf16.msra.mxu0 0
        %1067 = vmatprep.subr.bf16.mxu0 0
        %1068 = vmatpush1.bf16.msra.mxu0 0
        %1069 = vmatprep.subr.bf16.mxu0 0
        %1070 = vmatpush1.bf16.msra.mxu0 0
        %1071 = vmatprep.subr.bf16.mxu0 0
        %1072 = vmatpush1.bf16.msra.mxu0 0
        %1073 = vmatprep.subr.bf16.mxu0 0
        %1074 = vmatpush1.bf16.msra.mxu0 0
        %1075 = vmatprep.subr.bf16.mxu0 0
        %1076 = vmatpush1.bf16.msra.mxu0 0
        %1077 = vmatprep.subr.bf16.mxu0 0
        %1078 = vmatpush1.bf16.msra.mxu0 0
        %1079 = vmatprep.subr.bf16.mxu0 0
        %1080 = vmatpush1.bf16.msra.mxu0 0
        %1081 = vmatprep.mubr.bf16.mxu0 0
        %1082 = vmatmul.mubr.bf16.gmra.mrb[0].mxu0 %v1038
        %v1083 = vpop.f32.mrb[0].mxu0
        %v1084 = vadd.f32 0.0, %v1083
        %v1085 = vpop.f32.mrb[0].mxu0
        %v1086 = vpop.f32.mrb[0].mxu0
        %v1087 = vadd.f32 0.0, %v1086
        %v1088 = vpop.f32.mrb[0].mxu0
        %1089 = vmatprep.mubr.bf16.mxu0 0
        %1090 = vmatmul.mubr.bf16.gmra.mrb[0].mxu0 %v1041
        %v1091 = vpop.f32.mrb[0].mxu0
        %v1092 = vadd.f32 0.0, %v1091
        %v1093 = vpop.f32.mrb[0].mxu0
        %v1094 = vpop.f32.mrb[0].mxu0
        %v1095 = vadd.f32 0.0, %v1094
        %v1096 = vpop.f32.mrb[0].mxu0
        %1097 = vmatprep.mubr.bf16.mxu0 0
        %1098 = vmatmul.mubr.bf16.gmra.mrb[0].mxu0 %v1044
        %v1099 = vpop.f32.mrb[0].mxu0
        %v1100 = vadd.f32 0.0, %v1099
        %v1101 = vpop.f32.mrb[0].mxu0
        %v1102 = vpop.f32.mrb[0].mxu0
        %v1103 = vadd.f32 0.0, %v1102
        %v1104 = vpop.f32.mrb[0].mxu0
        %1105 = vmatprep.mubr.bf16.mxu0 0
        %1106 = vmatmul.mubr.bf16.gmra.mrb[0].mxu0 %v1047
        %v1107 = vpop.f32.mrb[0].mxu0
        %v1108 = vadd.f32 0.0, %v1107
        %v1109 = vpop.f32.mrb[0].mxu0
        %v1110 = vpop.f32.mrb[0].mxu0
        %v1111 = vadd.f32 0.0, %v1110
        %v1112 = vpop.f32.mrb[0].mxu0
        %1113 = vdwg.mxu0
        %v1114 = vmul.f32 %v995, 0.0625
        %v1115 = vmul.f32 %v998, 0.0625
        %v1116 = vmul.f32 %v1003, 0.0625
        %v1117 = vmul.f32 %v1006, 0.0625
        %v1118 = vmul.f32 %v1011, 0.0625
        %v1119 = vmul.f32 %v1014, 0.0625
        %v1120 = vmul.f32 %v1019, 0.0625
        %v1121 = vmul.f32 %v1022, 0.0625
        %v1122 = vadd.f32 %v1114, 1.1920929e-07
        %v1123 = vadd.f32 %v1115, 1.1920929e-07
        %v1124 = vadd.f32 %v1116, 1.1920929e-07
        %v1125 = vadd.f32 %v1117, 1.1920929e-07
        %v1126 = vadd.f32 %v1118, 1.1920929e-07
        %v1127 = vadd.f32 %v1119, 1.1920929e-07
        %v1128 = vadd.f32 %v1120, 1.1920929e-07
        %v1129 = vadd.f32 %v1121, 1.1920929e-07
        %v1130 = vrsqrt.pop %v1122
        %v1131 = vrsqrt.pop %v1123
        %v1132 = vrsqrt.pop %v1124
        %v1133 = vrsqrt.pop %v1125
        %v1134 = vrsqrt.pop %v1126
        %v1135 = vrsqrt.pop %v1127
        %v1136 = vrsqrt.pop %v1128
        %v1137 = vrsqrt.pop %v1129
        %v1138 = vmul.f32 %v1084, 0.0625
        %v1139 = vmul.f32 %v1087, 0.0625
        %v1140 = vmul.f32 %v1092, 0.0625
        %v1141 = vmul.f32 %v1095, 0.0625
        %v1142 = vmul.f32 %v1100, 0.0625
        %v1143 = vmul.f32 %v1103, 0.0625
        %v1144 = vmul.f32 %v1108, 0.0625
        %v1145 = vmul.f32 %v1111, 0.0625
        %v1146 = vadd.f32 %v1138, 1.1920929e-07
        %v1147 = vadd.f32 %v1139, 1.1920929e-07
        %v1148 = vadd.f32 %v1140, 1.1920929e-07
        %v1149 = vadd.f32 %v1141, 1.1920929e-07
        %v1150 = vadd.f32 %v1142, 1.1920929e-07
        %v1151 = vadd.f32 %v1143, 1.1920929e-07
        %v1152 = vadd.f32 %v1144, 1.1920929e-07
        %v1153 = vadd.f32 %v1145, 1.1920929e-07
        %v1154 = vrsqrt.pop %v1146
        %v1155 = vrsqrt.pop %v1147
        %v1156 = vrsqrt.pop %v1148
        %v1157 = vrsqrt.pop %v1149
        %v1158 = vrsqrt.pop %v1150
        %v1159 = vrsqrt.pop %v1151
        %v1160 = vrsqrt.pop %v1152
        %v1161 = vrsqrt.pop %v1153
        %v1162 = vpack.c.bf16 %v1131, %v1130
        %v1163 = vpack.c.bf16 %v1133, %v1132
        %v1164 = vpack.c.bf16 %v1135, %v1134
        %v1165 = vpack.c.bf16 %v1137, %v1136
        %vm1166 = vcmask 31744
        %v1168 = vsel %vm1166, %v1162, 0
        %v1171 = vsel %vm1166, %v1163, 0
        %v1174 = vsel %vm1166, %v1164, 0
        %v1177 = vsel %vm1166, %v1165, 0
        %vm1179 = vcmask 1041408
        %v1181 = vsel %vm1179, %v911, 0
        %1183 = vmatprep.subr.bf16.mxu0 0
        %1184 = vmatpush1.bf16.msra.mxu0 %v1181
        %1185 = vmatprep.subr.bf16.mxu0 0
        %1186 = vmatpush1.bf16.msra.mxu0 0
        %1187 = vmatprep.subr.bf16.mxu0 0
        %1188 = vmatpush1.bf16.msra.mxu0 0
        %1189 = vmatprep.subr.bf16.mxu0 0
        %1190 = vmatpush1.bf16.msra.mxu0 0
        %1191 = vmatprep.subr.bf16.mxu0 0
        %1192 = vmatpush1.bf16.msra.mxu0 0
        %1193 = vmatprep.subr.bf16.mxu0 0
        %1194 = vmatpush1.bf16.msra.mxu0 0
        %1195 = vmatprep.subr.bf16.mxu0 0
        %1196 = vmatpush1.bf16.msra.mxu0 0
        %1197 = vmatprep.subr.bf16.mxu0 0
        %1198 = vmatpush1.bf16.msra.mxu0 0
        %1199 = vmatprep.subr.bf16.mxu0 0
        %1200 = vmatpush1.bf16.msra.mxu0 0
        %1201 = vmatprep.subr.bf16.mxu0 0
        %1202 = vmatpush1.bf16.msra.mxu0 0
        %1203 = vmatprep.subr.bf16.mxu0 0
        %1204 = vmatpush1.bf16.msra.mxu0 0
        %1205 = vmatprep.subr.bf16.mxu0 0
        %1206 = vmatpush1.bf16.msra.mxu0 0
        %1207 = vmatprep.subr.bf16.mxu0 0
        %1208 = vmatpush1.bf16.msra.mxu0 0
        %1209 = vmatprep.subr.bf16.mxu0 0
        %1210 = vmatpush1.bf16.msra.mxu0 0
        %1211 = vmatprep.subr.bf16.mxu0 0
        %1212 = vmatpush1.bf16.msra.mxu0 0
        %1213 = vmatprep.subr.bf16.mxu0 0
        %1214 = vmatpush1.bf16.msra.mxu0 0
        %1215 = vmatprep.mubr.bf16.mxu0 0
        %1216 = vmatmul.mubr.bf16.gmra.mrb[0].mxu0 %v1168
        %v1217 = vpop.f32.mrb[0].mxu0
        %v1218 = vadd.f32 0.0, %v1217
        %v1219 = vpop.f32.mrb[0].mxu0
        %v1220 = vpop.f32.mrb[0].mxu0
        %v1221 = vadd.f32 0.0, %v1220
        %v1222 = vpop.f32.mrb[0].mxu0
        %1223 = vmatprep.mubr.bf16.mxu0 0
        %1224 = vmatmul.mubr.bf16.gmra.mrb[0].mxu0 %v1171
        %v1225 = vpop.f32.mrb[0].mxu0
        %v1226 = vadd.f32 0.0, %v1225
        %v1227 = vpop.f32.mrb[0].mxu0
        %v1228 = vpop.f32.mrb[0].mxu0
        %v1229 = vadd.f32 0.0, %v1228
        %v1230 = vpop.f32.mrb[0].mxu0
        %1231 = vmatprep.mubr.bf16.mxu0 0
        %1232 = vmatmul.mubr.bf16.gmra.mrb[0].mxu0 %v1174
        %v1233 = vpop.f32.mrb[0].mxu0
        %v1234 = vadd.f32 0.0, %v1233
        %v1235 = vpop.f32.mrb[0].mxu0
        %v1236 = vpop.f32.mrb[0].mxu0
        %v1237 = vadd.f32 0.0, %v1236
        %v1238 = vpop.f32.mrb[0].mxu0
        %1239 = vmatprep.mubr.bf16.mxu0 0
        %1240 = vmatmul.mubr.bf16.gmra.mrb[0].mxu0 %v1177
        %v1241 = vpop.f32.mrb[0].mxu0
        %v1242 = vadd.f32 0.0, %v1241
        %v1243 = vpop.f32.mrb[0].mxu0
        %v1244 = vpop.f32.mrb[0].mxu0
        %v1245 = vadd.f32 0.0, %v1244
        %v1246 = vpop.f32.mrb[0].mxu0
        %1247 = vdwg.mxu0
        %v1248 = vmul.f32 %v677, %v1218
        %v1249 = vmul.f32 %v680, %v1221
        %v1250 = vmul.f32 %v685, %v1226
        %v1251 = vmul.f32 %v688, %v1229
        %v1252 = vmul.f32 %v693, %v1234
        %v1253 = vmul.f32 %v696, %v1237
        %v1254 = vmul.f32 %v701, %v1242
        %v1255 = vmul.f32 %v704, %v1245
        %v1256 = vpack.c.bf16 %v1155, %v1154
        %v1257 = vpack.c.bf16 %v1157, %v1156
        %v1258 = vpack.c.bf16 %v1159, %v1158
        %v1259 = vpack.c.bf16 %v1161, %v1160
        %v1261 = vsel %vm1166, %v1256, 0
        %v1264 = vsel %vm1166, %v1257, 0
        %v1267 = vsel %vm1166, %v1258, 0
        %v1270 = vsel %vm1166, %v1259, 0
        %1272 = vmatprep.subr.bf16.mxu0 0
        %1273 = vmatpush1.bf16.msra.mxu0 %v1181
        %1274 = vmatprep.subr.bf16.mxu0 0
        %1275 = vmatpush1.bf16.msra.mxu0 0
        %1276 = vmatprep.subr.bf16.mxu0 0
        %1277 = vmatpush1.bf16.msra.mxu0 0
        %1278 = vmatprep.subr.bf16.mxu0 0
        %1279 = vmatpush1.bf16.msra.mxu0 0
        %1280 = vmatprep.subr.bf16.mxu0 0
        %1281 = vmatpush1.bf16.msra.mxu0 0
        %1282 = vmatprep.subr.bf16.mxu0 0
        %1283 = vmatpush1.bf16.msra.mxu0 0
        %1284 = vmatprep.subr.bf16.mxu0 0
        %1285 = vmatpush1.bf16.msra.mxu0 0
        %1286 = vmatprep.subr.bf16.mxu0 0
        %1287 = vmatpush1.bf16.msra.mxu0 0
        %1288 = vmatprep.subr.bf16.mxu0 0
        %1289 = vmatpush1.bf16.msra.mxu0 0
        %1290 = vmatprep.subr.bf16.mxu0 0
        %1291 = vmatpush1.bf16.msra.mxu0 0
        %1292 = vmatprep.subr.bf16.mxu0 0
        %1293 = vmatpush1.bf16.msra.mxu0 0
        %1294 = vmatprep.subr.bf16.mxu0 0
        %1295 = vmatpush1.bf16.msra.mxu0 0
        %1296 = vmatprep.subr.bf16.mxu0 0
        %1297 = vmatpush1.bf16.msra.mxu0 0
        %1298 = vmatprep.subr.bf16.mxu0 0
        %1299 = vmatpush1.bf16.msra.mxu0 0
        %1300 = vmatprep.subr.bf16.mxu0 0
        %1301 = vmatpush1.bf16.msra.mxu0 0
        %1302 = vmatprep.subr.bf16.mxu0 0
        %1303 = vmatpush1.bf16.msra.mxu0 0
        %1304 = vmatprep.mubr.bf16.mxu0 0
        %1305 = vmatmul.mubr.bf16.gmra.mrb[0].mxu0 %v1261
        %v1306 = vpop.f32.mrb[0].mxu0
        %v1307 = vadd.f32 0.0, %v1306
        %v1308 = vpop.f32.mrb[0].mxu0
        %v1309 = vpop.f32.mrb[0].mxu0
        %v1310 = vadd.f32 0.0, %v1309
        %v1311 = vpop.f32.mrb[0].mxu0
        %1312 = vmatprep.mubr.bf16.mxu0 0
        %1313 = vmatmul.mubr.bf16.gmra.mrb[0].mxu0 %v1264
        %v1314 = vpop.f32.mrb[0].mxu0
        %v1315 = vadd.f32 0.0, %v1314
        %v1316 = vpop.f32.mrb[0].mxu0
        %v1317 = vpop.f32.mrb[0].mxu0
        %v1318 = vadd.f32 0.0, %v1317
        %v1319 = vpop.f32.mrb[0].mxu0
        %1320 = vmatprep.mubr.bf16.mxu0 0
        %1321 = vmatmul.mubr.bf16.gmra.mrb[0].mxu0 %v1267
        %v1322 = vpop.f32.mrb[0].mxu0
        %v1323 = vadd.f32 0.0, %v1322
        %v1324 = vpop.f32.mrb[0].mxu0
        %v1325 = vpop.f32.mrb[0].mxu0
        %v1326 = vadd.f32 0.0, %v1325
        %v1327 = vpop.f32.mrb[0].mxu0
        %1328 = vmatprep.mubr.bf16.mxu0 0
        %1329 = vmatmul.mubr.bf16.gmra.mrb[0].mxu0 %v1270
        %v1330 = vpop.f32.mrb[0].mxu0
        %v1331 = vadd.f32 0.0, %v1330
        %v1332 = vpop.f32.mrb[0].mxu0
        %v1333 = vpop.f32.mrb[0].mxu0
        %v1334 = vadd.f32 0.0, %v1333
        %v1335 = vpop.f32.mrb[0].mxu0
        %1336 = vdwg.mxu0
        %v1337 = vmul.f32 %v775, %v1307
        %v1338 = vmul.f32 %v778, %v1310
        %v1339 = vmul.f32 %v783, %v1315
        %v1340 = vmul.f32 %v786, %v1318
        %v1341 = vmul.f32 %v791, %v1323
        %v1342 = vmul.f32 %v794, %v1326
        %v1343 = vmul.f32 %v799, %v1331
        %v1344 = vmul.f32 %v802, %v1334
        %v1345 = vld [vmem:[#allocation9] sm:$0xff]
        %v1346 = vld [vmem:[#allocation9 + $0x8] sm:$0xff]
        %v1347 = vld [vmem:[#allocation9 + $0x10] sm:$0xff]
        %v1348 = vld [vmem:[#allocation9 + $0x18] sm:$0xff]
        %v1349 = vld [vmem:[%s7] sm:$0xff]
        %v1350 = vld [vmem:[%s7 + $0x8] sm:$0xff]
        %v1351 = vld [vmem:[%s7 + $0x10] sm:$0xff]
        %v1352 = vld [vmem:[%s7 + $0x18] sm:$0xff]
        %v1353 = vmul.f32 %v1248, %v1345
        %v1354 = vmul.f32 %v1249, %v1346
        %v1355 = vmul.f32 %v1250, %v1347
        %v1356 = vmul.f32 %v1251, %v1348
        %v1357 = vmul.f32 %v1252, %v1345
        %v1358 = vmul.f32 %v1253, %v1346
        %v1359 = vmul.f32 %v1254, %v1347
        %v1360 = vmul.f32 %v1255, %v1348
        %1369 = vrot.lane.b32.xlu0 %v1248, 120
        %v1370 = vpop.permute.xlu0 %1369
        %1371 = vrot.lane.b32.xlu0 %v1249, 120
        %v1372 = vpop.permute.xlu0 %1371
        %1373 = vrot.lane.b32.xlu0 %v1250, 120
        %v1374 = vpop.permute.xlu0 %1373
        %1375 = vrot.lane.b32.xlu0 %v1251, 120
        %v1376 = vpop.permute.xlu0 %1375
        %1377 = vrot.lane.b32.xlu0 %v1252, 120
        %v1378 = vpop.permute.xlu0 %1377
        %1379 = vrot.lane.b32.xlu0 %v1253, 120
        %v1380 = vpop.permute.xlu0 %1379
        %1381 = vrot.lane.b32.xlu0 %v1254, 120
        %v1382 = vpop.permute.xlu0 %1381
        %1383 = vrot.lane.b32.xlu0 %v1255, 120
        %v1384 = vpop.permute.xlu0 %1383
        %1393 = vrot.lane.b32.xlu0 %v1248, 8
        %v1394 = vpop.permute.xlu0 %1393
        %1395 = vrot.lane.b32.xlu0 %v1249, 8
        %v1396 = vpop.permute.xlu0 %1395
        %1397 = vrot.lane.b32.xlu0 %v1250, 8
        %v1398 = vpop.permute.xlu0 %1397
        %1399 = vrot.lane.b32.xlu0 %v1251, 8
        %v1400 = vpop.permute.xlu0 %1399
        %1401 = vrot.lane.b32.xlu0 %v1252, 8
        %v1402 = vpop.permute.xlu0 %1401
        %1403 = vrot.lane.b32.xlu0 %v1253, 8
        %v1404 = vpop.permute.xlu0 %1403
        %1405 = vrot.lane.b32.xlu0 %v1254, 8
        %v1406 = vpop.permute.xlu0 %1405
        %1407 = vrot.lane.b32.xlu0 %v1255, 8
        %v1408 = vpop.permute.xlu0 %1407
        %vm1417 = vcmask 64512
        %v1418 = vsel %vm1417, %v1370, %v1394
        %v1419 = vsel %vm1417, %v1372, %v1396
        %v1420 = vsel %vm1417, %v1374, %v1398
        %v1421 = vsel %vm1417, %v1376, %v1400
        %v1422 = vsel %vm1417, %v1378, %v1402
        %v1423 = vsel %vm1417, %v1380, %v1404
        %v1424 = vsel %vm1417, %v1382, %v1406
        %v1425 = vsel %vm1417, %v1384, %v1408
        %vm1426 = vcmask 130048
        %v1427 = vsel %vm1426, %v1418, %v1370
        %v1428 = vsel %vm1426, %v1419, %v1372
        %v1429 = vsel %vm1426, %v1420, %v1374
        %v1430 = vsel %vm1426, %v1421, %v1376
        %v1431 = vsel %vm1426, %v1422, %v1378
        %v1432 = vsel %vm1426, %v1423, %v1380
        %v1433 = vsel %vm1426, %v1424, %v1382
        %v1434 = vsel %vm1426, %v1425, %v1384
        %vm1435 = vcmask 195584
        %v1436 = vsel %vm1435, %v1427, %v1394
        %v1437 = vsel %vm1435, %v1428, %v1396
        %v1438 = vsel %vm1435, %v1429, %v1398
        %v1439 = vsel %vm1435, %v1430, %v1400
        %v1440 = vsel %vm1435, %v1431, %v1402
        %v1441 = vsel %vm1435, %v1432, %v1404
        %v1442 = vsel %vm1435, %v1433, %v1406
        %v1443 = vsel %vm1435, %v1434, %v1408
        %vm1444 = vcmask 261120
        %v1445 = vsel %vm1444, %v1436, %v1370
        %v1446 = vsel %vm1444, %v1437, %v1372
        %v1447 = vsel %vm1444, %v1438, %v1374
        %v1448 = vsel %vm1444, %v1439, %v1376
        %v1449 = vsel %vm1444, %v1440, %v1378
        %v1450 = vsel %vm1444, %v1441, %v1380
        %v1451 = vsel %vm1444, %v1442, %v1382
        %v1452 = vsel %vm1444, %v1443, %v1384
        %vm1453 = vcmask 326656
        %v1454 = vsel %vm1453, %v1445, %v1394
        %v1455 = vsel %vm1453, %v1446, %v1396
        %v1456 = vsel %vm1453, %v1447, %v1398
        %v1457 = vsel %vm1453, %v1448, %v1400
        %v1458 = vsel %vm1453, %v1449, %v1402
        %v1459 = vsel %vm1453, %v1450, %v1404
        %v1460 = vsel %vm1453, %v1451, %v1406
        %v1461 = vsel %vm1453, %v1452, %v1408
        %vm1462 = vcmask 392192
        %v1463 = vsel %vm1462, %v1454, %v1370
        %v1464 = vsel %vm1462, %v1455, %v1372
        %v1465 = vsel %vm1462, %v1456, %v1374
        %v1466 = vsel %vm1462, %v1457, %v1376
        %v1467 = vsel %vm1462, %v1458, %v1378
        %v1468 = vsel %vm1462, %v1459, %v1380
        %v1469 = vsel %vm1462, %v1460, %v1382
        %v1470 = vsel %vm1462, %v1461, %v1384
        %vm1471 = vcmask 457728
        %v1472 = vsel %vm1471, %v1463, %v1394
        %v1473 = vsel %vm1471, %v1464, %v1396
        %v1474 = vsel %vm1471, %v1465, %v1398
        %v1475 = vsel %vm1471, %v1466, %v1400
        %v1476 = vsel %vm1471, %v1467, %v1402
        %v1477 = vsel %vm1471, %v1468, %v1404
        %v1478 = vsel %vm1471, %v1469, %v1406
        %v1479 = vsel %vm1471, %v1470, %v1408
        %v1480 = vmul.f32 %v1472, %v1349
        %v1481 = vmul.f32 %v1473, %v1350
        %v1482 = vmul.f32 %v1474, %v1351
        %v1483 = vmul.f32 %v1475, %v1352
        %v1484 = vmul.f32 %v1476, %v1349
        %v1485 = vmul.f32 %v1477, %v1350
        %v1486 = vmul.f32 %v1478, %v1351
        %v1487 = vmul.f32 %v1479, %v1352
        %v1488 = vadd.f32 %v1353, %v1480
        %v1489 = vadd.f32 %v1354, %v1481
        %v1490 = vadd.f32 %v1355, %v1482
        %v1491 = vadd.f32 %v1356, %v1483
        %v1492 = vadd.f32 %v1357, %v1484
        %v1493 = vadd.f32 %v1358, %v1485
        %v1494 = vadd.f32 %v1359, %v1486
        %v1495 = vadd.f32 %v1360, %v1487
        %v1496 = vmul.f32 %v567, 0.12
        %v1497 = vmul.f32 %v568, 0.12
        %v1498 = vmul.f32 %v569, 0.12
        %v1499 = vmul.f32 %v570, 0.12
        %v1500 = vmul.f32 %v571, 0.12
        %v1501 = vmul.f32 %v572, 0.12
        %v1502 = vmul.f32 %v573, 0.12
        %v1503 = vmul.f32 %v574, 0.12
        %1505 = vset.pattern.permute.xlu0 0
        %1506 = vperm.xlu0 %1505, %v1496
        %v1507 = vpop.permute.xlu0 %1506
        %1510 = vset.pattern.permute.xlu0 0
        %1511 = vperm.xlu0 %1510, %v1497
        %v1512 = vpop.permute.xlu0 %1511
        %1515 = vset.pattern.permute.xlu0 0
        %1516 = vperm.xlu0 %1515, %v1498
        %v1517 = vpop.permute.xlu0 %1516
        %1520 = vset.pattern.permute.xlu0 0
        %1521 = vperm.xlu0 %1520, %v1499
        %v1522 = vpop.permute.xlu0 %1521
        %1525 = vset.pattern.permute.xlu0 0
        %1526 = vperm.xlu0 %1525, %v1500
        %v1527 = vpop.permute.xlu0 %1526
        %1530 = vset.pattern.permute.xlu0 0
        %1531 = vperm.xlu0 %1530, %v1501
        %v1532 = vpop.permute.xlu0 %1531
        %1535 = vset.pattern.permute.xlu0 0
        %1536 = vperm.xlu0 %1535, %v1502
        %v1537 = vpop.permute.xlu0 %1536
        %1540 = vset.pattern.permute.xlu0 0
        %1541 = vperm.xlu0 %1540, %v1503
        %v1542 = vpop.permute.xlu0 %1541
        %v1544 = vmul.f32 %v1488, %v1507
        %v1545 = vmul.f32 %v1489, %v1512
        %v1546 = vmul.f32 %v1490, %v1517
        %v1547 = vmul.f32 %v1491, %v1522
        %v1548 = vmul.f32 %v1492, %v1527
        %v1549 = vmul.f32 %v1493, %v1532
        %v1550 = vmul.f32 %v1494, %v1537
        %v1551 = vmul.f32 %v1495, %v1542
        %v1552 = vpack.c.bf16 %v1545, %v1544
        %v1553 = vpack.c.bf16 %v1547, %v1546
        %v1554 = vpack.c.bf16 %v1549, %v1548
        %v1555 = vpack.c.bf16 %v1551, %v1550
        %v1556 = vmul.f32 %v1337, %v1345
        %v1557 = vmul.f32 %v1338, %v1346
        %v1558 = vmul.f32 %v1339, %v1347
        %v1559 = vmul.f32 %v1340, %v1348
        %v1560 = vmul.f32 %v1341, %v1345
        %v1561 = vmul.f32 %v1342, %v1346
        %v1562 = vmul.f32 %v1343, %v1347
        %v1563 = vmul.f32 %v1344, %v1348
        %1572 = vrot.lane.b32.xlu0 %v1337, 120
        %v1573 = vpop.permute.xlu0 %1572
        %1574 = vrot.lane.b32.xlu0 %v1338, 120
        %v1575 = vpop.permute.xlu0 %1574
        %1576 = vrot.lane.b32.xlu0 %v1339, 120
        %v1577 = vpop.permute.xlu0 %1576
        %1578 = vrot.lane.b32.xlu0 %v1340, 120
        %v1579 = vpop.permute.xlu0 %1578
        %1580 = vrot.lane.b32.xlu0 %v1341, 120
        %v1581 = vpop.permute.xlu0 %1580
        %1582 = vrot.lane.b32.xlu0 %v1342, 120
        %v1583 = vpop.permute.xlu0 %1582
        %1584 = vrot.lane.b32.xlu0 %v1343, 120
        %v1585 = vpop.permute.xlu0 %1584
        %1586 = vrot.lane.b32.xlu0 %v1344, 120
        %v1587 = vpop.permute.xlu0 %1586
        %1596 = vrot.lane.b32.xlu0 %v1337, 8
        %v1597 = vpop.permute.xlu0 %1596
        %1598 = vrot.lane.b32.xlu0 %v1338, 8
        %v1599 = vpop.permute.xlu0 %1598
        %1600 = vrot.lane.b32.xlu0 %v1339, 8
        %v1601 = vpop.permute.xlu0 %1600
        %1602 = vrot.lane.b32.xlu0 %v1340, 8
        %v1603 = vpop.permute.xlu0 %1602
        %1604 = vrot.lane.b32.xlu0 %v1341, 8
        %v1605 = vpop.permute.xlu0 %1604
        %1606 = vrot.lane.b32.xlu0 %v1342, 8
        %v1607 = vpop.permute.xlu0 %1606
        %1608 = vrot.lane.b32.xlu0 %v1343, 8
        %v1609 = vpop.permute.xlu0 %1608
        %1610 = vrot.lane.b32.xlu0 %v1344, 8
        %v1611 = vpop.permute.xlu0 %1610
        %v1620 = vsel %vm1417, %v1573, %v1597
        %v1621 = vsel %vm1417, %v1575, %v1599
        %v1622 = vsel %vm1417, %v1577, %v1601
        %v1623 = vsel %vm1417, %v1579, %v1603
        %v1624 = vsel %vm1417, %v1581, %v1605
        %v1625 = vsel %vm1417, %v1583, %v1607
        %v1626 = vsel %vm1417, %v1585, %v1609
        %v1627 = vsel %vm1417, %v1587, %v1611
        %v1628 = vsel %vm1426, %v1620, %v1573
        %v1629 = vsel %vm1426, %v1621, %v1575
        %v1630 = vsel %vm1426, %v1622, %v1577
        %v1631 = vsel %vm1426, %v1623, %v1579
        %v1632 = vsel %vm1426, %v1624, %v1581
        %v1633 = vsel %vm1426, %v1625, %v1583
        %v1634 = vsel %vm1426, %v1626, %v1585
        %v1635 = vsel %vm1426, %v1627, %v1587
        %v1636 = vsel %vm1435, %v1628, %v1597
        %v1637 = vsel %vm1435, %v1629, %v1599
        %v1638 = vsel %vm1435, %v1630, %v1601
        %v1639 = vsel %vm1435, %v1631, %v1603
        %v1640 = vsel %vm1435, %v1632, %v1605
        %v1641 = vsel %vm1435, %v1633, %v1607
        %v1642 = vsel %vm1435, %v1634, %v1609
        %v1643 = vsel %vm1435, %v1635, %v1611
        %v1644 = vsel %vm1444, %v1636, %v1573
        %v1645 = vsel %vm1444, %v1637, %v1575
        %v1646 = vsel %vm1444, %v1638, %v1577
        %v1647 = vsel %vm1444, %v1639, %v1579
        %v1648 = vsel %vm1444, %v1640, %v1581
        %v1649 = vsel %vm1444, %v1641, %v1583
        %v1650 = vsel %vm1444, %v1642, %v1585
        %v1651 = vsel %vm1444, %v1643, %v1587
        %v1652 = vsel %vm1453, %v1644, %v1597
        %v1653 = vsel %vm1453, %v1645, %v1599
        %v1654 = vsel %vm1453, %v1646, %v1601
        %v1655 = vsel %vm1453, %v1647, %v1603
        %v1656 = vsel %vm1453, %v1648, %v1605
        %v1657 = vsel %vm1453, %v1649, %v1607
        %v1658 = vsel %vm1453, %v1650, %v1609
        %v1659 = vsel %vm1453, %v1651, %v1611
        %v1660 = vsel %vm1462, %v1652, %v1573
        %v1661 = vsel %vm1462, %v1653, %v1575
        %v1662 = vsel %vm1462, %v1654, %v1577
        %v1663 = vsel %vm1462, %v1655, %v1579
        %v1664 = vsel %vm1462, %v1656, %v1581
        %v1665 = vsel %vm1462, %v1657, %v1583
        %v1666 = vsel %vm1462, %v1658, %v1585
        %v1667 = vsel %vm1462, %v1659, %v1587
        %v1668 = vsel %vm1471, %v1660, %v1597
        %v1669 = vsel %vm1471, %v1661, %v1599
        %v1670 = vsel %vm1471, %v1662, %v1601
        %v1671 = vsel %vm1471, %v1663, %v1603
        %v1672 = vsel %vm1471, %v1664, %v1605
        %v1673 = vsel %vm1471, %v1665, %v1607
        %v1674 = vsel %vm1471, %v1666, %v1609
        %v1675 = vsel %vm1471, %v1667, %v1611
        %v1676 = vmul.f32 %v1668, %v1349
        %v1677 = vmul.f32 %v1669, %v1350
        %v1678 = vmul.f32 %v1670, %v1351
        %v1679 = vmul.f32 %v1671, %v1352
        %v1680 = vmul.f32 %v1672, %v1349
        %v1681 = vmul.f32 %v1673, %v1350
        %v1682 = vmul.f32 %v1674, %v1351
        %v1683 = vmul.f32 %v1675, %v1352
        %v1684 = vadd.f32 %v1556, %v1676
        %v1685 = vadd.f32 %v1557, %v1677
        %v1686 = vadd.f32 %v1558, %v1678
        %v1687 = vadd.f32 %v1559, %v1679
        %v1688 = vadd.f32 %v1560, %v1680
        %v1689 = vadd.f32 %v1561, %v1681
        %v1690 = vadd.f32 %v1562, %v1682
        %v1691 = vadd.f32 %v1563, %v1683
        %1693 = vset.pattern.permute.xlu0 0
        %1694 = vperm.xlu0 %1693, %v567
        %v1695 = vpop.permute.xlu0 %1694
        %1698 = vset.pattern.permute.xlu0 0
        %1699 = vperm.xlu0 %1698, %v568
        %v1700 = vpop.permute.xlu0 %1699
        %1703 = vset.pattern.permute.xlu0 0
        %1704 = vperm.xlu0 %1703, %v569
        %v1705 = vpop.permute.xlu0 %1704
        %1708 = vset.pattern.permute.xlu0 0
        %1709 = vperm.xlu0 %1708, %v570
        %v1710 = vpop.permute.xlu0 %1709
        %1713 = vset.pattern.permute.xlu0 0
        %1714 = vperm.xlu0 %1713, %v571
        %v1715 = vpop.permute.xlu0 %1714
        %1718 = vset.pattern.permute.xlu0 0
        %1719 = vperm.xlu0 %1718, %v572
        %v1720 = vpop.permute.xlu0 %1719
        %1723 = vset.pattern.permute.xlu0 0
        %1724 = vperm.xlu0 %1723, %v573
        %v1725 = vpop.permute.xlu0 %1724
        %1728 = vset.pattern.permute.xlu0 0
        %1729 = vperm.xlu0 %1728, %v574
        %v1730 = vpop.permute.xlu0 %1729
        %v1732 = vmul.f32 %v1684, %v1695
        %v1733 = vmul.f32 %v1685, %v1700
        %v1734 = vmul.f32 %v1686, %v1705
        %v1735 = vmul.f32 %v1687, %v1710
        %v1736 = vmul.f32 %v1688, %v1715
        %v1737 = vmul.f32 %v1689, %v1720
        %v1738 = vmul.f32 %v1690, %v1725
        %v1739 = vmul.f32 %v1691, %v1730
        %v1740 = vstv %s575
        %v1741 = vmul.f32 %v1740, %v873
        %v1742 = vmul.f32 %v1740, %v876
        %v1743 = vmul.f32 %v1740, %v881
        %v1744 = vmul.f32 %v1740, %v884
        %v1745 = vmul.f32 %v1740, %v889
        %v1746 = vmul.f32 %v1740, %v892
        %v1747 = vmul.f32 %v1740, %v897
        %v1748 = vmul.f32 %v1740, %v900
        %v1749 = vstv %s576
        %v1750 = vmul.f32 %v1749, %v559
        %v1751 = vmul.f32 %v1749, %v560
        %v1752 = vmul.f32 %v1749, %v561
        %v1753 = vmul.f32 %v1749, %v562
        %v1754 = vmul.f32 %v1749, %v563
        %v1755 = vmul.f32 %v1749, %v564
        %v1756 = vmul.f32 %v1749, %v565
        %v1757 = vmul.f32 %v1749, %v566
        %v1758 = vadd.f32 %v1741, %v1750
        %v1759 = vadd.f32 %v1742, %v1751
        %v1760 = vadd.f32 %v1743, %v1752
        %v1761 = vadd.f32 %v1744, %v1753
        %v1762 = vadd.f32 %v1745, %v1754
        %v1763 = vadd.f32 %v1746, %v1755
        %v1764 = vadd.f32 %v1747, %v1756
        %v1765 = vadd.f32 %v1748, %v1757
        %v1766 = vmul.f32 %v1758, %v1695
        %v1767 = vmul.f32 %v1759, %v1700
        %v1768 = vmul.f32 %v1760, %v1705
        %v1769 = vmul.f32 %v1761, %v1710
        %v1770 = vmul.f32 %v1762, %v1715
        %v1771 = vmul.f32 %v1763, %v1720
        %v1772 = vmul.f32 %v1764, %v1725
        %v1773 = vmul.f32 %v1765, %v1730
        %v1774 = vpack.c.bf16 %v1767, %v1766
        %v1775 = vpack.c.bf16 %v1769, %v1768
        %v1776 = vpack.c.bf16 %v1771, %v1770
        %v1777 = vpack.c.bf16 %v1773, %v1772
        %v1778 = vlaneseq
        %v1779 = vshrl.u32 %v1778, 7
        %v1780 = vadd.s32 %v1779, 8
        %v1781 = vadd.s32 %v1779, 16
        %v1782 = vadd.s32 %v1779, 24
        %v1783 = vlaneseq
        %v1784 = vand.u32 %v1783, 127
        %vm1785 = vcmp.le.s32.totalorder %v1784, %v1779
        %vm1786 = vcmp.le.s32.totalorder %v1784, %v1780
        %vm1787 = vcmp.le.s32.totalorder %v1784, %v1781
        %vm1788 = vcmp.le.s32.totalorder %v1784, %v1782
        %v1789 = vld [vmem:[%s456] sm:$0x1]
        %vm1790 = vcmp.gt.f32.partialorder %v1789, 0.0
        %v1791 = vsel %vm1790, 1, 0
        %v1792 = vlaneseq
        %v1793 = vshrl.u32 %v1792, 7
        %v1794 = vsub.s32 0, %v1793
        %v1795 = vrot.slane %v1791, %v1794
        %vm1796 = vcmp.eq.s32.totalorder %v1795, 1
        %vm1797 = vmand %vm1785, %vm1796
        %vm1798 = vmand %vm1786, %vm1796
        %vm1799 = vmand %vm1787, %vm1796
        %vm1800 = vmand %vm1788, %vm1796
        %v1801 = vsel %vm1797, 0.0, -1e+30
        %v1802 = vsel %vm1798, 0.0, -1e+30
        %v1803 = vsel %vm1799, 0.0, -1e+30
        %v1804 = vsel %vm1800, 0.0, -1e+30
        %1805 = vxpose.xlu0.b32.start [1/16] %v1732, 128
        %1806 = vxpose.xlu0.b32.cont [2/16] %v1733, 128
        %1807 = vxpose.xlu0.b32.cont [3/16] %v1734, 128
        %1808 = vxpose.xlu0.b32.cont [4/16] %v1735, 128
        %1809 = vxpose.xlu0.b32.cont [5/16] 0.0, 128
        %1810 = vxpose.xlu0.b32.cont [6/16] 0.0, 128
        %1811 = vxpose.xlu0.b32.cont [7/16] 0.0, 128
        %1812 = vxpose.xlu0.b32.cont [8/16] 0.0, 128
        %1813 = vxpose.xlu0.b32.cont [9/16] 0.0, 128
        %1814 = vxpose.xlu0.b32.cont [10/16] 0.0, 128
        %1815 = vxpose.xlu0.b32.cont [11/16] 0.0, 128
        %1816 = vxpose.xlu0.b32.cont [12/16] 0.0, 128
        %1817 = vxpose.xlu0.b32.cont [13/16] 0.0, 128
        %1818 = vxpose.xlu0.b32.cont [14/16] 0.0, 128
        %1819 = vxpose.xlu0.b32.cont [15/16] 0.0, 128
        %1820 = vxpose.xlu0.b32.end [16/16] 0.0, 128
        %v1821 = vpop.trf.xlu0
        %v1822 = vpop.trf.xlu0
        %v1823 = vpop.trf.xlu0
        %v1824 = vpop.trf.xlu0
        %v1825 = vpop.trf.xlu0
        %v1826 = vpop.trf.xlu0
        %v1827 = vpop.trf.xlu0
        %v1828 = vpop.trf.xlu0
        %v1829 = vpop.trf.xlu0
        %v1830 = vpop.trf.xlu0
        %v1831 = vpop.trf.xlu0
        %v1832 = vpop.trf.xlu0
        %v1833 = vpop.trf.xlu0
        %v1834 = vpop.trf.xlu0
        %v1835 = vpop.trf.xlu0
        %v1836 = vpop.trf.xlu0
        %v1837 = vpack.c.bf16 %v1822, %v1821
        %v1838 = vpack.c.bf16 %v1824, %v1823
        %v1839 = vpack.c.bf16 %v1826, %v1825
        %v1840 = vpack.c.bf16 %v1828, %v1827
        %v1842 = vsel %vm1426, %v1552, 0
        %v1845 = vsel %vm1426, %v1553, 0
        %1847 = vmatprep.subr.bf16.mxu0 0
        %1848 = vmatpush1.bf16.msra.mxu0 %v1837
        %1849 = vmatprep.subr.bf16.mxu0 0
        %1850 = vmatpush1.bf16.msra.mxu0 0
        %1851 = vmatprep.subr.bf16.mxu0 0
        %1852 = vmatpush1.bf16.msra.mxu0 0
        %1853 = vmatprep.subr.bf16.mxu0 0
        %1854 = vmatpush1.bf16.msra.mxu0 0
        %1855 = vmatprep.subr.bf16.mxu0 0
        %1856 = vmatpush1.bf16.msra.mxu0 0
        %1857 = vmatprep.subr.bf16.mxu0 0
        %1858 = vmatpush1.bf16.msra.mxu0 0
        %1859 = vmatprep.subr.bf16.mxu0 0
        %1860 = vmatpush1.bf16.msra.mxu0 0
        %1861 = vmatprep.subr.bf16.mxu0 0
        %1862 = vmatpush1.bf16.msra.mxu0 0
        %1863 = vmatprep.subr.bf16.mxu0 0
        %1864 = vmatpush1.bf16.msra.mxu0 0
        %1865 = vmatprep.subr.bf16.mxu0 0
        %1866 = vmatpush1.bf16.msra.mxu0 0
        %1867 = vmatprep.subr.bf16.mxu0 0
        %1868 = vmatpush1.bf16.msra.mxu0 0
        %1869 = vmatprep.subr.bf16.mxu0 0
        %1870 = vmatpush1.bf16.msra.mxu0 0
        %1871 = vmatprep.subr.bf16.mxu0 0
        %1872 = vmatpush1.bf16.msra.mxu0 0
        %1873 = vmatprep.subr.bf16.mxu0 0
        %1874 = vmatpush1.bf16.msra.mxu0 0
        %1875 = vmatprep.subr.bf16.mxu0 0
        %1876 = vmatpush1.bf16.msra.mxu0 0
        %1877 = vmatprep.subr.bf16.mxu0 0
        %1878 = vmatpush1.bf16.msra.mxu0 0
        %1879 = vmatprep.mubr.bf16.mxu0 0
        %1880 = vmatmul.mubr.bf16.gmra.mrb[0].mxu0 %v1842
        %v1881 = vpop.f32.mrb[0].mxu0
        %v1882 = vadd.f32 %v1801, %v1881
        %v1883 = vpop.f32.mrb[0].mxu0
        %v1884 = vpop.f32.mrb[0].mxu0
        %v1885 = vadd.f32 %v1802, %v1884
        %v1886 = vpop.f32.mrb[0].mxu0
        %1887 = vmatprep.mubr.bf16.mxu0 0
        %1888 = vmatmul.mubr.bf16.gmra.mrb[0].mxu0 %v1845
        %v1889 = vpop.f32.mrb[0].mxu0
        %v1890 = vadd.f32 %v1803, %v1889
        %v1891 = vpop.f32.mrb[0].mxu0
        %v1892 = vpop.f32.mrb[0].mxu0
        %v1893 = vadd.f32 %v1804, %v1892
        %v1894 = vpop.f32.mrb[0].mxu0
        %1895 = vdwg.mxu0
        %v1896 = vsel %vm1444, %v1882, -inf
        %1897 = vmax.xlane.f32.xlu0 %v1896
        %v1898 = vpop.xlane.xlu0 %1897
        %v1899 = vsel %vm1444, %v1885, -inf
        %1900 = vmax.xlane.f32.xlu0 %v1899
        %v1901 = vpop.xlane.xlu0 %1900
        %v1902 = vsel %vm1444, %v1890, -inf
        %1903 = vmax.xlane.f32.xlu0 %v1902
        %v1904 = vpop.xlane.xlu0 %1903
        %v1905 = vsel %vm1444, %v1893, -inf
        %1906 = vmax.xlane.f32.xlu0 %v1905
        %v1907 = vpop.xlane.xlu0 %1906
        %v1908 = vsub.f32 %v1882, %v1898
        %v1909 = vsub.f32 %v1885, %v1901
        %v1910 = vsub.f32 %v1890, %v1904
        %v1911 = vsub.f32 %v1893, %v1907
        %v1912 = vmul.f32 %v1908, 1.442695
        %v1913 = vpow.pop %v1912
        %v1914 = vmul.f32 %v1909, 1.442695
        %v1915 = vpow.pop %v1914
        %v1916 = vmul.f32 %v1910, 1.442695
        %v1917 = vpow.pop %v1916
        %v1918 = vmul.f32 %v1911, 1.442695
        %v1919 = vpow.pop %v1918
        %v1920 = vsel %vm1444, %v1913, 0.0
        %1921 = vadd.xlane.f32.xlu0 %v1920
        %v1922 = vpop.xlane.xlu0 %1921
        %v1923 = vsel %vm1444, %v1915, 0.0
        %1924 = vadd.xlane.f32.xlu0 %v1923
        %v1925 = vpop.xlane.xlu0 %1924
        %v1926 = vsel %vm1444, %v1917, 0.0
        %1927 = vadd.xlane.f32.xlu0 %v1926
        %v1928 = vpop.xlane.xlu0 %1927
        %v1929 = vsel %vm1444, %v1919, 0.0
        %1930 = vadd.xlane.f32.xlu0 %v1929
        %v1931 = vpop.xlane.xlu0 %1930
        %v1932 = vrcp.pop %v1922
        %v1933 = vrcp.pop %v1925
        %v1934 = vrcp.pop %v1928
        %v1935 = vrcp.pop %v1931
        %v1936 = vmul.f32 %v1913, %v1932
        %v1937 = vmul.f32 %v1915, %v1933
        %v1938 = vmul.f32 %v1917, %v1934
        %v1939 = vmul.f32 %v1919, %v1935
        %v1940 = vpack.c.bf16 %v1937, %v1936
        %v1941 = vpack.c.bf16 %v1939, %v1938
        %v1943 = vsel %vm1444, %v1940, 0
        %v1946 = vsel %vm1444, %v1941, 0
        %1948 = vmatprep.subr.bf16.mxu0 0
        %1949 = vmatpush1.bf16.msra.mxu0 %v1774
        %1950 = vmatprep.subr.bf16.mxu0 0
        %1951 = vmatpush1.bf16.msra.mxu0 %v1775
        %1952 = vmatprep.subr.bf16.mxu0 0
        %1953 = vmatpush1.bf16.msra.mxu0 0
        %1954 = vmatprep.subr.bf16.mxu0 0
        %1955 = vmatpush1.bf16.msra.mxu0 0
        %1956 = vmatprep.subr.bf16.mxu0 0
        %1957 = vmatpush1.bf16.msra.mxu0 0
        %1958 = vmatprep.subr.bf16.mxu0 0
        %1959 = vmatpush1.bf16.msra.mxu0 0
        %1960 = vmatprep.subr.bf16.mxu0 0
        %1961 = vmatpush1.bf16.msra.mxu0 0
        %1962 = vmatprep.subr.bf16.mxu0 0
        %1963 = vmatpush1.bf16.msra.mxu0 0
        %1964 = vmatprep.subr.bf16.mxu0 0
        %1965 = vmatpush1.bf16.msra.mxu0 0
        %1966 = vmatprep.subr.bf16.mxu0 0
        %1967 = vmatpush1.bf16.msra.mxu0 0
        %1968 = vmatprep.subr.bf16.mxu0 0
        %1969 = vmatpush1.bf16.msra.mxu0 0
        %1970 = vmatprep.subr.bf16.mxu0 0
        %1971 = vmatpush1.bf16.msra.mxu0 0
        %1972 = vmatprep.subr.bf16.mxu0 0
        %1973 = vmatpush1.bf16.msra.mxu0 0
        %1974 = vmatprep.subr.bf16.mxu0 0
        %1975 = vmatpush1.bf16.msra.mxu0 0
        %1976 = vmatprep.subr.bf16.mxu0 0
        %1977 = vmatpush1.bf16.msra.mxu0 0
        %1978 = vmatprep.subr.bf16.mxu0 0
        %1979 = vmatpush1.bf16.msra.mxu0 0
        %1980 = vmatprep.mubr.bf16.mxu0 0
        %1981 = vmatmul.mubr.bf16.gmra.mrb[0].mxu0 %v1943
        %v1982 = vpop.f32.mrb[0].mxu0
        %v1983 = vadd.f32 0.0, %v1982
        %v1984 = vpop.f32.mrb[0].mxu0
        %v1985 = vpop.f32.mrb[0].mxu0
        %v1986 = vadd.f32 0.0, %v1985
        %v1987 = vpop.f32.mrb[0].mxu0
        %1988 = vmatprep.mubr.bf16.mxu0 0
        %1989 = vmatmul.mubr.bf16.gmra.mrb[0].mxu0 %v1946
        %v1990 = vpop.f32.mrb[0].mxu0
        %v1991 = vadd.f32 0.0, %v1990
        %v1992 = vpop.f32.mrb[0].mxu0
        %v1993 = vpop.f32.mrb[0].mxu0
        %v1994 = vadd.f32 0.0, %v1993
        %v1995 = vpop.f32.mrb[0].mxu0
        %1996 = vdwg.mxu0
        %v1997 = vpack.c.bf16 %v1986, %v1983
        %v1998 = vpack.c.bf16 %v1994, %v1991
        %v1999 = vld [vmem:[#allocation8] sm:$0xf]
        %v2000 = vld [vmem:[#allocation8 + $0x4] sm:$0xf]
        %2003 = vrot.lane.b32.xlu0 %v1552, 112
        %v2004 = vpop.permute.xlu0 %2003
        %2005 = vrot.lane.b32.xlu0 %v1553, 112
        %v2006 = vpop.permute.xlu0 %2005
        %v2008 = vsel %vm1426, %v2004, 0
        %v2011 = vsel %vm1426, %v2006, 0
        %2013 = vmatprep.subr.bf16.mxu0 0
        %2014 = vmatpush1.bf16.msra.mxu0 %v1838
        %2015 = vmatprep.subr.bf16.mxu0 0
        %2016 = vmatpush1.bf16.msra.mxu0 0
        %2017 = vmatprep.subr.bf16.mxu0 0
        %2018 = vmatpush1.bf16.msra.mxu0 0
        %2019 = vmatprep.subr.bf16.mxu0 0
        %2020 = vmatpush1.bf16.msra.mxu0 0
        %2021 = vmatprep.subr.bf16.mxu0 0
        %2022 = vmatpush1.bf16.msra.mxu0 0
        %2023 = vmatprep.subr.bf16.mxu0 0
        %2024 = vmatpush1.bf16.msra.mxu0 0
        %2025 = vmatprep.subr.bf16.mxu0 0
        %2026 = vmatpush1.bf16.msra.mxu0 0
        %2027 = vmatprep.subr.bf16.mxu0 0
        %2028 = vmatpush1.bf16.msra.mxu0 0
        %2029 = vmatprep.subr.bf16.mxu0 0
        %2030 = vmatpush1.bf16.msra.mxu0 0
        %2031 = vmatprep.subr.bf16.mxu0 0
        %2032 = vmatpush1.bf16.msra.mxu0 0
        %2033 = vmatprep.subr.bf16.mxu0 0
        %2034 = vmatpush1.bf16.msra.mxu0 0
        %2035 = vmatprep.subr.bf16.mxu0 0
        %2036 = vmatpush1.bf16.msra.mxu0 0
        %2037 = vmatprep.subr.bf16.mxu0 0
        %2038 = vmatpush1.bf16.msra.mxu0 0
        %2039 = vmatprep.subr.bf16.mxu0 0
        %2040 = vmatpush1.bf16.msra.mxu0 0
        %2041 = vmatprep.subr.bf16.mxu0 0
        %2042 = vmatpush1.bf16.msra.mxu0 0
        %2043 = vmatprep.subr.bf16.mxu0 0
        %2044 = vmatpush1.bf16.msra.mxu0 0
        %2045 = vmatprep.mubr.bf16.mxu0 0
        %2046 = vmatmul.mubr.bf16.gmra.mrb[0].mxu0 %v2008
        %v2047 = vpop.f32.mrb[0].mxu0
        %v2048 = vadd.f32 %v1801, %v2047
        %v2049 = vpop.f32.mrb[0].mxu0
        %v2050 = vpop.f32.mrb[0].mxu0
        %v2051 = vadd.f32 %v1802, %v2050
        %v2052 = vpop.f32.mrb[0].mxu0
        %2053 = vmatprep.mubr.bf16.mxu0 0
        %2054 = vmatmul.mubr.bf16.gmra.mrb[0].mxu0 %v2011
        %v2055 = vpop.f32.mrb[0].mxu0
        %v2056 = vadd.f32 %v1803, %v2055
        %v2057 = vpop.f32.mrb[0].mxu0
        %v2058 = vpop.f32.mrb[0].mxu0
        %v2059 = vadd.f32 %v1804, %v2058
        %v2060 = vpop.f32.mrb[0].mxu0
        %2061 = vdwg.mxu0
        %v2062 = vsel %vm1444, %v2048, -inf
        %2063 = vmax.xlane.f32.xlu0 %v2062
        %v2064 = vpop.xlane.xlu0 %2063
        %v2065 = vsel %vm1444, %v2051, -inf
        %2066 = vmax.xlane.f32.xlu0 %v2065
        %v2067 = vpop.xlane.xlu0 %2066
        %v2068 = vsel %vm1444, %v2056, -inf
        %2069 = vmax.xlane.f32.xlu0 %v2068
        %v2070 = vpop.xlane.xlu0 %2069
        %v2071 = vsel %vm1444, %v2059, -inf
        %2072 = vmax.xlane.f32.xlu0 %v2071
        %v2073 = vpop.xlane.xlu0 %2072
        %v2074 = vsub.f32 %v2048, %v2064
        %v2075 = vsub.f32 %v2051, %v2067
        %v2076 = vsub.f32 %v2056, %v2070
        %v2077 = vsub.f32 %v2059, %v2073
        %v2078 = vmul.f32 %v2074, 1.442695
        %v2079 = vpow.pop %v2078
        %v2080 = vmul.f32 %v2075, 1.442695
        %v2081 = vpow.pop %v2080
        %v2082 = vmul.f32 %v2076, 1.442695
        %v2083 = vpow.pop %v2082
        %v2084 = vmul.f32 %v2077, 1.442695
        %v2085 = vpow.pop %v2084
        %v2086 = vsel %vm1444, %v2079, 0.0
        %2087 = vadd.xlane.f32.xlu0 %v2086
        %v2088 = vpop.xlane.xlu0 %2087
        %v2089 = vsel %vm1444, %v2081, 0.0
        %2090 = vadd.xlane.f32.xlu0 %v2089
        %v2091 = vpop.xlane.xlu0 %2090
        %v2092 = vsel %vm1444, %v2083, 0.0
        %2093 = vadd.xlane.f32.xlu0 %v2092
        %v2094 = vpop.xlane.xlu0 %2093
        %v2095 = vsel %vm1444, %v2085, 0.0
        %2096 = vadd.xlane.f32.xlu0 %v2095
        %v2097 = vpop.xlane.xlu0 %2096
        %v2098 = vrcp.pop %v2088
        %v2099 = vrcp.pop %v2091
        %v2100 = vrcp.pop %v2094
        %v2101 = vrcp.pop %v2097
        %v2102 = vmul.f32 %v2079, %v2098
        %v2103 = vmul.f32 %v2081, %v2099
        %v2104 = vmul.f32 %v2083, %v2100
        %v2105 = vmul.f32 %v2085, %v2101
        %v2106 = vpack.c.bf16 %v2103, %v2102
        %v2107 = vpack.c.bf16 %v2105, %v2104
        %2110 = vrot.lane.b32.xlu0 %v1774, 112
        %v2111 = vpop.permute.xlu0 %2110
        %2112 = vrot.lane.b32.xlu0 %v1775, 112
        %v2113 = vpop.permute.xlu0 %2112
        %v2117 = vsel %vm1444, %v2106, 0
        %v2120 = vsel %vm1444, %v2107, 0
        %2122 = vmatprep.subr.bf16.mxu0 0
        %2123 = vmatpush1.bf16.msra.mxu0 %v2111
        %2124 = vmatprep.subr.bf16.mxu0 0
        %2125 = vmatpush1.bf16.msra.mxu0 %v2113
        %2126 = vmatprep.subr.bf16.mxu0 0
        %2127 = vmatpush1.bf16.msra.mxu0 0
        %2128 = vmatprep.subr.bf16.mxu0 0
        %2129 = vmatpush1.bf16.msra.mxu0 0
        %2130 = vmatprep.subr.bf16.mxu0 0
        %2131 = vmatpush1.bf16.msra.mxu0 0
        %2132 = vmatprep.subr.bf16.mxu0 0
        %2133 = vmatpush1.bf16.msra.mxu0 0
        %2134 = vmatprep.subr.bf16.mxu0 0
        %2135 = vmatpush1.bf16.msra.mxu0 0
        %2136 = vmatprep.subr.bf16.mxu0 0
        %2137 = vmatpush1.bf16.msra.mxu0 0
        %2138 = vmatprep.subr.bf16.mxu0 0
        %2139 = vmatpush1.bf16.msra.mxu0 0
        %2140 = vmatprep.subr.bf16.mxu0 0
        %2141 = vmatpush1.bf16.msra.mxu0 0
        %2142 = vmatprep.subr.bf16.mxu0 0
        %2143 = vmatpush1.bf16.msra.mxu0 0
        %2144 = vmatprep.subr.bf16.mxu0 0
        %2145 = vmatpush1.bf16.msra.mxu0 0
        %2146 = vmatprep.subr.bf16.mxu0 0
        %2147 = vmatpush1.bf16.msra.mxu0 0
        %2148 = vmatprep.subr.bf16.mxu0 0
        %2149 = vmatpush1.bf16.msra.mxu0 0
        %2150 = vmatprep.subr.bf16.mxu0 0
        %2151 = vmatpush1.bf16.msra.mxu0 0
        %2152 = vmatprep.subr.bf16.mxu0 0
        %2153 = vmatpush1.bf16.msra.mxu0 0
        %2154 = vmatprep.mubr.bf16.mxu0 0
        %2155 = vmatmul.mubr.bf16.gmra.mrb[0].mxu0 %v2117
        %v2156 = vpop.f32.mrb[0].mxu0
        %v2157 = vadd.f32 0.0, %v2156
        %v2158 = vpop.f32.mrb[0].mxu0
        %v2159 = vpop.f32.mrb[0].mxu0
        %v2160 = vadd.f32 0.0, %v2159
        %v2161 = vpop.f32.mrb[0].mxu0
        %2162 = vmatprep.mubr.bf16.mxu0 0
        %2163 = vmatmul.mubr.bf16.gmra.mrb[0].mxu0 %v2120
        %v2164 = vpop.f32.mrb[0].mxu0
        %v2165 = vadd.f32 0.0, %v2164
        %v2166 = vpop.f32.mrb[0].mxu0
        %v2167 = vpop.f32.mrb[0].mxu0
        %v2168 = vadd.f32 0.0, %v2167
        %v2169 = vpop.f32.mrb[0].mxu0
        %2170 = vdwg.mxu0
        %v2171 = vpack.c.bf16 %v2160, %v2157
        %v2172 = vpack.c.bf16 %v2168, %v2165
        %v2173 = vld [vmem:[#allocation8 + $0x8] sm:$0xf]
        %v2174 = vld [vmem:[#allocation8 + $0xc] sm:$0xf]
        %v2177 = vunpack.c.l.b16 %v2173
        %v2178 = vunpack.c.l.b16 %v2174
        %v2179 = vpack.c.b16 %v2178, %v2177
        %v2182 = vsel %vm1426, %v2171, 0
        %v2185 = vsel %vm1426, %v2172, 0
        %2187 = vmatprep.subr.bf16.mxu0 0
        %2188 = vmatpush1.bf16.msra.mxu0 %v2179
        %2189 = vmatprep.subr.bf16.mxu0 0
        %2190 = vmatpush1.bf16.msra.mxu0 0
        %2191 = vmatprep.subr.bf16.mxu0 0
        %2192 = vmatpush1.bf16.msra.mxu0 0
        %2193 = vmatprep.subr.bf16.mxu0 0
        %2194 = vmatpush1.bf16.msra.mxu0 0
        %2195 = vmatprep.subr.bf16.mxu0 0
        %2196 = vmatpush1.bf16.msra.mxu0 0
        %2197 = vmatprep.subr.bf16.mxu0 0
        %2198 = vmatpush1.bf16.msra.mxu0 0
        %2199 = vmatprep.subr.bf16.mxu0 0
        %2200 = vmatpush1.bf16.msra.mxu0 0
        %2201 = vmatprep.subr.bf16.mxu0 0
        %2202 = vmatpush1.bf16.msra.mxu0 0
        %2203 = vmatprep.subr.bf16.mxu0 0
        %2204 = vmatpush1.bf16.msra.mxu0 0
        %2205 = vmatprep.subr.bf16.mxu0 0
        %2206 = vmatpush1.bf16.msra.mxu0 0
        %2207 = vmatprep.subr.bf16.mxu0 0
        %2208 = vmatpush1.bf16.msra.mxu0 0
        %2209 = vmatprep.subr.bf16.mxu0 0
        %2210 = vmatpush1.bf16.msra.mxu0 0
        %2211 = vmatprep.subr.bf16.mxu0 0
        %2212 = vmatpush1.bf16.msra.mxu0 0
        %2213 = vmatprep.subr.bf16.mxu0 0
        %2214 = vmatpush1.bf16.msra.mxu0 0
        %2215 = vmatprep.subr.bf16.mxu0 0
        %2216 = vmatpush1.bf16.msra.mxu0 0
        %2217 = vmatprep.subr.bf16.mxu0 0
        %2218 = vmatpush1.bf16.msra.mxu0 0
        %2219 = vmatprep.mubr.bf16.mxu0 0
        %2220 = vmatmul.mubr.bf16.gmra.mrb[0].mxu0 %v2182
        %v2221 = vpop.f32.mrb[0].mxu0
        %v2222 = vadd.f32 0.0, %v2221
        %v2223 = vpop.f32.mrb[0].mxu0
        %v2224 = vpop.f32.mrb[0].mxu0
        %v2225 = vadd.f32 0.0, %v2224
        %v2226 = vpop.f32.mrb[0].mxu0
        %2227 = vmatprep.mubr.bf16.mxu0 0
        %2228 = vmatmul.mubr.bf16.gmra.mrb[0].mxu0 %v2185
        %v2229 = vpop.f32.mrb[0].mxu0
        %v2230 = vadd.f32 0.0, %v2229
        %v2231 = vpop.f32.mrb[0].mxu0
        %v2232 = vpop.f32.mrb[0].mxu0
        %v2233 = vadd.f32 0.0, %v2232
        %v2234 = vpop.f32.mrb[0].mxu0
        %2235 = vdwg.mxu0
        %v2238 = vunpack.c.l.b16 %v1999
        %v2239 = vunpack.c.l.b16 %v2000
        %v2240 = vpack.c.b16 %v2239, %v2238
        %v2243 = vsel %vm1426, %v1997, 0
        %v2246 = vsel %vm1426, %v1998, 0
        %2248 = vmatprep.subr.bf16.mxu0 0
        %2249 = vmatpush1.bf16.msra.mxu0 %v2240
        %2250 = vmatprep.subr.bf16.mxu0 0
        %2251 = vmatpush1.bf16.msra.mxu0 0
        %2252 = vmatprep.subr.bf16.mxu0 0
        %2253 = vmatpush1.bf16.msra.mxu0 0
        %2254 = vmatprep.subr.bf16.mxu0 0
        %2255 = vmatpush1.bf16.msra.mxu0 0
        %2256 = vmatprep.subr.bf16.mxu0 0
        %2257 = vmatpush1.bf16.msra.mxu0 0
        %2258 = vmatprep.subr.bf16.mxu0 0
        %2259 = vmatpush1.bf16.msra.mxu0 0
        %2260 = vmatprep.subr.bf16.mxu0 0
        %2261 = vmatpush1.bf16.msra.mxu0 0
        %2262 = vmatprep.subr.bf16.mxu0 0
        %2263 = vmatpush1.bf16.msra.mxu0 0
        %2264 = vmatprep.subr.bf16.mxu0 0
        %2265 = vmatpush1.bf16.msra.mxu0 0
        %2266 = vmatprep.subr.bf16.mxu0 0
        %2267 = vmatpush1.bf16.msra.mxu0 0
        %2268 = vmatprep.subr.bf16.mxu0 0
        %2269 = vmatpush1.bf16.msra.mxu0 0
        %2270 = vmatprep.subr.bf16.mxu0 0
        %2271 = vmatpush1.bf16.msra.mxu0 0
        %2272 = vmatprep.subr.bf16.mxu0 0
        %2273 = vmatpush1.bf16.msra.mxu0 0
        %2274 = vmatprep.subr.bf16.mxu0 0
        %2275 = vmatpush1.bf16.msra.mxu0 0
        %2276 = vmatprep.subr.bf16.mxu0 0
        %2277 = vmatpush1.bf16.msra.mxu0 0
        %2278 = vmatprep.subr.bf16.mxu0 0
        %2279 = vmatpush1.bf16.msra.mxu0 0
        %2280 = vmatprep.mubr.bf16.mxu0 0
        %2281 = vmatmul.mubr.bf16.gmra.mrb[0].mxu0 %v2243
        %v2282 = vpop.f32.mrb[0].mxu0
        %v2283 = vadd.f32 %v2222, %v2282
        %v2284 = vpop.f32.mrb[0].mxu0
        %v2285 = vpop.f32.mrb[0].mxu0
        %v2286 = vadd.f32 %v2225, %v2285
        %v2287 = vpop.f32.mrb[0].mxu0
        %2288 = vmatprep.mubr.bf16.mxu0 0
        %2289 = vmatmul.mubr.bf16.gmra.mrb[0].mxu0 %v2246
        %v2290 = vpop.f32.mrb[0].mxu0
        %v2291 = vadd.f32 %v2230, %v2290
        %v2292 = vpop.f32.mrb[0].mxu0
        %v2293 = vpop.f32.mrb[0].mxu0
        %v2294 = vadd.f32 %v2233, %v2293
        %v2295 = vpop.f32.mrb[0].mxu0
        %2296 = vdwg.mxu0
        %2297 = vrot.lane.b32.xlu0 %v1552, 96
        %v2298 = vpop.permute.xlu0 %2297
        %2299 = vrot.lane.b32.xlu0 %v1553, 96
        %v2300 = vpop.permute.xlu0 %2299
        %v2302 = vsel %vm1426, %v2298, 0
        %v2305 = vsel %vm1426, %v2300, 0
        %2307 = vmatprep.subr.bf16.mxu0 0
        %2308 = vmatpush1.bf16.msra.mxu0 %v1839
        %2309 = vmatprep.subr.bf16.mxu0 0
        %2310 = vmatpush1.bf16.msra.mxu0 0
        %2311 = vmatprep.subr.bf16.mxu0 0
        %2312 = vmatpush1.bf16.msra.mxu0 0
        %2313 = vmatprep.subr.bf16.mxu0 0
        %2314 = vmatpush1.bf16.msra.mxu0 0
        %2315 = vmatprep.subr.bf16.mxu0 0
        %2316 = vmatpush1.bf16.msra.mxu0 0
        %2317 = vmatprep.subr.bf16.mxu0 0
        %2318 = vmatpush1.bf16.msra.mxu0 0
        %2319 = vmatprep.subr.bf16.mxu0 0
        %2320 = vmatpush1.bf16.msra.mxu0 0
        %2321 = vmatprep.subr.bf16.mxu0 0
        %2322 = vmatpush1.bf16.msra.mxu0 0
        %2323 = vmatprep.subr.bf16.mxu0 0
        %2324 = vmatpush1.bf16.msra.mxu0 0
        %2325 = vmatprep.subr.bf16.mxu0 0
        %2326 = vmatpush1.bf16.msra.mxu0 0
        %2327 = vmatprep.subr.bf16.mxu0 0
        %2328 = vmatpush1.bf16.msra.mxu0 0
        %2329 = vmatprep.subr.bf16.mxu0 0
        %2330 = vmatpush1.bf16.msra.mxu0 0
        %2331 = vmatprep.subr.bf16.mxu0 0
        %2332 = vmatpush1.bf16.msra.mxu0 0
        %2333 = vmatprep.subr.bf16.mxu0 0
        %2334 = vmatpush1.bf16.msra.mxu0 0
        %2335 = vmatprep.subr.bf16.mxu0 0
        %2336 = vmatpush1.bf16.msra.mxu0 0
        %2337 = vmatprep.subr.bf16.mxu0 0
        %2338 = vmatpush1.bf16.msra.mxu0 0
        %2339 = vmatprep.mubr.bf16.mxu0 0
        %2340 = vmatmul.mubr.bf16.gmra.mrb[0].mxu0 %v2302
        %v2341 = vpop.f32.mrb[0].mxu0
        %v2342 = vadd.f32 %v1801, %v2341
        %v2343 = vpop.f32.mrb[0].mxu0
        %v2344 = vpop.f32.mrb[0].mxu0
        %v2345 = vadd.f32 %v1802, %v2344
        %v2346 = vpop.f32.mrb[0].mxu0
        %2347 = vmatprep.mubr.bf16.mxu0 0
        %2348 = vmatmul.mubr.bf16.gmra.mrb[0].mxu0 %v2305
        %v2349 = vpop.f32.mrb[0].mxu0
        %v2350 = vadd.f32 %v1803, %v2349
        %v2351 = vpop.f32.mrb[0].mxu0
        %v2352 = vpop.f32.mrb[0].mxu0
        %v2353 = vadd.f32 %v1804, %v2352
        %v2354 = vpop.f32.mrb[0].mxu0
        %2355 = vdwg.mxu0
        %v2356 = vsel %vm1444, %v2342, -inf
        %2357 = vmax.xlane.f32.xlu0 %v2356
        %v2358 = vpop.xlane.xlu0 %2357
        %v2359 = vsel %vm1444, %v2345, -inf
        %2360 = vmax.xlane.f32.xlu0 %v2359
        %v2361 = vpop.xlane.xlu0 %2360
        %v2362 = vsel %vm1444, %v2350, -inf
        %2363 = vmax.xlane.f32.xlu0 %v2362
        %v2364 = vpop.xlane.xlu0 %2363
        %v2365 = vsel %vm1444, %v2353, -inf
        %2366 = vmax.xlane.f32.xlu0 %v2365
        %v2367 = vpop.xlane.xlu0 %2366
        %v2368 = vsub.f32 %v2342, %v2358
        %v2369 = vsub.f32 %v2345, %v2361
        %v2370 = vsub.f32 %v2350, %v2364
        %v2371 = vsub.f32 %v2353, %v2367
        %v2372 = vmul.f32 %v2368, 1.442695
        %v2373 = vpow.pop %v2372
        %v2374 = vmul.f32 %v2369, 1.442695
        %v2375 = vpow.pop %v2374
        %v2376 = vmul.f32 %v2370, 1.442695
        %v2377 = vpow.pop %v2376
        %v2378 = vmul.f32 %v2371, 1.442695
        %v2379 = vpow.pop %v2378
        %v2380 = vsel %vm1444, %v2373, 0.0
        %2381 = vadd.xlane.f32.xlu0 %v2380
        %v2382 = vpop.xlane.xlu0 %2381
        %v2383 = vsel %vm1444, %v2375, 0.0
        %2384 = vadd.xlane.f32.xlu0 %v2383
        %v2385 = vpop.xlane.xlu0 %2384
        %v2386 = vsel %vm1444, %v2377, 0.0
        %2387 = vadd.xlane.f32.xlu0 %v2386
        %v2388 = vpop.xlane.xlu0 %2387
        %v2389 = vsel %vm1444, %v2379, 0.0
        %2390 = vadd.xlane.f32.xlu0 %v2389
        %v2391 = vpop.xlane.xlu0 %2390
        %v2392 = vrcp.pop %v2382
        %v2393 = vrcp.pop %v2385
        %v2394 = vrcp.pop %v2388
        %v2395 = vrcp.pop %v2391
        %v2396 = vmul.f32 %v2373, %v2392
        %v2397 = vmul.f32 %v2375, %v2393
        %v2398 = vmul.f32 %v2377, %v2394
        %v2399 = vmul.f32 %v2379, %v2395
        %v2400 = vpack.c.bf16 %v2397, %v2396
        %v2401 = vpack.c.bf16 %v2399, %v2398
        %2402 = vrot.lane.b32.xlu0 %v1774, 96
        %v2403 = vpop.permute.xlu0 %2402
        %2404 = vrot.lane.b32.xlu0 %v1775, 96
        %v2405 = vpop.permute.xlu0 %2404
        %v2409 = vsel %vm1444, %v2400, 0
        %v2412 = vsel %vm1444, %v2401, 0
        %2414 = vmatprep.subr.bf16.mxu0 0
        %2415 = vmatpush1.bf16.msra.mxu0 %v2403
        %2416 = vmatprep.subr.bf16.mxu0 0
        %2417 = vmatpush1.bf16.msra.mxu0 %v2405
        %2418 = vmatprep.subr.bf16.mxu0 0
        %2419 = vmatpush1.bf16.msra.mxu0 0
        %2420 = vmatprep.subr.bf16.mxu0 0
        %2421 = vmatpush1.bf16.msra.mxu0 0
        %2422 = vmatprep.subr.bf16.mxu0 0
        %2423 = vmatpush1.bf16.msra.mxu0 0
        %2424 = vmatprep.subr.bf16.mxu0 0
        %2425 = vmatpush1.bf16.msra.mxu0 0
        %2426 = vmatprep.subr.bf16.mxu0 0
        %2427 = vmatpush1.bf16.msra.mxu0 0
        %2428 = vmatprep.subr.bf16.mxu0 0
        %2429 = vmatpush1.bf16.msra.mxu0 0
        %2430 = vmatprep.subr.bf16.mxu0 0
        %2431 = vmatpush1.bf16.msra.mxu0 0
        %2432 = vmatprep.subr.bf16.mxu0 0
        %2433 = vmatpush1.bf16.msra.mxu0 0
        %2434 = vmatprep.subr.bf16.mxu0 0
        %2435 = vmatpush1.bf16.msra.mxu0 0
        %2436 = vmatprep.subr.bf16.mxu0 0
        %2437 = vmatpush1.bf16.msra.mxu0 0
        %2438 = vmatprep.subr.bf16.mxu0 0
        %2439 = vmatpush1.bf16.msra.mxu0 0
        %2440 = vmatprep.subr.bf16.mxu0 0
        %2441 = vmatpush1.bf16.msra.mxu0 0
        %2442 = vmatprep.subr.bf16.mxu0 0
        %2443 = vmatpush1.bf16.msra.mxu0 0
        %2444 = vmatprep.subr.bf16.mxu0 0
        %2445 = vmatpush1.bf16.msra.mxu0 0
        %2446 = vmatprep.mubr.bf16.mxu0 0
        %2447 = vmatmul.mubr.bf16.gmra.mrb[0].mxu0 %v2409
        %v2448 = vpop.f32.mrb[0].mxu0
        %v2449 = vadd.f32 0.0, %v2448
        %v2450 = vpop.f32.mrb[0].mxu0
        %v2451 = vpop.f32.mrb[0].mxu0
        %v2452 = vadd.f32 0.0, %v2451
        %v2453 = vpop.f32.mrb[0].mxu0
        %2454 = vmatprep.mubr.bf16.mxu0 0
        %2455 = vmatmul.mubr.bf16.gmra.mrb[0].mxu0 %v2412
        %v2456 = vpop.f32.mrb[0].mxu0
        %v2457 = vadd.f32 0.0, %v2456
        %v2458 = vpop.f32.mrb[0].mxu0
        %v2459 = vpop.f32.mrb[0].mxu0
        %v2460 = vadd.f32 0.0, %v2459
        %v2461 = vpop.f32.mrb[0].mxu0
        %2462 = vdwg.mxu0
        %v2463 = vpack.c.bf16 %v2452, %v2449
        %v2464 = vpack.c.bf16 %v2460, %v2457
        %v2465 = vld [vmem:[#allocation8 + $0x10] sm:$0xf]
        %v2466 = vld [vmem:[#allocation8 + $0x14] sm:$0xf]
        %v2469 = vunpack.c.l.b16 %v2465
        %v2470 = vunpack.c.l.b16 %v2466
        %v2471 = vpack.c.b16 %v2470, %v2469
        %v2474 = vsel %vm1426, %v2463, 0
        %v2477 = vsel %vm1426, %v2464, 0
        %2479 = vmatprep.subr.bf16.mxu0 0
        %2480 = vmatpush1.bf16.msra.mxu0 %v2471
        %2481 = vmatprep.subr.bf16.mxu0 0
        %2482 = vmatpush1.bf16.msra.mxu0 0
        %2483 = vmatprep.subr.bf16.mxu0 0
        %2484 = vmatpush1.bf16.msra.mxu0 0
        %2485 = vmatprep.subr.bf16.mxu0 0
        %2486 = vmatpush1.bf16.msra.mxu0 0
        %2487 = vmatprep.subr.bf16.mxu0 0
        %2488 = vmatpush1.bf16.msra.mxu0 0
        %2489 = vmatprep.subr.bf16.mxu0 0
        %2490 = vmatpush1.bf16.msra.mxu0 0
        %2491 = vmatprep.subr.bf16.mxu0 0
        %2492 = vmatpush1.bf16.msra.mxu0 0
        %2493 = vmatprep.subr.bf16.mxu0 0
        %2494 = vmatpush1.bf16.msra.mxu0 0
        %2495 = vmatprep.subr.bf16.mxu0 0
        %2496 = vmatpush1.bf16.msra.mxu0 0
        %2497 = vmatprep.subr.bf16.mxu0 0
        %2498 = vmatpush1.bf16.msra.mxu0 0
        %2499 = vmatprep.subr.bf16.mxu0 0
        %2500 = vmatpush1.bf16.msra.mxu0 0
        %2501 = vmatprep.subr.bf16.mxu0 0
        %2502 = vmatpush1.bf16.msra.mxu0 0
        %2503 = vmatprep.subr.bf16.mxu0 0
        %2504 = vmatpush1.bf16.msra.mxu0 0
        %2505 = vmatprep.subr.bf16.mxu0 0
        %2506 = vmatpush1.bf16.msra.mxu0 0
        %2507 = vmatprep.subr.bf16.mxu0 0
        %2508 = vmatpush1.bf16.msra.mxu0 0
        %2509 = vmatprep.subr.bf16.mxu0 0
        %2510 = vmatpush1.bf16.msra.mxu0 0
        %2511 = vmatprep.mubr.bf16.mxu0 0
        %2512 = vmatmul.mubr.bf16.gmra.mrb[0].mxu0 %v2474
        %v2513 = vpop.f32.mrb[0].mxu0
        %v2514 = vadd.f32 0.0, %v2513
        %v2515 = vpop.f32.mrb[0].mxu0
        %v2516 = vpop.f32.mrb[0].mxu0
        %v2517 = vadd.f32 0.0, %v2516
        %v2518 = vpop.f32.mrb[0].mxu0
        %2519 = vmatprep.mubr.bf16.mxu0 0
        %2520 = vmatmul.mubr.bf16.gmra.mrb[0].mxu0 %v2477
        %v2521 = vpop.f32.mrb[0].mxu0
        %v2522 = vadd.f32 0.0, %v2521
        %v2523 = vpop.f32.mrb[0].mxu0
        %v2524 = vpop.f32.mrb[0].mxu0
        %v2525 = vadd.f32 0.0, %v2524
        %v2526 = vpop.f32.mrb[0].mxu0
        %2527 = vdwg.mxu0
        %v2528 = vadd.f32 %v2283, %v2514
        %v2529 = vadd.f32 %v2286, %v2517
        %v2530 = vadd.f32 %v2291, %v2522
        %v2531 = vadd.f32 %v2294, %v2525
        %2532 = vrot.lane.b32.xlu0 %v1552, 80
        %v2533 = vpop.permute.xlu0 %2532
        %2534 = vrot.lane.b32.xlu0 %v1553, 80
        %v2535 = vpop.permute.xlu0 %2534
        %v2537 = vsel %vm1426, %v2533, 0
        %v2540 = vsel %vm1426, %v2535, 0
        %2542 = vmatprep.subr.bf16.mxu0 0
        %2543 = vmatpush1.bf16.msra.mxu0 %v1840
        %2544 = vmatprep.subr.bf16.mxu0 0
        %2545 = vmatpush1.bf16.msra.mxu0 0
        %2546 = vmatprep.subr.bf16.mxu0 0
        %2547 = vmatpush1.bf16.msra.mxu0 0
        %2548 = vmatprep.subr.bf16.mxu0 0
        %2549 = vmatpush1.bf16.msra.mxu0 0
        %2550 = vmatprep.subr.bf16.mxu0 0
        %2551 = vmatpush1.bf16.msra.mxu0 0
        %2552 = vmatprep.subr.bf16.mxu0 0
        %2553 = vmatpush1.bf16.msra.mxu0 0
        %2554 = vmatprep.subr.bf16.mxu0 0
        %2555 = vmatpush1.bf16.msra.mxu0 0
        %2556 = vmatprep.subr.bf16.mxu0 0
        %2557 = vmatpush1.bf16.msra.mxu0 0
        %2558 = vmatprep.subr.bf16.mxu0 0
        %2559 = vmatpush1.bf16.msra.mxu0 0
        %2560 = vmatprep.subr.bf16.mxu0 0
        %2561 = vmatpush1.bf16.msra.mxu0 0
        %2562 = vmatprep.subr.bf16.mxu0 0
        %2563 = vmatpush1.bf16.msra.mxu0 0
        %2564 = vmatprep.subr.bf16.mxu0 0
        %2565 = vmatpush1.bf16.msra.mxu0 0
        %2566 = vmatprep.subr.bf16.mxu0 0
        %2567 = vmatpush1.bf16.msra.mxu0 0
        %2568 = vmatprep.subr.bf16.mxu0 0
        %2569 = vmatpush1.bf16.msra.mxu0 0
        %2570 = vmatprep.subr.bf16.mxu0 0
        %2571 = vmatpush1.bf16.msra.mxu0 0
        %2572 = vmatprep.subr.bf16.mxu0 0
        %2573 = vmatpush1.bf16.msra.mxu0 0
        %2574 = vmatprep.mubr.bf16.mxu0 0
        %2575 = vmatmul.mubr.bf16.gmra.mrb[0].mxu0 %v2537
        %v2576 = vpop.f32.mrb[0].mxu0
        %v2577 = vadd.f32 %v1801, %v2576
        %v2578 = vpop.f32.mrb[0].mxu0
        %v2579 = vpop.f32.mrb[0].mxu0
        %v2580 = vadd.f32 %v1802, %v2579
        %v2581 = vpop.f32.mrb[0].mxu0
        %2582 = vmatprep.mubr.bf16.mxu0 0
        %2583 = vmatmul.mubr.bf16.gmra.mrb[0].mxu0 %v2540
        %v2584 = vpop.f32.mrb[0].mxu0
        %v2585 = vadd.f32 %v1803, %v2584
        %v2586 = vpop.f32.mrb[0].mxu0
        %v2587 = vpop.f32.mrb[0].mxu0
        %v2588 = vadd.f32 %v1804, %v2587
        %v2589 = vpop.f32.mrb[0].mxu0
        %2590 = vdwg.mxu0
        %v2591 = vsel %vm1444, %v2577, -inf
        %2592 = vmax.xlane.f32.xlu0 %v2591
        %v2593 = vpop.xlane.xlu0 %2592
        %v2594 = vsel %vm1444, %v2580, -inf
        %2595 = vmax.xlane.f32.xlu0 %v2594
        %v2596 = vpop.xlane.xlu0 %2595
        %v2597 = vsel %vm1444, %v2585, -inf
        %2598 = vmax.xlane.f32.xlu0 %v2597
        %v2599 = vpop.xlane.xlu0 %2598
        %v2600 = vsel %vm1444, %v2588, -inf
        %2601 = vmax.xlane.f32.xlu0 %v2600
        %v2602 = vpop.xlane.xlu0 %2601
        %v2603 = vsub.f32 %v2577, %v2593
        %v2604 = vsub.f32 %v2580, %v2596
        %v2605 = vsub.f32 %v2585, %v2599
        %v2606 = vsub.f32 %v2588, %v2602
        %v2607 = vmul.f32 %v2603, 1.442695
        %v2608 = vpow.pop %v2607
        %v2609 = vmul.f32 %v2604, 1.442695
        %v2610 = vpow.pop %v2609
        %v2611 = vmul.f32 %v2605, 1.442695
        %v2612 = vpow.pop %v2611
        %v2613 = vmul.f32 %v2606, 1.442695
        %v2614 = vpow.pop %v2613
        %v2615 = vsel %vm1444, %v2608, 0.0
        %2616 = vadd.xlane.f32.xlu0 %v2615
        %v2617 = vpop.xlane.xlu0 %2616
        %v2618 = vsel %vm1444, %v2610, 0.0
        %2619 = vadd.xlane.f32.xlu0 %v2618
        %v2620 = vpop.xlane.xlu0 %2619
        %v2621 = vsel %vm1444, %v2612, 0.0
        %2622 = vadd.xlane.f32.xlu0 %v2621
        %v2623 = vpop.xlane.xlu0 %2622
        %v2624 = vsel %vm1444, %v2614, 0.0
        %2625 = vadd.xlane.f32.xlu0 %v2624
        %v2626 = vpop.xlane.xlu0 %2625
        %v2627 = vrcp.pop %v2617
        %v2628 = vrcp.pop %v2620
        %v2629 = vrcp.pop %v2623
        %v2630 = vrcp.pop %v2626
        %v2631 = vmul.f32 %v2608, %v2627
        %v2632 = vmul.f32 %v2610, %v2628
        %v2633 = vmul.f32 %v2612, %v2629
        %v2634 = vmul.f32 %v2614, %v2630
        %v2635 = vpack.c.bf16 %v2632, %v2631
        %v2636 = vpack.c.bf16 %v2634, %v2633
        %2637 = vrot.lane.b32.xlu0 %v1774, 80
        %v2638 = vpop.permute.xlu0 %2637
        %2639 = vrot.lane.b32.xlu0 %v1775, 80
        %v2640 = vpop.permute.xlu0 %2639
        %v2644 = vsel %vm1444, %v2635, 0
        %v2647 = vsel %vm1444, %v2636, 0
        %2649 = vmatprep.subr.bf16.mxu0 0
        %2650 = vmatpush1.bf16.msra.mxu0 %v2638
        %2651 = vmatprep.subr.bf16.mxu0 0
        %2652 = vmatpush1.bf16.msra.mxu0 %v2640
        %2653 = vmatprep.subr.bf16.mxu0 0
        %2654 = vmatpush1.bf16.msra.mxu0 0
        %2655 = vmatprep.subr.bf16.mxu0 0
        %2656 = vmatpush1.bf16.msra.mxu0 0
        %2657 = vmatprep.subr.bf16.mxu0 0
        %2658 = vmatpush1.bf16.msra.mxu0 0
        %2659 = vmatprep.subr.bf16.mxu0 0
        %2660 = vmatpush1.bf16.msra.mxu0 0
        %2661 = vmatprep.subr.bf16.mxu0 0
        %2662 = vmatpush1.bf16.msra.mxu0 0
        %2663 = vmatprep.subr.bf16.mxu0 0
        %2664 = vmatpush1.bf16.msra.mxu0 0
        %2665 = vmatprep.subr.bf16.mxu0 0
        %2666 = vmatpush1.bf16.msra.mxu0 0
        %2667 = vmatprep.subr.bf16.mxu0 0
        %2668 = vmatpush1.bf16.msra.mxu0 0
        %2669 = vmatprep.subr.bf16.mxu0 0
        %2670 = vmatpush1.bf16.msra.mxu0 0
        %2671 = vmatprep.subr.bf16.mxu0 0
        %2672 = vmatpush1.bf16.msra.mxu0 0
        %2673 = vmatprep.subr.bf16.mxu0 0
        %2674 = vmatpush1.bf16.msra.mxu0 0
        %2675 = vmatprep.subr.bf16.mxu0 0
        %2676 = vmatpush1.bf16.msra.mxu0 0
        %2677 = vmatprep.subr.bf16.mxu0 0
        %2678 = vmatpush1.bf16.msra.mxu0 0
        %2679 = vmatprep.subr.bf16.mxu0 0
        %2680 = vmatpush1.bf16.msra.mxu0 0
        %2681 = vmatprep.mubr.bf16.mxu0 0
        %2682 = vmatmul.mubr.bf16.gmra.mrb[0].mxu0 %v2644
        %v2683 = vpop.f32.mrb[0].mxu0
        %v2684 = vadd.f32 0.0, %v2683
        %v2685 = vpop.f32.mrb[0].mxu0
        %v2686 = vpop.f32.mrb[0].mxu0
        %v2687 = vadd.f32 0.0, %v2686
        %v2688 = vpop.f32.mrb[0].mxu0
        %2689 = vmatprep.mubr.bf16.mxu0 0
        %2690 = vmatmul.mubr.bf16.gmra.mrb[0].mxu0 %v2647
        %v2691 = vpop.f32.mrb[0].mxu0
        %v2692 = vadd.f32 0.0, %v2691
        %v2693 = vpop.f32.mrb[0].mxu0
        %v2694 = vpop.f32.mrb[0].mxu0
        %v2695 = vadd.f32 0.0, %v2694
        %v2696 = vpop.f32.mrb[0].mxu0
        %2697 = vdwg.mxu0
        %v2698 = vpack.c.bf16 %v2687, %v2684
        %v2699 = vpack.c.bf16 %v2695, %v2692
        %v2700 = vld [vmem:[#allocation8 + $0x18] sm:$0xf]
        %v2701 = vld [vmem:[#allocation8 + $0x1c] sm:$0xf]
        %v2704 = vunpack.c.l.b16 %v2700
        %v2705 = vunpack.c.l.b16 %v2701
        %v2706 = vpack.c.b16 %v2705, %v2704
        %v2709 = vsel %vm1426, %v2698, 0
        %v2712 = vsel %vm1426, %v2699, 0
        %2714 = vmatprep.subr.bf16.mxu0 0
        %2715 = vmatpush1.bf16.msra.mxu0 %v2706
        %2716 = vmatprep.subr.bf16.mxu0 0
        %2717 = vmatpush1.bf16.msra.mxu0 0
        %2718 = vmatprep.subr.bf16.mxu0 0
        %2719 = vmatpush1.bf16.msra.mxu0 0
        %2720 = vmatprep.subr.bf16.mxu0 0
        %2721 = vmatpush1.bf16.msra.mxu0 0
        %2722 = vmatprep.subr.bf16.mxu0 0
        %2723 = vmatpush1.bf16.msra.mxu0 0
        %2724 = vmatprep.subr.bf16.mxu0 0
        %2725 = vmatpush1.bf16.msra.mxu0 0
        %2726 = vmatprep.subr.bf16.mxu0 0
        %2727 = vmatpush1.bf16.msra.mxu0 0
        %2728 = vmatprep.subr.bf16.mxu0 0
        %2729 = vmatpush1.bf16.msra.mxu0 0
        %2730 = vmatprep.subr.bf16.mxu0 0
        %2731 = vmatpush1.bf16.msra.mxu0 0
        %2732 = vmatprep.subr.bf16.mxu0 0
        %2733 = vmatpush1.bf16.msra.mxu0 0
        %2734 = vmatprep.subr.bf16.mxu0 0
        %2735 = vmatpush1.bf16.msra.mxu0 0
        %2736 = vmatprep.subr.bf16.mxu0 0
        %2737 = vmatpush1.bf16.msra.mxu0 0
        %2738 = vmatprep.subr.bf16.mxu0 0
        %2739 = vmatpush1.bf16.msra.mxu0 0
        %2740 = vmatprep.subr.bf16.mxu0 0
        %2741 = vmatpush1.bf16.msra.mxu0 0
        %2742 = vmatprep.subr.bf16.mxu0 0
        %2743 = vmatpush1.bf16.msra.mxu0 0
        %2744 = vmatprep.subr.bf16.mxu0 0
        %2745 = vmatpush1.bf16.msra.mxu0 0
        %2746 = vmatprep.mubr.bf16.mxu0 0
        %2747 = vmatmul.mubr.bf16.gmra.mrb[0].mxu0 %v2709
        %v2748 = vpop.f32.mrb[0].mxu0
        %v2749 = vadd.f32 0.0, %v2748
        %v2750 = vpop.f32.mrb[0].mxu0
        %v2751 = vpop.f32.mrb[0].mxu0
        %v2752 = vadd.f32 0.0, %v2751
        %v2753 = vpop.f32.mrb[0].mxu0
        %2754 = vmatprep.mubr.bf16.mxu0 0
        %2755 = vmatmul.mubr.bf16.gmra.mrb[0].mxu0 %v2712
        %v2756 = vpop.f32.mrb[0].mxu0
        %v2757 = vadd.f32 0.0, %v2756
        %v2758 = vpop.f32.mrb[0].mxu0
        %v2759 = vpop.f32.mrb[0].mxu0
        %v2760 = vadd.f32 0.0, %v2759
        %v2761 = vpop.f32.mrb[0].mxu0
        %2762 = vdwg.mxu0
        %v2763 = vadd.f32 %v2528, %v2749
        %v2764 = vadd.f32 %v2529, %v2752
        %v2765 = vadd.f32 %v2530, %v2757
        %v2766 = vadd.f32 %v2531, %v2760
        %v2767 = vmul.f32 %v2763, %v1695
        %v2768 = vmul.f32 %v2764, %v1700
        %v2769 = vmul.f32 %v2765, %v1705
        %v2770 = vmul.f32 %v2766, %v1710
        %2771 = vst.msk [vmem:[%s524] sm:$0xff] %vm629, %v2767
        %2772 = vst.msk [vmem:[%s524 + $0x8] sm:$0xff] %vm629, %v2768
        %2773 = vst.msk [vmem:[%s524 + $0x10] sm:$0xff] %vm629, %v2769
        %2774 = vst.msk [vmem:[%s524 + $0x18] sm:$0xff] %vm629, %v2770
        %s2775 = scalar_lea.vmem %s456, 1 [#allocation6]
        %v2776 = vld [vmem:[%s2775] sm:$0x1]
        %vm2777 = vcmp.gt.f32.partialorder %v2776, 0.0
        %v2778 = vsel %vm2777, 1, 0
        %v2779 = vlaneseq
        %v2780 = vshrl.u32 %v2779, 7
        %v2781 = vsub.s32 0, %v2780
        %v2782 = vrot.slane %v2778, %v2781
        %vm2783 = vcmp.eq.s32.totalorder %v2782, 1
        %vm2784 = vmand %vm1785, %vm2783
        %vm2785 = vmand %vm1786, %vm2783
        %vm2786 = vmand %vm1787, %vm2783
        %vm2787 = vmand %vm1788, %vm2783
        %v2788 = vsel %vm2784, 0.0, -1e+30
        %v2789 = vsel %vm2785, 0.0, -1e+30
        %v2790 = vsel %vm2786, 0.0, -1e+30
        %v2791 = vsel %vm2787, 0.0, -1e+30
        %2792 = vxpose.xlu0.b32.start [1/16] %v1736, 128
        %2793 = vxpose.xlu0.b32.cont [2/16] %v1737, 128
        %2794 = vxpose.xlu0.b32.cont [3/16] %v1738, 128
        %2795 = vxpose.xlu0.b32.cont [4/16] %v1739, 128
        %2796 = vxpose.xlu0.b32.cont [5/16] 0.0, 128
        %2797 = vxpose.xlu0.b32.cont [6/16] 0.0, 128
        %2798 = vxpose.xlu0.b32.cont [7/16] 0.0, 128
        %2799 = vxpose.xlu0.b32.cont [8/16] 0.0, 128
        %2800 = vxpose.xlu0.b32.cont [9/16] 0.0, 128
        %2801 = vxpose.xlu0.b32.cont [10/16] 0.0, 128
        %2802 = vxpose.xlu0.b32.cont [11/16] 0.0, 128
        %2803 = vxpose.xlu0.b32.cont [12/16] 0.0, 128
        %2804 = vxpose.xlu0.b32.cont [13/16] 0.0, 128
        %2805 = vxpose.xlu0.b32.cont [14/16] 0.0, 128
        %2806 = vxpose.xlu0.b32.cont [15/16] 0.0, 128
        %2807 = vxpose.xlu0.b32.end [16/16] 0.0, 128
        %v2808 = vpop.trf.xlu0
        %v2809 = vpop.trf.xlu0
        %v2810 = vpop.trf.xlu0
        %v2811 = vpop.trf.xlu0
        %v2812 = vpop.trf.xlu0
        %v2813 = vpop.trf.xlu0
        %v2814 = vpop.trf.xlu0
        %v2815 = vpop.trf.xlu0
        %v2816 = vpop.trf.xlu0
        %v2817 = vpop.trf.xlu0
        %v2818 = vpop.trf.xlu0
        %v2819 = vpop.trf.xlu0
        %v2820 = vpop.trf.xlu0
        %v2821 = vpop.trf.xlu0
        %v2822 = vpop.trf.xlu0
        %v2823 = vpop.trf.xlu0
        %v2824 = vpack.c.bf16 %v2809, %v2808
        %v2825 = vpack.c.bf16 %v2811, %v2810
        %v2826 = vpack.c.bf16 %v2813, %v2812
        %v2827 = vpack.c.bf16 %v2815, %v2814
        %v2829 = vsel %vm1426, %v1554, 0
        %v2832 = vsel %vm1426, %v1555, 0
        %2834 = vmatprep.subr.bf16.mxu0 0
        %2835 = vmatpush1.bf16.msra.mxu0 %v2824
        %2836 = vmatprep.subr.bf16.mxu0 0
        %2837 = vmatpush1.bf16.msra.mxu0 0
        %2838 = vmatprep.subr.bf16.mxu0 0
        %2839 = vmatpush1.bf16.msra.mxu0 0
        %2840 = vmatprep.subr.bf16.mxu0 0
        %2841 = vmatpush1.bf16.msra.mxu0 0
        %2842 = vmatprep.subr.bf16.mxu0 0
        %2843 = vmatpush1.bf16.msra.mxu0 0
        %2844 = vmatprep.subr.bf16.mxu0 0
        %2845 = vmatpush1.bf16.msra.mxu0 0
        %2846 = vmatprep.subr.bf16.mxu0 0
        %2847 = vmatpush1.bf16.msra.mxu0 0
        %2848 = vmatprep.subr.bf16.mxu0 0
        %2849 = vmatpush1.bf16.msra.mxu0 0
        %2850 = vmatprep.subr.bf16.mxu0 0
        %2851 = vmatpush1.bf16.msra.mxu0 0
        %2852 = vmatprep.subr.bf16.mxu0 0
        %2853 = vmatpush1.bf16.msra.mxu0 0
        %2854 = vmatprep.subr.bf16.mxu0 0
        %2855 = vmatpush1.bf16.msra.mxu0 0
        %2856 = vmatprep.subr.bf16.mxu0 0
        %2857 = vmatpush1.bf16.msra.mxu0 0
        %2858 = vmatprep.subr.bf16.mxu0 0
        %2859 = vmatpush1.bf16.msra.mxu0 0
        %2860 = vmatprep.subr.bf16.mxu0 0
        %2861 = vmatpush1.bf16.msra.mxu0 0
        %2862 = vmatprep.subr.bf16.mxu0 0
        %2863 = vmatpush1.bf16.msra.mxu0 0
        %2864 = vmatprep.subr.bf16.mxu0 0
        %2865 = vmatpush1.bf16.msra.mxu0 0
        %2866 = vmatprep.mubr.bf16.mxu0 0
        %2867 = vmatmul.mubr.bf16.gmra.mrb[0].mxu0 %v2829
        %v2868 = vpop.f32.mrb[0].mxu0
        %v2869 = vadd.f32 %v2788, %v2868
        %v2870 = vpop.f32.mrb[0].mxu0
        %v2871 = vpop.f32.mrb[0].mxu0
        %v2872 = vadd.f32 %v2789, %v2871
        %v2873 = vpop.f32.mrb[0].mxu0
        %2874 = vmatprep.mubr.bf16.mxu0 0
        %2875 = vmatmul.mubr.bf16.gmra.mrb[0].mxu0 %v2832
        %v2876 = vpop.f32.mrb[0].mxu0
        %v2877 = vadd.f32 %v2790, %v2876
        %v2878 = vpop.f32.mrb[0].mxu0
        %v2879 = vpop.f32.mrb[0].mxu0
        %v2880 = vadd.f32 %v2791, %v2879
        %v2881 = vpop.f32.mrb[0].mxu0
        %2882 = vdwg.mxu0
        %v2883 = vsel %vm1444, %v2869, -inf
        %2884 = vmax.xlane.f32.xlu0 %v2883
        %v2885 = vpop.xlane.xlu0 %2884
        %v2886 = vsel %vm1444, %v2872, -inf
        %2887 = vmax.xlane.f32.xlu0 %v2886
        %v2888 = vpop.xlane.xlu0 %2887
        %v2889 = vsel %vm1444, %v2877, -inf
        %2890 = vmax.xlane.f32.xlu0 %v2889
        %v2891 = vpop.xlane.xlu0 %2890
        %v2892 = vsel %vm1444, %v2880, -inf
        %2893 = vmax.xlane.f32.xlu0 %v2892
        %v2894 = vpop.xlane.xlu0 %2893
        %v2895 = vsub.f32 %v2869, %v2885
        %v2896 = vsub.f32 %v2872, %v2888
        %v2897 = vsub.f32 %v2877, %v2891
        %v2898 = vsub.f32 %v2880, %v2894
        %v2899 = vmul.f32 %v2895, 1.442695
        %v2900 = vpow.pop %v2899
        %v2901 = vmul.f32 %v2896, 1.442695
        %v2902 = vpow.pop %v2901
        %v2903 = vmul.f32 %v2897, 1.442695
        %v2904 = vpow.pop %v2903
        %v2905 = vmul.f32 %v2898, 1.442695
        %v2906 = vpow.pop %v2905
        %v2907 = vsel %vm1444, %v2900, 0.0
        %2908 = vadd.xlane.f32.xlu0 %v2907
        %v2909 = vpop.xlane.xlu0 %2908
        %v2910 = vsel %vm1444, %v2902, 0.0
        %2911 = vadd.xlane.f32.xlu0 %v2910
        %v2912 = vpop.xlane.xlu0 %2911
        %v2913 = vsel %vm1444, %v2904, 0.0
        %2914 = vadd.xlane.f32.xlu0 %v2913
        %v2915 = vpop.xlane.xlu0 %2914
        %v2916 = vsel %vm1444, %v2906, 0.0
        %2917 = vadd.xlane.f32.xlu0 %v2916
        %v2918 = vpop.xlane.xlu0 %2917
        %v2919 = vrcp.pop %v2909
        %v2920 = vrcp.pop %v2912
        %v2921 = vrcp.pop %v2915
        %v2922 = vrcp.pop %v2918
        %v2923 = vmul.f32 %v2900, %v2919
        %v2924 = vmul.f32 %v2902, %v2920
        %v2925 = vmul.f32 %v2904, %v2921
        %v2926 = vmul.f32 %v2906, %v2922
        %v2927 = vpack.c.bf16 %v2924, %v2923
        %v2928 = vpack.c.bf16 %v2926, %v2925
        %v2930 = vsel %vm1444, %v2927, 0
        %v2933 = vsel %vm1444, %v2928, 0
        %2935 = vmatprep.subr.bf16.mxu0 0
        %2936 = vmatpush1.bf16.msra.mxu0 %v1776
        %2937 = vmatprep.subr.bf16.mxu0 0
        %2938 = vmatpush1.bf16.msra.mxu0 %v1777
        %2939 = vmatprep.subr.bf16.mxu0 0
        %2940 = vmatpush1.bf16.msra.mxu0 0
        %2941 = vmatprep.subr.bf16.mxu0 0
        %2942 = vmatpush1.bf16.msra.mxu0 0
        %2943 = vmatprep.subr.bf16.mxu0 0
        %2944 = vmatpush1.bf16.msra.mxu0 0
        %2945 = vmatprep.subr.bf16.mxu0 0
        %2946 = vmatpush1.bf16.msra.mxu0 0
        %2947 = vmatprep.subr.bf16.mxu0 0
        %2948 = vmatpush1.bf16.msra.mxu0 0
        %2949 = vmatprep.subr.bf16.mxu0 0
        %2950 = vmatpush1.bf16.msra.mxu0 0
        %2951 = vmatprep.subr.bf16.mxu0 0
        %2952 = vmatpush1.bf16.msra.mxu0 0
        %2953 = vmatprep.subr.bf16.mxu0 0
        %2954 = vmatpush1.bf16.msra.mxu0 0
        %2955 = vmatprep.subr.bf16.mxu0 0
        %2956 = vmatpush1.bf16.msra.mxu0 0
        %2957 = vmatprep.subr.bf16.mxu0 0
        %2958 = vmatpush1.bf16.msra.mxu0 0
        %2959 = vmatprep.subr.bf16.mxu0 0
        %2960 = vmatpush1.bf16.msra.mxu0 0
        %2961 = vmatprep.subr.bf16.mxu0 0
        %2962 = vmatpush1.bf16.msra.mxu0 0
        %2963 = vmatprep.subr.bf16.mxu0 0
        %2964 = vmatpush1.bf16.msra.mxu0 0
        %2965 = vmatprep.subr.bf16.mxu0 0
        %2966 = vmatpush1.bf16.msra.mxu0 0
        %2967 = vmatprep.mubr.bf16.mxu0 0
        %2968 = vmatmul.mubr.bf16.gmra.mrb[0].mxu0 %v2930
        %v2969 = vpop.f32.mrb[0].mxu0
        %v2970 = vadd.f32 0.0, %v2969
        %v2971 = vpop.f32.mrb[0].mxu0
        %v2972 = vpop.f32.mrb[0].mxu0
        %v2973 = vadd.f32 0.0, %v2972
        %v2974 = vpop.f32.mrb[0].mxu0
        %2975 = vmatprep.mubr.bf16.mxu0 0
        %2976 = vmatmul.mubr.bf16.gmra.mrb[0].mxu0 %v2933
        %v2977 = vpop.f32.mrb[0].mxu0
        %v2978 = vadd.f32 0.0, %v2977
        %v2979 = vpop.f32.mrb[0].mxu0
        %v2980 = vpop.f32.mrb[0].mxu0
        %v2981 = vadd.f32 0.0, %v2980
        %v2982 = vpop.f32.mrb[0].mxu0
        %2983 = vdwg.mxu0
        %v2984 = vpack.c.bf16 %v2973, %v2970
        %v2985 = vpack.c.bf16 %v2981, %v2978
        %v2986 = vld [vmem:[#allocation8] sm:$0xf]
        %v2987 = vld [vmem:[#allocation8 + $0x4] sm:$0xf]
        %2990 = vrot.lane.b32.xlu0 %v1554, 112
        %v2991 = vpop.permute.xlu0 %2990
        %2992 = vrot.lane.b32.xlu0 %v1555, 112
        %v2993 = vpop.permute.xlu0 %2992
        %v2995 = vsel %vm1426, %v2991, 0
        %v2998 = vsel %vm1426, %v2993, 0
        %3000 = vmatprep.subr.bf16.mxu0 0
        %3001 = vmatpush1.bf16.msra.mxu0 %v2825
        %3002 = vmatprep.subr.bf16.mxu0 0
        %3003 = vmatpush1.bf16.msra.mxu0 0
        %3004 = vmatprep.subr.bf16.mxu0 0
        %3005 = vmatpush1.bf16.msra.mxu0 0
        %3006 = vmatprep.subr.bf16.mxu0 0
        %3007 = vmatpush1.bf16.msra.mxu0 0
        %3008 = vmatprep.subr.bf16.mxu0 0
        %3009 = vmatpush1.bf16.msra.mxu0 0
        %3010 = vmatprep.subr.bf16.mxu0 0
        %3011 = vmatpush1.bf16.msra.mxu0 0
        %3012 = vmatprep.subr.bf16.mxu0 0
        %3013 = vmatpush1.bf16.msra.mxu0 0
        %3014 = vmatprep.subr.bf16.mxu0 0
        %3015 = vmatpush1.bf16.msra.mxu0 0
        %3016 = vmatprep.subr.bf16.mxu0 0
        %3017 = vmatpush1.bf16.msra.mxu0 0
        %3018 = vmatprep.subr.bf16.mxu0 0
        %3019 = vmatpush1.bf16.msra.mxu0 0
        %3020 = vmatprep.subr.bf16.mxu0 0
        %3021 = vmatpush1.bf16.msra.mxu0 0
        %3022 = vmatprep.subr.bf16.mxu0 0
        %3023 = vmatpush1.bf16.msra.mxu0 0
        %3024 = vmatprep.subr.bf16.mxu0 0
        %3025 = vmatpush1.bf16.msra.mxu0 0
        %3026 = vmatprep.subr.bf16.mxu0 0
        %3027 = vmatpush1.bf16.msra.mxu0 0
        %3028 = vmatprep.subr.bf16.mxu0 0
        %3029 = vmatpush1.bf16.msra.mxu0 0
        %3030 = vmatprep.subr.bf16.mxu0 0
        %3031 = vmatpush1.bf16.msra.mxu0 0
        %3032 = vmatprep.mubr.bf16.mxu0 0
        %3033 = vmatmul.mubr.bf16.gmra.mrb[0].mxu0 %v2995
        %v3034 = vpop.f32.mrb[0].mxu0
        %v3035 = vadd.f32 %v2788, %v3034
        %v3036 = vpop.f32.mrb[0].mxu0
        %v3037 = vpop.f32.mrb[0].mxu0
        %v3038 = vadd.f32 %v2789, %v3037
        %v3039 = vpop.f32.mrb[0].mxu0
        %3040 = vmatprep.mubr.bf16.mxu0 0
        %3041 = vmatmul.mubr.bf16.gmra.mrb[0].mxu0 %v2998
        %v3042 = vpop.f32.mrb[0].mxu0
        %v3043 = vadd.f32 %v2790, %v3042
        %v3044 = vpop.f32.mrb[0].mxu0
        %v3045 = vpop.f32.mrb[0].mxu0
        %v3046 = vadd.f32 %v2791, %v3045
        %v3047 = vpop.f32.mrb[0].mxu0
        %3048 = vdwg.mxu0
        %v3049 = vsel %vm1444, %v3035, -inf
        %3050 = vmax.xlane.f32.xlu0 %v3049
        %v3051 = vpop.xlane.xlu0 %3050
        %v3052 = vsel %vm1444, %v3038, -inf
        %3053 = vmax.xlane.f32.xlu0 %v3052
        %v3054 = vpop.xlane.xlu0 %3053
        %v3055 = vsel %vm1444, %v3043, -inf
        %3056 = vmax.xlane.f32.xlu0 %v3055
        %v3057 = vpop.xlane.xlu0 %3056
        %v3058 = vsel %vm1444, %v3046, -inf
        %3059 = vmax.xlane.f32.xlu0 %v3058
        %v3060 = vpop.xlane.xlu0 %3059
        %v3061 = vsub.f32 %v3035, %v3051
        %v3062 = vsub.f32 %v3038, %v3054
        %v3063 = vsub.f32 %v3043, %v3057
        %v3064 = vsub.f32 %v3046, %v3060
        %v3065 = vmul.f32 %v3061, 1.442695
        %v3066 = vpow.pop %v3065
        %v3067 = vmul.f32 %v3062, 1.442695
        %v3068 = vpow.pop %v3067
        %v3069 = vmul.f32 %v3063, 1.442695
        %v3070 = vpow.pop %v3069
        %v3071 = vmul.f32 %v3064, 1.442695
        %v3072 = vpow.pop %v3071
        %v3073 = vsel %vm1444, %v3066, 0.0
        %3074 = vadd.xlane.f32.xlu0 %v3073
        %v3075 = vpop.xlane.xlu0 %3074
        %v3076 = vsel %vm1444, %v3068, 0.0
        %3077 = vadd.xlane.f32.xlu0 %v3076
        %v3078 = vpop.xlane.xlu0 %3077
        %v3079 = vsel %vm1444, %v3070, 0.0
        %3080 = vadd.xlane.f32.xlu0 %v3079
        %v3081 = vpop.xlane.xlu0 %3080
        %v3082 = vsel %vm1444, %v3072, 0.0
        %3083 = vadd.xlane.f32.xlu0 %v3082
        %v3084 = vpop.xlane.xlu0 %3083
        %v3085 = vrcp.pop %v3075
        %v3086 = vrcp.pop %v3078
        %v3087 = vrcp.pop %v3081
        %v3088 = vrcp.pop %v3084
        %v3089 = vmul.f32 %v3066, %v3085
        %v3090 = vmul.f32 %v3068, %v3086
        %v3091 = vmul.f32 %v3070, %v3087
        %v3092 = vmul.f32 %v3072, %v3088
        %v3093 = vpack.c.bf16 %v3090, %v3089
        %v3094 = vpack.c.bf16 %v3092, %v3091
        %3097 = vrot.lane.b32.xlu0 %v1776, 112
        %v3098 = vpop.permute.xlu0 %3097
        %3099 = vrot.lane.b32.xlu0 %v1777, 112
        %v3100 = vpop.permute.xlu0 %3099
        %v3104 = vsel %vm1444, %v3093, 0
        %v3107 = vsel %vm1444, %v3094, 0
        %3109 = vmatprep.subr.bf16.mxu0 0
        %3110 = vmatpush1.bf16.msra.mxu0 %v3098
        %3111 = vmatprep.subr.bf16.mxu0 0
        %3112 = vmatpush1.bf16.msra.mxu0 %v3100
        %3113 = vmatprep.subr.bf16.mxu0 0
        %3114 = vmatpush1.bf16.msra.mxu0 0
        %3115 = vmatprep.subr.bf16.mxu0 0
        %3116 = vmatpush1.bf16.msra.mxu0 0
        %3117 = vmatprep.subr.bf16.mxu0 0
        %3118 = vmatpush1.bf16.msra.mxu0 0
        %3119 = vmatprep.subr.bf16.mxu0 0
        %3120 = vmatpush1.bf16.msra.mxu0 0
        %3121 = vmatprep.subr.bf16.mxu0 0
        %3122 = vmatpush1.bf16.msra.mxu0 0
        %3123 = vmatprep.subr.bf16.mxu0 0
        %3124 = vmatpush1.bf16.msra.mxu0 0
        %3125 = vmatprep.subr.bf16.mxu0 0
        %3126 = vmatpush1.bf16.msra.mxu0 0
        %3127 = vmatprep.subr.bf16.mxu0 0
        %3128 = vmatpush1.bf16.msra.mxu0 0
        %3129 = vmatprep.subr.bf16.mxu0 0
        %3130 = vmatpush1.bf16.msra.mxu0 0
        %3131 = vmatprep.subr.bf16.mxu0 0
        %3132 = vmatpush1.bf16.msra.mxu0 0
        %3133 = vmatprep.subr.bf16.mxu0 0
        %3134 = vmatpush1.bf16.msra.mxu0 0
        %3135 = vmatprep.subr.bf16.mxu0 0
        %3136 = vmatpush1.bf16.msra.mxu0 0
        %3137 = vmatprep.subr.bf16.mxu0 0
        %3138 = vmatpush1.bf16.msra.mxu0 0
        %3139 = vmatprep.subr.bf16.mxu0 0
        %3140 = vmatpush1.bf16.msra.mxu0 0
        %3141 = vmatprep.mubr.bf16.mxu0 0
        %3142 = vmatmul.mubr.bf16.gmra.mrb[0].mxu0 %v3104
        %v3143 = vpop.f32.mrb[0].mxu0
        %v3144 = vadd.f32 0.0, %v3143
        %v3145 = vpop.f32.mrb[0].mxu0
        %v3146 = vpop.f32.mrb[0].mxu0
        %v3147 = vadd.f32 0.0, %v3146
        %v3148 = vpop.f32.mrb[0].mxu0
        %3149 = vmatprep.mubr.bf16.mxu0 0
        %3150 = vmatmul.mubr.bf16.gmra.mrb[0].mxu0 %v3107
        %v3151 = vpop.f32.mrb[0].mxu0
        %v3152 = vadd.f32 0.0, %v3151
        %v3153 = vpop.f32.mrb[0].mxu0
        %v3154 = vpop.f32.mrb[0].mxu0
        %v3155 = vadd.f32 0.0, %v3154
        %v3156 = vpop.f32.mrb[0].mxu0
        %3157 = vdwg.mxu0
        %v3158 = vpack.c.bf16 %v3147, %v3144
        %v3159 = vpack.c.bf16 %v3155, %v3152
        %v3160 = vld [vmem:[#allocation8 + $0x8] sm:$0xf]
        %v3161 = vld [vmem:[#allocation8 + $0xc] sm:$0xf]
        %v3164 = vunpack.c.l.b16 %v3160
        %v3165 = vunpack.c.l.b16 %v3161
        %v3166 = vpack.c.b16 %v3165, %v3164
        %v3169 = vsel %vm1426, %v3158, 0
        %v3172 = vsel %vm1426, %v3159, 0
        %3174 = vmatprep.subr.bf16.mxu0 0
        %3175 = vmatpush1.bf16.msra.mxu0 %v3166
        %3176 = vmatprep.subr.bf16.mxu0 0
        %3177 = vmatpush1.bf16.msra.mxu0 0
        %3178 = vmatprep.subr.bf16.mxu0 0
        %3179 = vmatpush1.bf16.msra.mxu0 0
        %3180 = vmatprep.subr.bf16.mxu0 0
        %3181 = vmatpush1.bf16.msra.mxu0 0
        %3182 = vmatprep.subr.bf16.mxu0 0
        %3183 = vmatpush1.bf16.msra.mxu0 0
        %3184 = vmatprep.subr.bf16.mxu0 0
        %3185 = vmatpush1.bf16.msra.mxu0 0
        %3186 = vmatprep.subr.bf16.mxu0 0
        %3187 = vmatpush1.bf16.msra.mxu0 0
        %3188 = vmatprep.subr.bf16.mxu0 0
        %3189 = vmatpush1.bf16.msra.mxu0 0
        %3190 = vmatprep.subr.bf16.mxu0 0
        %3191 = vmatpush1.bf16.msra.mxu0 0
        %3192 = vmatprep.subr.bf16.mxu0 0
        %3193 = vmatpush1.bf16.msra.mxu0 0
        %3194 = vmatprep.subr.bf16.mxu0 0
        %3195 = vmatpush1.bf16.msra.mxu0 0
        %3196 = vmatprep.subr.bf16.mxu0 0
        %3197 = vmatpush1.bf16.msra.mxu0 0
        %3198 = vmatprep.subr.bf16.mxu0 0
        %3199 = vmatpush1.bf16.msra.mxu0 0
        %3200 = vmatprep.subr.bf16.mxu0 0
        %3201 = vmatpush1.bf16.msra.mxu0 0
        %3202 = vmatprep.subr.bf16.mxu0 0
        %3203 = vmatpush1.bf16.msra.mxu0 0
        %3204 = vmatprep.subr.bf16.mxu0 0
        %3205 = vmatpush1.bf16.msra.mxu0 0
        %3206 = vmatprep.mubr.bf16.mxu0 0
        %3207 = vmatmul.mubr.bf16.gmra.mrb[0].mxu0 %v3169
        %v3208 = vpop.f32.mrb[0].mxu0
        %v3209 = vadd.f32 0.0, %v3208
        %v3210 = vpop.f32.mrb[0].mxu0
        %v3211 = vpop.f32.mrb[0].mxu0
        %v3212 = vadd.f32 0.0, %v3211
        %v3213 = vpop.f32.mrb[0].mxu0
        %3214 = vmatprep.mubr.bf16.mxu0 0
        %3215 = vmatmul.mubr.bf16.gmra.mrb[0].mxu0 %v3172
        %v3216 = vpop.f32.mrb[0].mxu0
        %v3217 = vadd.f32 0.0, %v3216
        %v3218 = vpop.f32.mrb[0].mxu0
        %v3219 = vpop.f32.mrb[0].mxu0
        %v3220 = vadd.f32 0.0, %v3219
        %v3221 = vpop.f32.mrb[0].mxu0
        %3222 = vdwg.mxu0
        %v3225 = vunpack.c.l.b16 %v2986
        %v3226 = vunpack.c.l.b16 %v2987
        %v3227 = vpack.c.b16 %v3226, %v3225
        %v3230 = vsel %vm1426, %v2984, 0
        %v3233 = vsel %vm1426, %v2985, 0
        %3235 = vmatprep.subr.bf16.mxu0 0
        %3236 = vmatpush1.bf16.msra.mxu0 %v3227
        %3237 = vmatprep.subr.bf16.mxu0 0
        %3238 = vmatpush1.bf16.msra.mxu0 0
        %3239 = vmatprep.subr.bf16.mxu0 0
        %3240 = vmatpush1.bf16.msra.mxu0 0
        %3241 = vmatprep.subr.bf16.mxu0 0
        %3242 = vmatpush1.bf16.msra.mxu0 0
        %3243 = vmatprep.subr.bf16.mxu0 0
        %3244 = vmatpush1.bf16.msra.mxu0 0
        %3245 = vmatprep.subr.bf16.mxu0 0
        %3246 = vmatpush1.bf16.msra.mxu0 0
        %3247 = vmatprep.subr.bf16.mxu0 0
        %3248 = vmatpush1.bf16.msra.mxu0 0
        %3249 = vmatprep.subr.bf16.mxu0 0
        %3250 = vmatpush1.bf16.msra.mxu0 0
        %3251 = vmatprep.subr.bf16.mxu0 0
        %3252 = vmatpush1.bf16.msra.mxu0 0
        %3253 = vmatprep.subr.bf16.mxu0 0
        %3254 = vmatpush1.bf16.msra.mxu0 0
        %3255 = vmatprep.subr.bf16.mxu0 0
        %3256 = vmatpush1.bf16.msra.mxu0 0
        %3257 = vmatprep.subr.bf16.mxu0 0
        %3258 = vmatpush1.bf16.msra.mxu0 0
        %3259 = vmatprep.subr.bf16.mxu0 0
        %3260 = vmatpush1.bf16.msra.mxu0 0
        %3261 = vmatprep.subr.bf16.mxu0 0
        %3262 = vmatpush1.bf16.msra.mxu0 0
        %3263 = vmatprep.subr.bf16.mxu0 0
        %3264 = vmatpush1.bf16.msra.mxu0 0
        %3265 = vmatprep.subr.bf16.mxu0 0
        %3266 = vmatpush1.bf16.msra.mxu0 0
        %3267 = vmatprep.mubr.bf16.mxu0 0
        %3268 = vmatmul.mubr.bf16.gmra.mrb[0].mxu0 %v3230
        %v3269 = vpop.f32.mrb[0].mxu0
        %v3270 = vadd.f32 %v3209, %v3269
        %v3271 = vpop.f32.mrb[0].mxu0
        %v3272 = vpop.f32.mrb[0].mxu0
        %v3273 = vadd.f32 %v3212, %v3272
        %v3274 = vpop.f32.mrb[0].mxu0
        %3275 = vmatprep.mubr.bf16.mxu0 0
        %3276 = vmatmul.mubr.bf16.gmra.mrb[0].mxu0 %v3233
        %v3277 = vpop.f32.mrb[0].mxu0
        %v3278 = vadd.f32 %v3217, %v3277
        %v3279 = vpop.f32.mrb[0].mxu0
        %v3280 = vpop.f32.mrb[0].mxu0
        %v3281 = vadd.f32 %v3220, %v3280
        %v3282 = vpop.f32.mrb[0].mxu0
        %3283 = vdwg.mxu0
        %3284 = vrot.lane.b32.xlu0 %v1554, 96
        %v3285 = vpop.permute.xlu0 %3284
        %3286 = vrot.lane.b32.xlu0 %v1555, 96
        %v3287 = vpop.permute.xlu0 %3286
        %v3289 = vsel %vm1426, %v3285, 0
        %v3292 = vsel %vm1426, %v3287, 0
        %3294 = vmatprep.subr.bf16.mxu0 0
        %3295 = vmatpush1.bf16.msra.mxu0 %v2826
        %3296 = vmatprep.subr.bf16.mxu0 0
        %3297 = vmatpush1.bf16.msra.mxu0 0
        %3298 = vmatprep.subr.bf16.mxu0 0
        %3299 = vmatpush1.bf16.msra.mxu0 0
        %3300 = vmatprep.subr.bf16.mxu0 0
        %3301 = vmatpush1.bf16.msra.mxu0 0
        %3302 = vmatprep.subr.bf16.mxu0 0
        %3303 = vmatpush1.bf16.msra.mxu0 0
        %3304 = vmatprep.subr.bf16.mxu0 0
        %3305 = vmatpush1.bf16.msra.mxu0 0
        %3306 = vmatprep.subr.bf16.mxu0 0
        %3307 = vmatpush1.bf16.msra.mxu0 0
        %3308 = vmatprep.subr.bf16.mxu0 0
        %3309 = vmatpush1.bf16.msra.mxu0 0
        %3310 = vmatprep.subr.bf16.mxu0 0
        %3311 = vmatpush1.bf16.msra.mxu0 0
        %3312 = vmatprep.subr.bf16.mxu0 0
        %3313 = vmatpush1.bf16.msra.mxu0 0
        %3314 = vmatprep.subr.bf16.mxu0 0
        %3315 = vmatpush1.bf16.msra.mxu0 0
        %3316 = vmatprep.subr.bf16.mxu0 0
        %3317 = vmatpush1.bf16.msra.mxu0 0
        %3318 = vmatprep.subr.bf16.mxu0 0
        %3319 = vmatpush1.bf16.msra.mxu0 0
        %3320 = vmatprep.subr.bf16.mxu0 0
        %3321 = vmatpush1.bf16.msra.mxu0 0
        %3322 = vmatprep.subr.bf16.mxu0 0
        %3323 = vmatpush1.bf16.msra.mxu0 0
        %3324 = vmatprep.subr.bf16.mxu0 0
        %3325 = vmatpush1.bf16.msra.mxu0 0
        %3326 = vmatprep.mubr.bf16.mxu0 0
        %3327 = vmatmul.mubr.bf16.gmra.mrb[0].mxu0 %v3289
        %v3328 = vpop.f32.mrb[0].mxu0
        %v3329 = vadd.f32 %v2788, %v3328
        %v3330 = vpop.f32.mrb[0].mxu0
        %v3331 = vpop.f32.mrb[0].mxu0
        %v3332 = vadd.f32 %v2789, %v3331
        %v3333 = vpop.f32.mrb[0].mxu0
        %3334 = vmatprep.mubr.bf16.mxu0 0
        %3335 = vmatmul.mubr.bf16.gmra.mrb[0].mxu0 %v3292
        %v3336 = vpop.f32.mrb[0].mxu0
        %v3337 = vadd.f32 %v2790, %v3336
        %v3338 = vpop.f32.mrb[0].mxu0
        %v3339 = vpop.f32.mrb[0].mxu0
        %v3340 = vadd.f32 %v2791, %v3339
        %v3341 = vpop.f32.mrb[0].mxu0
        %3342 = vdwg.mxu0
        %v3343 = vsel %vm1444, %v3329, -inf
        %3344 = vmax.xlane.f32.xlu0 %v3343
        %v3345 = vpop.xlane.xlu0 %3344
        %v3346 = vsel %vm1444, %v3332, -inf
        %3347 = vmax.xlane.f32.xlu0 %v3346
        %v3348 = vpop.xlane.xlu0 %3347
        %v3349 = vsel %vm1444, %v3337, -inf
        %3350 = vmax.xlane.f32.xlu0 %v3349
        %v3351 = vpop.xlane.xlu0 %3350
        %v3352 = vsel %vm1444, %v3340, -inf
        %3353 = vmax.xlane.f32.xlu0 %v3352
        %v3354 = vpop.xlane.xlu0 %3353
        %v3355 = vsub.f32 %v3329, %v3345
        %v3356 = vsub.f32 %v3332, %v3348
        %v3357 = vsub.f32 %v3337, %v3351
        %v3358 = vsub.f32 %v3340, %v3354
        %v3359 = vmul.f32 %v3355, 1.442695
        %v3360 = vpow.pop %v3359
        %v3361 = vmul.f32 %v3356, 1.442695
        %v3362 = vpow.pop %v3361
        %v3363 = vmul.f32 %v3357, 1.442695
        %v3364 = vpow.pop %v3363
        %v3365 = vmul.f32 %v3358, 1.442695
        %v3366 = vpow.pop %v3365
        %v3367 = vsel %vm1444, %v3360, 0.0
        %3368 = vadd.xlane.f32.xlu0 %v3367
        %v3369 = vpop.xlane.xlu0 %3368
        %v3370 = vsel %vm1444, %v3362, 0.0
        %3371 = vadd.xlane.f32.xlu0 %v3370
        %v3372 = vpop.xlane.xlu0 %3371
        %v3373 = vsel %vm1444, %v3364, 0.0
        %3374 = vadd.xlane.f32.xlu0 %v3373
        %v3375 = vpop.xlane.xlu0 %3374
        %v3376 = vsel %vm1444, %v3366, 0.0
        %3377 = vadd.xlane.f32.xlu0 %v3376
        %v3378 = vpop.xlane.xlu0 %3377
        %v3379 = vrcp.pop %v3369
        %v3380 = vrcp.pop %v3372
        %v3381 = vrcp.pop %v3375
        %v3382 = vrcp.pop %v3378
        %v3383 = vmul.f32 %v3360, %v3379
        %v3384 = vmul.f32 %v3362, %v3380
        %v3385 = vmul.f32 %v3364, %v3381
        %v3386 = vmul.f32 %v3366, %v3382
        %v3387 = vpack.c.bf16 %v3384, %v3383
        %v3388 = vpack.c.bf16 %v3386, %v3385
        %3389 = vrot.lane.b32.xlu0 %v1776, 96
        %v3390 = vpop.permute.xlu0 %3389
        %3391 = vrot.lane.b32.xlu0 %v1777, 96
        %v3392 = vpop.permute.xlu0 %3391
        %v3396 = vsel %vm1444, %v3387, 0
        %v3399 = vsel %vm1444, %v3388, 0
        %3401 = vmatprep.subr.bf16.mxu0 0
        %3402 = vmatpush1.bf16.msra.mxu0 %v3390
        %3403 = vmatprep.subr.bf16.mxu0 0
        %3404 = vmatpush1.bf16.msra.mxu0 %v3392
        %3405 = vmatprep.subr.bf16.mxu0 0
        %3406 = vmatpush1.bf16.msra.mxu0 0
        %3407 = vmatprep.subr.bf16.mxu0 0
        %3408 = vmatpush1.bf16.msra.mxu0 0
        %3409 = vmatprep.subr.bf16.mxu0 0
        %3410 = vmatpush1.bf16.msra.mxu0 0
        %3411 = vmatprep.subr.bf16.mxu0 0
        %3412 = vmatpush1.bf16.msra.mxu0 0
        %3413 = vmatprep.subr.bf16.mxu0 0
        %3414 = vmatpush1.bf16.msra.mxu0 0
        %3415 = vmatprep.subr.bf16.mxu0 0
        %3416 = vmatpush1.bf16.msra.mxu0 0
        %3417 = vmatprep.subr.bf16.mxu0 0
        %3418 = vmatpush1.bf16.msra.mxu0 0
        %3419 = vmatprep.subr.bf16.mxu0 0
        %3420 = vmatpush1.bf16.msra.mxu0 0
        %3421 = vmatprep.subr.bf16.mxu0 0
        %3422 = vmatpush1.bf16.msra.mxu0 0
        %3423 = vmatprep.subr.bf16.mxu0 0
        %3424 = vmatpush1.bf16.msra.mxu0 0
        %3425 = vmatprep.subr.bf16.mxu0 0
        %3426 = vmatpush1.bf16.msra.mxu0 0
        %3427 = vmatprep.subr.bf16.mxu0 0
        %3428 = vmatpush1.bf16.msra.mxu0 0
        %3429 = vmatprep.subr.bf16.mxu0 0
        %3430 = vmatpush1.bf16.msra.mxu0 0
        %3431 = vmatprep.subr.bf16.mxu0 0
        %3432 = vmatpush1.bf16.msra.mxu0 0
        %3433 = vmatprep.mubr.bf16.mxu0 0
        %3434 = vmatmul.mubr.bf16.gmra.mrb[0].mxu0 %v3396
        %v3435 = vpop.f32.mrb[0].mxu0
        %v3436 = vadd.f32 0.0, %v3435
        %v3437 = vpop.f32.mrb[0].mxu0
        %v3438 = vpop.f32.mrb[0].mxu0
        %v3439 = vadd.f32 0.0, %v3438
        %v3440 = vpop.f32.mrb[0].mxu0
        %3441 = vmatprep.mubr.bf16.mxu0 0
        %3442 = vmatmul.mubr.bf16.gmra.mrb[0].mxu0 %v3399
        %v3443 = vpop.f32.mrb[0].mxu0
        %v3444 = vadd.f32 0.0, %v3443
        %v3445 = vpop.f32.mrb[0].mxu0
        %v3446 = vpop.f32.mrb[0].mxu0
        %v3447 = vadd.f32 0.0, %v3446
        %v3448 = vpop.f32.mrb[0].mxu0
        %3449 = vdwg.mxu0
        %v3450 = vpack.c.bf16 %v3439, %v3436
        %v3451 = vpack.c.bf16 %v3447, %v3444
        %v3452 = vld [vmem:[#allocation8 + $0x10] sm:$0xf]
        %v3453 = vld [vmem:[#allocation8 + $0x14] sm:$0xf]
        %v3456 = vunpack.c.l.b16 %v3452
        %v3457 = vunpack.c.l.b16 %v3453
        %v3458 = vpack.c.b16 %v3457, %v3456
        %v3461 = vsel %vm1426, %v3450, 0
        %v3464 = vsel %vm1426, %v3451, 0
        %3466 = vmatprep.subr.bf16.mxu0 0
        %3467 = vmatpush1.bf16.msra.mxu0 %v3458
        %3468 = vmatprep.subr.bf16.mxu0 0
        %3469 = vmatpush1.bf16.msra.mxu0 0
        %3470 = vmatprep.subr.bf16.mxu0 0
        %3471 = vmatpush1.bf16.msra.mxu0 0
        %3472 = vmatprep.subr.bf16.mxu0 0
        %3473 = vmatpush1.bf16.msra.mxu0 0
        %3474 = vmatprep.subr.bf16.mxu0 0
        %3475 = vmatpush1.bf16.msra.mxu0 0
        %3476 = vmatprep.subr.bf16.mxu0 0
        %3477 = vmatpush1.bf16.msra.mxu0 0
        %3478 = vmatprep.subr.bf16.mxu0 0
        %3479 = vmatpush1.bf16.msra.mxu0 0
        %3480 = vmatprep.subr.bf16.mxu0 0
        %3481 = vmatpush1.bf16.msra.mxu0 0
        %3482 = vmatprep.subr.bf16.mxu0 0
        %3483 = vmatpush1.bf16.msra.mxu0 0
        %3484 = vmatprep.subr.bf16.mxu0 0
        %3485 = vmatpush1.bf16.msra.mxu0 0
        %3486 = vmatprep.subr.bf16.mxu0 0
        %3487 = vmatpush1.bf16.msra.mxu0 0
        %3488 = vmatprep.subr.bf16.mxu0 0
        %3489 = vmatpush1.bf16.msra.mxu0 0
        %3490 = vmatprep.subr.bf16.mxu0 0
        %3491 = vmatpush1.bf16.msra.mxu0 0
        %3492 = vmatprep.subr.bf16.mxu0 0
        %3493 = vmatpush1.bf16.msra.mxu0 0
        %3494 = vmatprep.subr.bf16.mxu0 0
        %3495 = vmatpush1.bf16.msra.mxu0 0
        %3496 = vmatprep.subr.bf16.mxu0 0
        %3497 = vmatpush1.bf16.msra.mxu0 0
        %3498 = vmatprep.mubr.bf16.mxu0 0
        %3499 = vmatmul.mubr.bf16.gmra.mrb[0].mxu0 %v3461
        %v3500 = vpop.f32.mrb[0].mxu0
        %v3501 = vadd.f32 0.0, %v3500
        %v3502 = vpop.f32.mrb[0].mxu0
        %v3503 = vpop.f32.mrb[0].mxu0
        %v3504 = vadd.f32 0.0, %v3503
        %v3505 = vpop.f32.mrb[0].mxu0
        %3506 = vmatprep.mubr.bf16.mxu0 0
        %3507 = vmatmul.mubr.bf16.gmra.mrb[0].mxu0 %v3464
        %v3508 = vpop.f32.mrb[0].mxu0
        %v3509 = vadd.f32 0.0, %v3508
        %v3510 = vpop.f32.mrb[0].mxu0
        %v3511 = vpop.f32.mrb[0].mxu0
        %v3512 = vadd.f32 0.0, %v3511
        %v3513 = vpop.f32.mrb[0].mxu0
        %3514 = vdwg.mxu0
        %v3515 = vadd.f32 %v3270, %v3501
        %v3516 = vadd.f32 %v3273, %v3504
        %v3517 = vadd.f32 %v3278, %v3509
        %v3518 = vadd.f32 %v3281, %v3512
        %3519 = vrot.lane.b32.xlu0 %v1554, 80
        %v3520 = vpop.permute.xlu0 %3519
        %3521 = vrot.lane.b32.xlu0 %v1555, 80
        %v3522 = vpop.permute.xlu0 %3521
        %v3524 = vsel %vm1426, %v3520, 0
        %v3527 = vsel %vm1426, %v3522, 0
        %3529 = vmatprep.subr.bf16.mxu0 0
        %3530 = vmatpush1.bf16.msra.mxu0 %v2827
        %3531 = vmatprep.subr.bf16.mxu0 0
        %3532 = vmatpush1.bf16.msra.mxu0 0
        %3533 = vmatprep.subr.bf16.mxu0 0
        %3534 = vmatpush1.bf16.msra.mxu0 0
        %3535 = vmatprep.subr.bf16.mxu0 0
        %3536 = vmatpush1.bf16.msra.mxu0 0
        %3537 = vmatprep.subr.bf16.mxu0 0
        %3538 = vmatpush1.bf16.msra.mxu0 0
        %3539 = vmatprep.subr.bf16.mxu0 0
        %3540 = vmatpush1.bf16.msra.mxu0 0
        %3541 = vmatprep.subr.bf16.mxu0 0
        %3542 = vmatpush1.bf16.msra.mxu0 0
        %3543 = vmatprep.subr.bf16.mxu0 0
        %3544 = vmatpush1.bf16.msra.mxu0 0
        %3545 = vmatprep.subr.bf16.mxu0 0
        %3546 = vmatpush1.bf16.msra.mxu0 0
        %3547 = vmatprep.subr.bf16.mxu0 0
        %3548 = vmatpush1.bf16.msra.mxu0 0
        %3549 = vmatprep.subr.bf16.mxu0 0
        %3550 = vmatpush1.bf16.msra.mxu0 0
        %3551 = vmatprep.subr.bf16.mxu0 0
        %3552 = vmatpush1.bf16.msra.mxu0 0
        %3553 = vmatprep.subr.bf16.mxu0 0
        %3554 = vmatpush1.bf16.msra.mxu0 0
        %3555 = vmatprep.subr.bf16.mxu0 0
        %3556 = vmatpush1.bf16.msra.mxu0 0
        %3557 = vmatprep.subr.bf16.mxu0 0
        %3558 = vmatpush1.bf16.msra.mxu0 0
        %3559 = vmatprep.subr.bf16.mxu0 0
        %3560 = vmatpush1.bf16.msra.mxu0 0
        %3561 = vmatprep.mubr.bf16.mxu0 0
        %3562 = vmatmul.mubr.bf16.gmra.mrb[0].mxu0 %v3524
        %v3563 = vpop.f32.mrb[0].mxu0
        %v3564 = vadd.f32 %v2788, %v3563
        %v3565 = vpop.f32.mrb[0].mxu0
        %v3566 = vpop.f32.mrb[0].mxu0
        %v3567 = vadd.f32 %v2789, %v3566
        %v3568 = vpop.f32.mrb[0].mxu0
        %3569 = vmatprep.mubr.bf16.mxu0 0
        %3570 = vmatmul.mubr.bf16.gmra.mrb[0].mxu0 %v3527
        %v3571 = vpop.f32.mrb[0].mxu0
        %v3572 = vadd.f32 %v2790, %v3571
        %v3573 = vpop.f32.mrb[0].mxu0
        %v3574 = vpop.f32.mrb[0].mxu0
        %v3575 = vadd.f32 %v2791, %v3574
        %v3576 = vpop.f32.mrb[0].mxu0
        %3577 = vdwg.mxu0
        %v3578 = vsel %vm1444, %v3564, -inf
        %3579 = vmax.xlane.f32.xlu0 %v3578
        %v3580 = vpop.xlane.xlu0 %3579
        %v3581 = vsel %vm1444, %v3567, -inf
        %3582 = vmax.xlane.f32.xlu0 %v3581
        %v3583 = vpop.xlane.xlu0 %3582
        %v3584 = vsel %vm1444, %v3572, -inf
        %3585 = vmax.xlane.f32.xlu0 %v3584
        %v3586 = vpop.xlane.xlu0 %3585
        %v3587 = vsel %vm1444, %v3575, -inf
        %3588 = vmax.xlane.f32.xlu0 %v3587
        %v3589 = vpop.xlane.xlu0 %3588
        %v3590 = vsub.f32 %v3564, %v3580
        %v3591 = vsub.f32 %v3567, %v3583
        %v3592 = vsub.f32 %v3572, %v3586
        %v3593 = vsub.f32 %v3575, %v3589
        %v3594 = vmul.f32 %v3590, 1.442695
        %v3595 = vpow.pop %v3594
        %v3596 = vmul.f32 %v3591, 1.442695
        %v3597 = vpow.pop %v3596
        %v3598 = vmul.f32 %v3592, 1.442695
        %v3599 = vpow.pop %v3598
        %v3600 = vmul.f32 %v3593, 1.442695
        %v3601 = vpow.pop %v3600
        %v3602 = vsel %vm1444, %v3595, 0.0
        %3603 = vadd.xlane.f32.xlu0 %v3602
        %v3604 = vpop.xlane.xlu0 %3603
        %v3605 = vsel %vm1444, %v3597, 0.0
        %3606 = vadd.xlane.f32.xlu0 %v3605
        %v3607 = vpop.xlane.xlu0 %3606
        %v3608 = vsel %vm1444, %v3599, 0.0
        %3609 = vadd.xlane.f32.xlu0 %v3608
        %v3610 = vpop.xlane.xlu0 %3609
        %v3611 = vsel %vm1444, %v3601, 0.0
        %3612 = vadd.xlane.f32.xlu0 %v3611
        %v3613 = vpop.xlane.xlu0 %3612
        %v3614 = vrcp.pop %v3604
        %v3615 = vrcp.pop %v3607
        %v3616 = vrcp.pop %v3610
        %v3617 = vrcp.pop %v3613
        %v3618 = vmul.f32 %v3595, %v3614
        %v3619 = vmul.f32 %v3597, %v3615
        %v3620 = vmul.f32 %v3599, %v3616
        %v3621 = vmul.f32 %v3601, %v3617
        %v3622 = vpack.c.bf16 %v3619, %v3618
        %v3623 = vpack.c.bf16 %v3621, %v3620
        %3624 = vrot.lane.b32.xlu0 %v1776, 80
        %v3625 = vpop.permute.xlu0 %3624
        %3626 = vrot.lane.b32.xlu0 %v1777, 80
        %v3627 = vpop.permute.xlu0 %3626
        %v3631 = vsel %vm1444, %v3622, 0
        %v3634 = vsel %vm1444, %v3623, 0
        %3636 = vmatprep.subr.bf16.mxu0 0
        %3637 = vmatpush1.bf16.msra.mxu0 %v3625
        %3638 = vmatprep.subr.bf16.mxu0 0
        %3639 = vmatpush1.bf16.msra.mxu0 %v3627
        %3640 = vmatprep.subr.bf16.mxu0 0
        %3641 = vmatpush1.bf16.msra.mxu0 0
        %3642 = vmatprep.subr.bf16.mxu0 0
        %3643 = vmatpush1.bf16.msra.mxu0 0
        %3644 = vmatprep.subr.bf16.mxu0 0
        %3645 = vmatpush1.bf16.msra.mxu0 0
        %3646 = vmatprep.subr.bf16.mxu0 0
        %3647 = vmatpush1.bf16.msra.mxu0 0
        %3648 = vmatprep.subr.bf16.mxu0 0
        %3649 = vmatpush1.bf16.msra.mxu0 0
        %3650 = vmatprep.subr.bf16.mxu0 0
        %3651 = vmatpush1.bf16.msra.mxu0 0
        %3652 = vmatprep.subr.bf16.mxu0 0
        %3653 = vmatpush1.bf16.msra.mxu0 0
        %3654 = vmatprep.subr.bf16.mxu0 0
        %3655 = vmatpush1.bf16.msra.mxu0 0
        %3656 = vmatprep.subr.bf16.mxu0 0
        %3657 = vmatpush1.bf16.msra.mxu0 0
        %3658 = vmatprep.subr.bf16.mxu0 0
        %3659 = vmatpush1.bf16.msra.mxu0 0
        %3660 = vmatprep.subr.bf16.mxu0 0
        %3661 = vmatpush1.bf16.msra.mxu0 0
        %3662 = vmatprep.subr.bf16.mxu0 0
        %3663 = vmatpush1.bf16.msra.mxu0 0
        %3664 = vmatprep.subr.bf16.mxu0 0
        %3665 = vmatpush1.bf16.msra.mxu0 0
        %3666 = vmatprep.subr.bf16.mxu0 0
        %3667 = vmatpush1.bf16.msra.mxu0 0
        %3668 = vmatprep.mubr.bf16.mxu0 0
        %3669 = vmatmul.mubr.bf16.gmra.mrb[0].mxu0 %v3631
        %v3670 = vpop.f32.mrb[0].mxu0
        %v3671 = vadd.f32 0.0, %v3670
        %v3672 = vpop.f32.mrb[0].mxu0
        %v3673 = vpop.f32.mrb[0].mxu0
        %v3674 = vadd.f32 0.0, %v3673
        %v3675 = vpop.f32.mrb[0].mxu0
        %3676 = vmatprep.mubr.bf16.mxu0 0
        %3677 = vmatmul.mubr.bf16.gmra.mrb[0].mxu0 %v3634
        %v3678 = vpop.f32.mrb[0].mxu0
        %v3679 = vadd.f32 0.0, %v3678
        %v3680 = vpop.f32.mrb[0].mxu0
        %v3681 = vpop.f32.mrb[0].mxu0
        %v3682 = vadd.f32 0.0, %v3681
        %v3683 = vpop.f32.mrb[0].mxu0
        %3684 = vdwg.mxu0
        %v3685 = vpack.c.bf16 %v3674, %v3671
        %v3686 = vpack.c.bf16 %v3682, %v3679
        %v3687 = vld [vmem:[#allocation8 + $0x18] sm:$0xf]
        %v3688 = vld [vmem:[#allocation8 + $0x1c] sm:$0xf]
        %v3691 = vunpack.c.l.b16 %v3687
        %v3692 = vunpack.c.l.b16 %v3688
        %v3693 = vpack.c.b16 %v3692, %v3691
        %v3696 = vsel %vm1426, %v3685, 0
        %v3699 = vsel %vm1426, %v3686, 0
        %3701 = vmatprep.subr.bf16.mxu0 0
        %3702 = vmatpush1.bf16.msra.mxu0 %v3693
        %3703 = vmatprep.subr.bf16.mxu0 0
        %3704 = vmatpush1.bf16.msra.mxu0 0
        %3705 = vmatprep.subr.bf16.mxu0 0
        %3706 = vmatpush1.bf16.msra.mxu0 0
        %3707 = vmatprep.subr.bf16.mxu0 0
        %3708 = vmatpush1.bf16.msra.mxu0 0
        %3709 = vmatprep.subr.bf16.mxu0 0
        %3710 = vmatpush1.bf16.msra.mxu0 0
        %3711 = vmatprep.subr.bf16.mxu0 0
        %3712 = vmatpush1.bf16.msra.mxu0 0
        %3713 = vmatprep.subr.bf16.mxu0 0
        %3714 = vmatpush1.bf16.msra.mxu0 0
        %3715 = vmatprep.subr.bf16.mxu0 0
        %3716 = vmatpush1.bf16.msra.mxu0 0
        %3717 = vmatprep.subr.bf16.mxu0 0
        %3718 = vmatpush1.bf16.msra.mxu0 0
        %3719 = vmatprep.subr.bf16.mxu0 0
        %3720 = vmatpush1.bf16.msra.mxu0 0
        %3721 = vmatprep.subr.bf16.mxu0 0
        %3722 = vmatpush1.bf16.msra.mxu0 0
        %3723 = vmatprep.subr.bf16.mxu0 0
        %3724 = vmatpush1.bf16.msra.mxu0 0
        %3725 = vmatprep.subr.bf16.mxu0 0
        %3726 = vmatpush1.bf16.msra.mxu0 0
        %3727 = vmatprep.subr.bf16.mxu0 0
        %3728 = vmatpush1.bf16.msra.mxu0 0
        %3729 = vmatprep.subr.bf16.mxu0 0
        %3730 = vmatpush1.bf16.msra.mxu0 0
        %3731 = vmatprep.subr.bf16.mxu0 0
        %3732 = vmatpush1.bf16.msra.mxu0 0
        %3733 = vmatprep.mubr.bf16.mxu0 0
        %3734 = vmatmul.mubr.bf16.gmra.mrb[0].mxu0 %v3696
        %v3735 = vpop.f32.mrb[0].mxu0
        %v3736 = vadd.f32 0.0, %v3735
        %v3737 = vpop.f32.mrb[0].mxu0
        %v3738 = vpop.f32.mrb[0].mxu0
        %v3739 = vadd.f32 0.0, %v3738
        %v3740 = vpop.f32.mrb[0].mxu0
        %3741 = vmatprep.mubr.bf16.mxu0 0
        %3742 = vmatmul.mubr.bf16.gmra.mrb[0].mxu0 %v3699
        %v3743 = vpop.f32.mrb[0].mxu0
        %v3744 = vadd.f32 0.0, %v3743
        %v3745 = vpop.f32.mrb[0].mxu0
        %v3746 = vpop.f32.mrb[0].mxu0
        %v3747 = vadd.f32 0.0, %v3746
        %v3748 = vpop.f32.mrb[0].mxu0
        %3749 = vdwg.mxu0
        %v3750 = vadd.f32 %v3515, %v3736
        %v3751 = vadd.f32 %v3516, %v3739
        %v3752 = vadd.f32 %v3517, %v3744
        %v3753 = vadd.f32 %v3518, %v3747
        %v3754 = vmul.f32 %v3750, %v1715
        %v3755 = vmul.f32 %v3751, %v1720
        %v3756 = vmul.f32 %v3752, %v1725
        %v3757 = vmul.f32 %v3753, %v1730
        %s3758 = scalar_lea.vmem %s524, 32 [#allocation12]
        %3759 = vst.msk [vmem:[%s3758] sm:$0xff] %vm629, %v3754
        %3760 = vst.msk [vmem:[%s3758 + $0x8] sm:$0xff] %vm629, %v3755
        %3761 = vst.msk [vmem:[%s3758 + $0x10] sm:$0xff] %vm629, %v3756
        %3762 = vst.msk [vmem:[%s3758 + $0x18] sm:$0xff] %vm629, %v3757
        %s3763 = sand.u32 %s292, 1
        %s3764 = scalar_lea.sflag [#allocation4], %s3763
        %s3765 = sand.u32 %s292, 1
        %s3766 = smul.addr %s3765, 64
        %s3767 = scalar_lea.vmem [#allocation12], %s3766
        // Predicated region
        $region85: #{tpu_custom_call.1} parent=63 // pred_check
          %p3768 = pneg %p302
        $region86: #{tpu_custom_call.1} parent=63 // pred_check_branch
          %3770 = sbr.rel (%p3768) target = $region88
        $region87: #{tpu_custom_call.1} parent=63 // pred_region
          %s3771 = smul.u32 2, %s33
          %s3773 = ssub.s32 1024, 1024
          %3774 = vsyncadd %s3764, %s3773
          %s3775 = smul.addr %s3771, 4
          %s3776 = smul.addr %s3775, 128
          %s3777 = scalar_lea.hbm %s11, %s3776
          %s3778 = sshll.u32 %s3767, 4
          %s3779 = int_to_ptr.vmem [resolvable:$true] %s3778
          %3784 = dma.vmem_to_hbm [thread:$0]  %s3779, 1024, %s3777, %s3764, 128, 128, 8
        $region88: #{tpu_custom_call.1} parent=63 // pred_fallthru
          _
      $region64: #{tpu_custom_call.1} parent=5 // pred_fallthru
        _
      %p3785 = scmp.le.s32.totalorder 2, %s28
      // Predicated region
      $region89: #{tpu_custom_call.1} parent=5 // pred_check
        %p3786 = pneg %p3785
      $region90: #{tpu_custom_call.1} parent=5 // pred_check_branch
        %3788 = sbr.rel (%p3786) target = $region92
      $region91: #{tpu_custom_call.1} parent=5 // pred_region
        %s3789 = ssub.s32 %s28, 2
        // Predicated region
        $region93: #{tpu_custom_call.1} parent=91 // pred_check
          %p3790 = pneg %p308
        $region94: #{tpu_custom_call.1} parent=91 // pred_check_branch
          %3792 = sbr.rel (%p3790) target = $region96
        $region95: #{tpu_custom_call.1} parent=91 // pred_region
          %s3793 = sand.u32 %s293, 1
          %s3794 = scalar_lea.sflag [#allocation4], %s3793
          %s3795 = sand.u32 %s293, 1
          %s3796 = smul.addr %s3795, 64
          %s3797 = scalar_lea.vmem [#allocation12], %s3796
          %3798 = dma.done %s3794, 1024
        $region96: #{tpu_custom_call.1} parent=91 // pred_fallthru
          _
      $region92: #{tpu_custom_call.1} parent=5 // pred_fallthru
        _
    $region6: #{tpu_custom_call.1} parent=1 // loop_footer
      %s32 = sadd.s32 1, %s28
    $region7: #{tpu_custom_call.1} parent=1 // loop_footer_branch
      %27 = sbr.rel target = $region3
    $region8: #{tpu_custom_call.1} parent=1 // loop_exit
      _
    %3799 = vsyncpa [#allocation3], 1
    %s3800 = scalar_lea.sflag [#allocation3], 1
    %3801 = vsyncpa %s3800, 1
    %3802 = vsyncpa [#allocation7], 1
    %s3803 = scalar_lea.sflag [#allocation7], 1
    %3804 = vsyncpa %s3803, 1
    %3805 = vsyncpa [#allocation10], 1
    %3806 = vsyncpa [#allocation4], 1
    %s3807 = scalar_lea.sflag [#allocation4], 1
    %3808 = vsyncpa %s3807, 1
    %3809 = vsyncpa [#allocation5], 1
    %s3810 = scalar_lea.sflag [#allocation5], 1
    %3811 = vsyncpa %s3810, 1

</llo_original>
